<compile_context>
chip_gen: v5e
topology: v5e:2x2
jax: 0.10.0
libtpu: 0.0.40
codegen_flags: <defaults>
</compile_context>

<pallas_src>
import functools

import jax
import jax.numpy as jnp
from jax.experimental import pallas as pl
from jax.experimental.pallas import tpu as pltpu

_LANE = 128
_SUBLANE = 8


def _inst_reweight_kernel(n_total, x_ref, aw_ref, fcw_ref, fcb_ref, scal_ref,
                          out_ref, score_ref, m_sc, l_sc, agg_sc, mean_sc):
    """Grid = (B tiles, N tiles); the N reduction is the innermost ("arbitrary") axis.

    x_ref:     (TB, TN, Cp) f32      -- current tile of x
    aw_ref:    (1, Cp)      f32      -- Linear(C->1) weight (zero padded)
    fcw_ref:   (Cp, Cp)     f32      -- fc weight in PyTorch (out, in) layout
    fcb_ref:   (1, Cp)      f32      -- fc bias
    scal_ref:  (2,)         f32 SMEM -- [ratio, attention bias]
    out_ref:   (TB, Cp)     f32      -- resident across N, written at finalize
    score_ref: (TB, NT, TN) f32      -- resident across N (softmax over all of N)
    scratch: running max / denom (TB,1), weighted accum / plain-sum accum (TB,Cp)
    """
    ni = pl.program_id(1)
    last = pl.num_programs(1) - 1

    @pl.when(ni == 0)
    def _init():
        m_sc[...] = jnp.full_like(m_sc, -jnp.inf)
        l_sc[...] = jnp.zeros_like(l_sc)
        agg_sc[...] = jnp.zeros_like(agg_sc)
        mean_sc[...] = jnp.zeros_like(mean_sc)
        score_ref[...] = jnp.zeros_like(score_ref)

    x = x_ref[...]                                           # (TB, TN, Cp)
    aw = aw_ref[...].reshape(1, 1, -1)                       # (1, 1, Cp)
    ab = scal_ref[1]                                         # scalar (SMEM)

    # Attention logits for this N tile: VPU multiply + lane reduction over C.
    s = jnp.sum(x * aw, axis=-1) + ab                        # (TB, TN)

    # Online softmax update so the full N never has to be VMEM resident.
    m_prev = m_sc[...]                                       # (TB, 1)
    m_new = jnp.maximum(m_prev, jnp.max(s, axis=-1, keepdims=True))
    alpha = jnp.exp(m_prev - m_new)                          # (TB, 1); 0 at ni==0
    p = jnp.exp(s - m_new)                                   # (TB, TN)
    m_sc[...] = m_new
    l_sc[...] = alpha * l_sc[...] + jnp.sum(p, axis=-1, keepdims=True)

    # Weighted aggregation on the MXU: p as (TB,1,TN) @ x (TB,TN,Cp). The plain
    # sum feeding x.mean(dim=1) reuses the same x tile (single HBM pass over x)
    # and runs as a sublane reduction in parallel with the MXU work.
    agg_tile = jnp.einsum("bqn,bnc->bqc", p[:, None, :], x,
                          preferred_element_type=jnp.float32)[:, 0, :]
    agg_sc[...] = alpha * agg_sc[...] + agg_tile             # (TB, Cp)
    mean_sc[...] = mean_sc[...] + jnp.sum(x, axis=1)         # (TB, Cp)

    # Keep previously written (still unnormalized) score tiles consistent with
    # the running max, then write this tile's slice (dynamic sublane index; the
    # lane dim stays dense at TN).
    score_ref[...] = score_ref[...] * alpha[:, :, None]
    score_ref[:, pl.ds(ni, 1), :] = p[:, None, :]

    @pl.when(ni == last)
    def _finalize():
        inv_l = pl.reciprocal(l_sc[...], approx=False)       # (TB, 1), EUP
        score_ref[...] = score_ref[...] * inv_l[:, :, None]
        agg = agg_sc[...] * inv_l                            # (TB, Cp)

        # fc: agg @ W^T + b, contracting dim 1 of both operands — the MXU handles
        # the transposed contraction natively, no transposed fc_w copy needed.
        x_attn = jax.lax.dot_general(
            agg, fcw_ref[...],
            dimension_numbers=(((1,), (1,)), ((), ())),
            preferred_element_type=jnp.float32) + fcb_ref[...]   # (TB, Cp)
        x_mean = mean_sc[...] * (1.0 / n_total)                   # (TB, Cp)

        def l2norm(v):
            # F.normalize(dim=-1) == v / max(||v||, 1e-12); rsqrt runs on the EUP.
            n2 = jnp.sum(v * v, axis=-1, keepdims=True)
            return v * jax.lax.rsqrt(jnp.maximum(n2, 1e-24))

        ratio = scal_ref[0]
        out = ratio * l2norm(x_attn) + (1.0 - ratio) * l2norm(x_mean)
        out_ref[...] = l2norm(out)


def _pick_block_b(b):
    if b % _SUBLANE or b <= _SUBLANE:
        return b                       # full dim is always a legal block
    tb = min(b, 128)
    tb -= tb % _SUBLANE
    while b % tb:
        tb -= _SUBLANE
    return tb


def _pick_block_n(n):
    if n % _LANE or n <= 512:
        return n                       # keep the whole reduction in one step
    for cand in (512, 384, 256, 128):
        if n % cand == 0:
            return cand
    return n


def _auto_blocks(b, n, cp):
    bb, bn = _pick_block_b(b), _pick_block_n(n)
    # Keep the double-buffered x tile well inside v7x's ~32 MiB scoped VMEM.
    max_tile = 4 << 20
    while bb * bn * cp * 4 > max_tile and bn % (2 * _LANE) == 0 and n % (bn // 2) == 0:
        bn //= 2
    while bb * bn * cp * 4 > max_tile and bb % (2 * _SUBLANE) == 0 and b % (bb // 2) == 0:
        bb //= 2
    return bb, bn


def inst_reweight(x, attn_w, attn_b, fc_w, fc_b, ratio=0.5,
                  block_b=None, block_n=None):
    """Pallas-TPU InstReweight forward.

    x: (B, N, C); attn_w: (1, C); attn_b: (1,); fc_w: (C, C); fc_b: (C,)
    Returns (out (B, C), attn_score (B, N, 1)) matching the PyTorch module.
    """
    B, N, C = x.shape
    cp = ((C + _LANE - 1) // _LANE) * _LANE      # lane-dense channel dim

    x = x.astype(jnp.float32)
    aw = attn_w.reshape(1, C).astype(jnp.float32)
    fw = fc_w.astype(jnp.float32)
    fb = fc_b.reshape(1, C).astype(jnp.float32)
    if cp != C:
        pad = cp - C
        x = jnp.pad(x, ((0, 0), (0, 0), (0, pad)))
        aw = jnp.pad(aw, ((0, 0), (0, pad)))
        fw = jnp.pad(fw, ((0, pad), (0, pad)))
        fb = jnp.pad(fb, ((0, 0), (0, pad)))

    auto_bb, auto_bn = _auto_blocks(B, N, cp)
    bb = auto_bb if block_b is None else block_b
    bn = auto_bn if block_n is None else block_n
    assert B % bb == 0 and N % bn == 0, (bb, bn, B, N)
    nt = N // bn

    # ratio + attention bias travel as SMEM scalars (scalar path, no recompiles).
    scalars = jnp.stack([jnp.asarray(ratio, dtype=jnp.float32),
                         attn_b.astype(jnp.float32).reshape(())])

    kernel = functools.partial(_inst_reweight_kernel, N)
    grid = (B // bb, nt)

    out, score = pl.pallas_call(
        kernel,
        out_shape=(jax.ShapeDtypeStruct((B, cp), jnp.float32),
                   jax.ShapeDtypeStruct((B, nt, bn), jnp.float32)),
        grid_spec=pltpu.PrefetchScalarGridSpec(
            num_scalar_prefetch=0,
            grid=grid,
            in_specs=[
                pl.BlockSpec((bb, bn, cp), lambda bi, ni: (bi, ni, 0)),   # x
                pl.BlockSpec((1, cp), lambda bi, ni: (0, 0)),             # attn_w
                pl.BlockSpec((cp, cp), lambda bi, ni: (0, 0)),            # fc_w
                pl.BlockSpec((1, cp), lambda bi, ni: (0, 0)),             # fc_b
                pl.BlockSpec(memory_space=pltpu.MemorySpace.SMEM),        # scalars
            ],
            out_specs=(
                pl.BlockSpec((bb, cp), lambda bi, ni: (bi, 0)),           # out
                pl.BlockSpec((bb, nt, bn), lambda bi, ni: (bi, 0, 0)),    # score
            ),
            scratch_shapes=[
                pltpu.VMEM((bb, 1), jnp.float32),    # running max
                pltpu.VMEM((bb, 1), jnp.float32),    # running denom
                pltpu.VMEM((bb, cp), jnp.float32),   # weighted-sum accumulator
                pltpu.VMEM((bb, cp), jnp.float32),   # plain-sum accumulator (mean)
            ]),
        compiler_params=pltpu.CompilerParams(
            dimension_semantics=("parallel", "arbitrary"),
            vmem_limit_bytes=32 * 1024 * 1024),
    )(x, aw, fw, fb, scalars)

    if cp != C:
        out = out[:, :C]
    # PyTorch returns attn_score with shape (B, N, 1); the kernel keeps it as a
    # lane-dense (B, N/TN, TN) slab — restore (B, N, 1) here (contiguous reshape).
    return out, score.reshape(B, N, 1)


def inst_reweight_ref(x, attn_w, attn_b, fc_w, fc_b, ratio=0.5):
    """Pure-JAX reference mirroring the PyTorch module (full f32 matmuls)."""
    hi = jax.lax.Precision.HIGHEST
    s = jnp.einsum("bnc,oc->bno", x, attn_w, precision=hi) + attn_b   # (B, N, 1)
    p = jax.nn.softmax(s, axis=1)                                     # (B, N, 1)
    agg = (x * p).sum(axis=1)                                         # (B, C)
    x_attn = jnp.einsum("bc,oc->bo", agg, fc_w, precision=hi) + fc_b  # (B, C)

    def norm(v):
        n = jnp.linalg.norm(v, axis=-1, keepdims=True)
        return v / jnp.maximum(n, 1e-12)

    out = ratio * norm(x_attn) + (1.0 - ratio) * norm(x.mean(axis=1))
    return norm(out), p


if __name__ == "__main__":
    B, N, C = 16, 256, 128
    ratio = 0.5

    key = jax.random.PRNGKey(0)
    kx, kaw, kab, kfw, kfb = jax.random.split(key, 5)

    x = jax.random.normal(kx, (B, N, C), dtype=jnp.float32)
    # Deterministic synthetic params (shapes per nn.Linear(C,1) / nn.Linear(C,C)).
    attn_w = jax.random.normal(kaw, (1, C), dtype=jnp.float32) * 0.1
    attn_b = jax.random.normal(kab, (1,), dtype=jnp.float32) * 0.1
    fc_w = jax.random.normal(kfw, (C, C), dtype=jnp.float32) * 0.1
    fc_b = jax.random.normal(kfb, (C,), dtype=jnp.float32) * 0.1

    # block_b=8 / block_n=128 -> grid (2, 2): exercises the "parallel" B axis and
    # the online-softmax reduction over tiled N.
    out, score = inst_reweight(x, attn_w, attn_b, fc_w, fc_b, ratio,
                               block_b=8, block_n=128)
    out = jax.block_until_ready(out)
    score = jax.block_until_ready(score)

    ref_out, ref_score = inst_reweight_ref(x, attn_w, attn_b, fc_w, fc_b, ratio)

    assert out.shape == (B, C) and score.shape == (B, N, 1)
    assert jnp.allclose(out, ref_out, atol=1e-4, rtol=1e-4), \
        float(jnp.max(jnp.abs(out - ref_out)))
    assert jnp.allclose(score, ref_score, atol=1e-5, rtol=1e-4), \
        float(jnp.max(jnp.abs(score - ref_score)))

    print("KERNEL_OK")
</pallas_src>

<mosaic_0001>
module attributes {stable_mosaic.version = 11 : i64} {
  func.func @_inst_reweight_kernel(%arg0: i32, %arg1: i32, %arg2: memref<8x128x128xf32, #tpu.memory_space<vmem>>, %arg3: memref<1x128xf32, #tpu.memory_space<vmem>>, %arg4: memref<128x128xf32, #tpu.memory_space<vmem>>, %arg5: memref<1x128xf32, #tpu.memory_space<vmem>>, %arg6: memref<2xf32, #tpu.memory_space<smem>>, %arg7: memref<8x128xf32, #tpu.memory_space<vmem>>, %arg8: memref<8x2x128xf32, #tpu.memory_space<vmem>>, %arg9: memref<8x1xf32, #tpu.memory_space<vmem>>, %arg10: memref<8x1xf32, #tpu.memory_space<vmem>>, %arg11: memref<8x128xf32, #tpu.memory_space<vmem>>, %arg12: memref<8x128xf32, #tpu.memory_space<vmem>>) attributes {dimension_semantics = [#tpu.dimension_semantics<parallel>, #tpu.dimension_semantics<arbitrary>], iteration_bounds = array<i64: 2, 2>, scalar_prefetch = 0 : i64, scratch_operands = 4 : i64, tpu.core_type = #tpu.core_type<tc>, window_params = [{transform_indices = @transform_0, window_bounds = array<i64: 8, 128, 128>}, {pipeline_mode = #tpu.pipeline_mode<synchronous>, transform_indices = @transform_1, window_bounds = array<i64: 1, 128>}, {pipeline_mode = #tpu.pipeline_mode<synchronous>, transform_indices = @transform_2, window_bounds = array<i64: 128, 128>}, {pipeline_mode = #tpu.pipeline_mode<synchronous>, transform_indices = @transform_3, window_bounds = array<i64: 1, 128>}, {transform_indices = @transform_4, window_bounds = array<i64: 2>}, {transform_indices = @transform_5, window_bounds = array<i64: 8, 128>}, {transform_indices = @transform_6, window_bounds = array<i64: 8, 2, 128>}]} {
    %c0_i32 = arith.constant 0 : i32
    %0 = arith.cmpi eq, %arg1, %c0_i32 : i32
    %1 = arith.extui %0 : i1 to i32
    %c0_i32_0 = arith.constant 0 : i32
    %2 = arith.cmpi ne, %1, %c0_i32_0 : i32
    scf.if %2 {
      %cst_34 = arith.constant 0xFF800000 : f32
      %51 = vector.broadcast %cst_34 : f32 to vector<8x1xf32>
      %c0_35 = arith.constant 0 : index
      %c0_36 = arith.constant 0 : index
      %52 = vector.load %arg9[%c0_35, %c0_36] : memref<8x1xf32, #tpu.memory_space<vmem>>, vector<8x1xf32>
      tpu.vector_store %arg9[%c0_35, %c0_36], %51 {strides = array<i32>} : memref<8x1xf32, #tpu.memory_space<vmem>>, vector<8x1xf32>,
      %cst_37 = arith.constant 0.000000e+00 : f32
      %53 = vector.broadcast %cst_37 : f32 to vector<8x1xf32>
      %c0_38 = arith.constant 0 : index
      %c0_39 = arith.constant 0 : index
      %54 = vector.load %arg10[%c0_38, %c0_39] : memref<8x1xf32, #tpu.memory_space<vmem>>, vector<8x1xf32>
      tpu.vector_store %arg10[%c0_38, %c0_39], %53 {strides = array<i32>} : memref<8x1xf32, #tpu.memory_space<vmem>>, vector<8x1xf32>,
      %cst_40 = arith.constant 0.000000e+00 : f32
      %55 = vector.broadcast %cst_40 : f32 to vector<8x128xf32>
      %c0_41 = arith.constant 0 : index
      %c0_42 = arith.constant 0 : index
      %56 = vector.load %arg11[%c0_41, %c0_42] : memref<8x128xf32, #tpu.memory_space<vmem>>, vector<8x128xf32>
      tpu.vector_store %arg11[%c0_41, %c0_42], %55 {strides = array<i32>} : memref<8x128xf32, #tpu.memory_space<vmem>>, vector<8x128xf32>,
      %cst_43 = arith.constant 0.000000e+00 : f32
      %57 = vector.broadcast %cst_43 : f32 to vector<8x128xf32>
      %c0_44 = arith.constant 0 : index
      %c0_45 = arith.constant 0 : index
      %58 = vector.load %arg12[%c0_44, %c0_45] : memref<8x128xf32, #tpu.memory_space<vmem>>, vector<8x128xf32>
      tpu.vector_store %arg12[%c0_44, %c0_45], %57 {strides = array<i32>} : memref<8x128xf32, #tpu.memory_space<vmem>>, vector<8x128xf32>,
      %cst_46 = arith.constant 0.000000e+00 : f32
      %59 = vector.broadcast %cst_46 : f32 to vector<8x2x128xf32>
      %c0_47 = arith.constant 0 : index
      %c0_48 = arith.constant 0 : index
      %c0_49 = arith.constant 0 : index
      %60 = vector.load %arg8[%c0_47, %c0_48, %c0_49] : memref<8x2x128xf32, #tpu.memory_space<vmem>>, vector<8x2x128xf32>
      tpu.vector_store %arg8[%c0_47, %c0_48, %c0_49], %59 {strides = array<i32>} : memref<8x2x128xf32, #tpu.memory_space<vmem>>, vector<8x2x128xf32>,
    } else {
    }
    %c0 = arith.constant 0 : index
    %c0_1 = arith.constant 0 : index
    %c0_2 = arith.constant 0 : index
    %3 = vector.load %arg2[%c0, %c0_1, %c0_2] : memref<8x128x128xf32, #tpu.memory_space<vmem>>, vector<8x128x128xf32>
    %c0_3 = arith.constant 0 : index
    %c0_4 = arith.constant 0 : index
    %4 = vector.load %arg3[%c0_3, %c0_4] : memref<1x128xf32, #tpu.memory_space<vmem>>, vector<1x128xf32>
    %5 = vector.shape_cast %4 : vector<1x128xf32> to vector<1x1x128xf32>
    %c1 = arith.constant 1 : index
    %6 = memref.load %arg6[%c1] : memref<2xf32, #tpu.memory_space<smem>>
    %7 = vector.broadcast %5 : vector<1x1x128xf32> to vector<8x128x128xf32>
    %8 = arith.mulf %3, %7 : vector<8x128x128xf32>
    %cst = arith.constant dense<0.000000e+00> : vector<8x128xf32>
    %9 = vector.multi_reduction <add>, %8, %cst [2] : vector<8x128x128xf32> to vector<8x128xf32>
    %10 = vector.broadcast %6 : f32 to vector<8x128xf32>
    %11 = arith.addf %9, %10 : vector<8x128xf32>
    %c0_5 = arith.constant 0 : index
    %c0_6 = arith.constant 0 : index
    %12 = vector.load %arg9[%c0_5, %c0_6] : memref<8x1xf32, #tpu.memory_space<vmem>>, vector<8x1xf32>
    %cst_7 = arith.constant dense<0xFF800000> : vector<8xf32>
    %13 = vector.multi_reduction <maximumf>, %11, %cst_7 [1] : vector<8x128xf32> to vector<8xf32>
    %14 = vector.shape_cast %13 : vector<8xf32> to vector<8x1xf32>
    %15 = arith.maximumf %12, %14 : vector<8x1xf32>
    %16 = arith.subf %12, %15 : vector<8x1xf32>
    %17 = math.exp %16 : vector<8x1xf32>
    %18 = vector.broadcast %15 : vector<8x1xf32> to vector<8x128xf32>
    %19 = arith.subf %11, %18 : vector<8x128xf32>
    %20 = math.exp %19 : vector<8x128xf32>
    %c0_8 = arith.constant 0 : index
    %c0_9 = arith.constant 0 : index
    %21 = vector.load %arg9[%c0_8, %c0_9] : memref<8x1xf32, #tpu.memory_space<vmem>>, vector<8x1xf32>
    tpu.vector_store %arg9[%c0_8, %c0_9], %15 {strides = array<i32>} : memref<8x1xf32, #tpu.memory_space<vmem>>, vector<8x1xf32>,
    %c0_10 = arith.constant 0 : index
    %c0_11 = arith.constant 0 : index
    %22 = vector.load %arg10[%c0_10, %c0_11] : memref<8x1xf32, #tpu.memory_space<vmem>>, vector<8x1xf32>
    %23 = arith.mulf %17, %22 : vector<8x1xf32>
    %cst_12 = arith.constant dense<0.000000e+00> : vector<8xf32>
    %24 = vector.multi_reduction <add>, %20, %cst_12 [1] : vector<8x128xf32> to vector<8xf32>
    %25 = vector.shape_cast %24 : vector<8xf32> to vector<8x1xf32>
    %26 = arith.addf %23, %25 : vector<8x1xf32>
    %c0_13 = arith.constant 0 : index
    %c0_14 = arith.constant 0 : index
    %27 = vector.load %arg10[%c0_13, %c0_14] : memref<8x1xf32, #tpu.memory_space<vmem>>, vector<8x1xf32>
    tpu.vector_store %arg10[%c0_13, %c0_14], %26 {strides = array<i32>} : memref<8x1xf32, #tpu.memory_space<vmem>>, vector<8x1xf32>,
    %28 = vector.shape_cast %20 : vector<8x128xf32> to vector<8x1x128xf32>
    "tpu.trace_start"() <{level = 10 : i32, message = "bqn,bnc->bqc"}> : () -> ()
    %cst_15 = arith.constant dense<0.000000e+00> : vector<8x1x128xf32>
    %29 = tpu.matmul %28, %3, %cst_15 {dimension_numbers = #tpu.dot_dimension_numbers<[2], [1], [1], [2], [0, 0, 0, 1, 1, 2], [0], [0]>} : vector<8x1x128xf32>, vector<8x128x128xf32>, vector<8x1x128xf32> -> vector<8x1x128xf32>
    "tpu.trace_stop"() : () -> ()
    %30 = vector.shape_cast %29 : vector<8x1x128xf32> to vector<8x128xf32>
    %c0_16 = arith.constant 0 : index
    %c0_17 = arith.constant 0 : index
    %31 = vector.load %arg11[%c0_16, %c0_17] : memref<8x128xf32, #tpu.memory_space<vmem>>, vector<8x128xf32>
    %32 = vector.broadcast %17 : vector<8x1xf32> to vector<8x128xf32>
    %33 = arith.mulf %32, %31 : vector<8x128xf32>
    %34 = arith.addf %33, %30 : vector<8x128xf32>
    %c0_18 = arith.constant 0 : index
    %c0_19 = arith.constant 0 : index
    %35 = vector.load %arg11[%c0_18, %c0_19] : memref<8x128xf32, #tpu.memory_space<vmem>>, vector<8x128xf32>
    tpu.vector_store %arg11[%c0_18, %c0_19], %34 {strides = array<i32>} : memref<8x128xf32, #tpu.memory_space<vmem>>, vector<8x128xf32>,
    %c0_20 = arith.constant 0 : index
    %c0_21 = arith.constant 0 : index
    %36 = vector.load %arg12[%c0_20, %c0_21] : memref<8x128xf32, #tpu.memory_space<vmem>>, vector<8x128xf32>
    %cst_22 = arith.constant dense<0.000000e+00> : vector<8x128xf32>
    %37 = vector.multi_reduction <add>, %3, %cst_22 [1] : vector<8x128x128xf32> to vector<8x128xf32>
    %38 = arith.addf %36, %37 : vector<8x128xf32>
    %c0_23 = arith.constant 0 : index
    %c0_24 = arith.constant 0 : index
    %39 = vector.load %arg12[%c0_23, %c0_24] : memref<8x128xf32, #tpu.memory_space<vmem>>, vector<8x128xf32>
    tpu.vector_store %arg12[%c0_23, %c0_24], %38 {strides = array<i32>} : memref<8x128xf32, #tpu.memory_space<vmem>>, vector<8x128xf32>,
    %c0_25 = arith.constant 0 : index
    %c0_26 = arith.constant 0 : index
    %c0_27 = arith.constant 0 : index
    %40 = vector.load %arg8[%c0_25, %c0_26, %c0_27] : memref<8x2x128xf32, #tpu.memory_space<vmem>>, vector<8x2x128xf32>
    %41 = vector.shape_cast %17 : vector<8x1xf32> to vector<8x1x1xf32>
    %42 = vector.broadcast %41 : vector<8x1x1xf32> to vector<8x2x128xf32>
    %43 = arith.mulf %40, %42 : vector<8x2x128xf32>
    %c0_28 = arith.constant 0 : index
    %c0_29 = arith.constant 0 : index
    %c0_30 = arith.constant 0 : index
    %44 = vector.load %arg8[%c0_28, %c0_29, %c0_30] : memref<8x2x128xf32, #tpu.memory_space<vmem>>, vector<8x2x128xf32>
    tpu.vector_store %arg8[%c0_28, %c0_29, %c0_30], %43 {strides = array<i32>} : memref<8x2x128xf32, #tpu.memory_space<vmem>>, vector<8x2x128xf32>,
    %45 = vector.shape_cast %20 : vector<8x128xf32> to vector<8x1x128xf32>
    %c0_31 = arith.constant 0 : index
    %46 = arith.index_cast %arg1 : i32 to index
    %c0_32 = arith.constant 0 : index
    %47 = vector.load %arg8[%c0_31, %46, %c0_32] : memref<8x2x128xf32, #tpu.memory_space<vmem>>, vector<8x1x128xf32>
    tpu.vector_store %arg8[%c0_31, %46, %c0_32], %45 {strides = array<i32>} : memref<8x2x128xf32, #tpu.memory_space<vmem>>, vector<8x1x128xf32>,
    %c1_i32 = arith.constant 1 : i32
    %48 = arith.cmpi eq, %arg1, %c1_i32 : i32
    %49 = arith.extui %48 : i1 to i32
    %c0_i32_33 = arith.constant 0 : i32
    %50 = arith.cmpi ne, %49, %c0_i32_33 : i32
    scf.if %50 {
      %c0_34 = arith.constant 0 : index
      %c0_35 = arith.constant 0 : index
      %51 = vector.load %arg10[%c0_34, %c0_35] : memref<8x1xf32, #tpu.memory_space<vmem>>, vector<8x1xf32>
      %52 = tpu.reciprocal %51 : vector<8x1xf32> -> vector<8x1xf32>
      %c0_36 = arith.constant 0 : index
      %c0_37 = arith.constant 0 : index
      %c0_38 = arith.constant 0 : index
      %53 = vector.load %arg8[%c0_36, %c0_37, %c0_38] : memref<8x2x128xf32, #tpu.memory_space<vmem>>, vector<8x2x128xf32>
      %54 = vector.shape_cast %52 : vector<8x1xf32> to vector<8x1x1xf32>
      %55 = vector.broadcast %54 : vector<8x1x1xf32> to vector<8x2x128xf32>
      %56 = arith.mulf %53, %55 : vector<8x2x128xf32>
      %c0_39 = arith.constant 0 : index
      %c0_40 = arith.constant 0 : index
      %c0_41 = arith.constant 0 : index
      %57 = vector.load %arg8[%c0_39, %c0_40, %c0_41] : memref<8x2x128xf32, #tpu.memory_space<vmem>>, vector<8x2x128xf32>
      tpu.vector_store %arg8[%c0_39, %c0_40, %c0_41], %56 {strides = array<i32>} : memref<8x2x128xf32, #tpu.memory_space<vmem>>, vector<8x2x128xf32>,
      %c0_42 = arith.constant 0 : index
      %c0_43 = arith.constant 0 : index
      %58 = vector.load %arg11[%c0_42, %c0_43] : memref<8x128xf32, #tpu.memory_space<vmem>>, vector<8x128xf32>
      %59 = vector.broadcast %52 : vector<8x1xf32> to vector<8x128xf32>
      %60 = arith.mulf %58, %59 : vector<8x128xf32>
      %c0_44 = arith.constant 0 : index
      %c0_45 = arith.constant 0 : index
      %61 = vector.load %arg4[%c0_44, %c0_45] : memref<128x128xf32, #tpu.memory_space<vmem>>, vector<128x128xf32>
      %cst_46 = arith.constant dense<0.000000e+00> : vector<8x128xf32>
      %62 = tpu.matmul %60, %61, %cst_46 {dimension_numbers = #tpu.dot_dimension_numbers<[1], [1], [0], [0], [0, 0, 1, 0], [], []>} : vector<8x128xf32>, vector<128x128xf32>, vector<8x128xf32> -> vector<8x128xf32>
      %c0_47 = arith.constant 0 : index
      %c0_48 = arith.constant 0 : index
      %63 = vector.load %arg5[%c0_47, %c0_48] : memref<1x128xf32, #tpu.memory_space<vmem>>, vector<1x128xf32>
      %64 = vector.broadcast %63 : vector<1x128xf32> to vector<8x128xf32>
      %65 = arith.addf %62, %64 : vector<8x128xf32>
      %c0_49 = arith.constant 0 : index
      %c0_50 = arith.constant 0 : index
      %66 = vector.load %arg12[%c0_49, %c0_50] : memref<8x128xf32, #tpu.memory_space<vmem>>, vector<8x128xf32>
      %cst_51 = arith.constant 3.906250e-03 : f32
      %67 = vector.broadcast %cst_51 : f32 to vector<8x128xf32>
      %68 = arith.mulf %66, %67 : vector<8x128xf32>
      %c0_52 = arith.constant 0 : index
      %69 = memref.load %arg6[%c0_52] : memref<2xf32, #tpu.memory_space<smem>>
      %70 = arith.mulf %65, %65 : vector<8x128xf32>
      %cst_53 = arith.constant dense<0.000000e+00> : vector<8xf32>
      %71 = vector.multi_reduction <add>, %70, %cst_53 [1] : vector<8x128xf32> to vector<8xf32>
      %72 = vector.shape_cast %71 : vector<8xf32> to vector<8x1xf32>
      %cst_54 = arith.constant 1.000000e-24 : f32
      %73 = vector.broadcast %cst_54 : f32 to vector<8x1xf32>
      %74 = arith.maximumf %72, %73 : vector<8x1xf32>
      %75 = math.rsqrt %74 : vector<8x1xf32>
      %76 = vector.broadcast %75 : vector<8x1xf32> to vector<8x128xf32>
      %77 = arith.mulf %65, %76 : vector<8x128xf32>
      %78 = vector.broadcast %69 : f32 to vector<8x128xf32>
      %79 = arith.mulf %78, %77 : vector<8x128xf32>
      %cst_55 = arith.constant 1.000000e+00 : f32
      %80 = arith.subf %cst_55, %69 : f32
      %81 = arith.mulf %68, %68 : vector<8x128xf32>
      %cst_56 = arith.constant dense<0.000000e+00> : vector<8xf32>
      %82 = vector.multi_reduction <add>, %81, %cst_56 [1] : vector<8x128xf32> to vector<8xf32>
      %83 = vector.shape_cast %82 : vector<8xf32> to vector<8x1xf32>
      %cst_57 = arith.constant 1.000000e-24 : f32
      %84 = vector.broadcast %cst_57 : f32 to vector<8x1xf32>
      %85 = arith.maximumf %83, %84 : vector<8x1xf32>
      %86 = math.rsqrt %85 : vector<8x1xf32>
      %87 = vector.broadcast %86 : vector<8x1xf32> to vector<8x128xf32>
      %88 = arith.mulf %68, %87 : vector<8x128xf32>
      %89 = vector.broadcast %80 : f32 to vector<8x128xf32>
      %90 = arith.mulf %89, %88 : vector<8x128xf32>
      %91 = arith.addf %79, %90 : vector<8x128xf32>
      %92 = arith.mulf %91, %91 : vector<8x128xf32>
      %cst_58 = arith.constant dense<0.000000e+00> : vector<8xf32>
      %93 = vector.multi_reduction <add>, %92, %cst_58 [1] : vector<8x128xf32> to vector<8xf32>
      %94 = vector.shape_cast %93 : vector<8xf32> to vector<8x1xf32>
      %cst_59 = arith.constant 1.000000e-24 : f32
      %95 = vector.broadcast %cst_59 : f32 to vector<8x1xf32>
      %96 = arith.maximumf %94, %95 : vector<8x1xf32>
      %97 = math.rsqrt %96 : vector<8x1xf32>
      %98 = vector.broadcast %97 : vector<8x1xf32> to vector<8x128xf32>
      %99 = arith.mulf %91, %98 : vector<8x128xf32>
      %c0_60 = arith.constant 0 : index
      %c0_61 = arith.constant 0 : index
      %100 = vector.load %arg7[%c0_60, %c0_61] : memref<8x128xf32, #tpu.memory_space<vmem>>, vector<8x128xf32>
      tpu.vector_store %arg7[%c0_60, %c0_61], %99 {strides = array<i32>} : memref<8x128xf32, #tpu.memory_space<vmem>>, vector<8x128xf32>,
    } else {
    }
    return
  }
  func.func @transform_0(%arg0: i32, %arg1: i32) -> (i32, i32, i32) {
    %c0_i32 = arith.constant 0 : i32
    %c0_i32_0 = arith.constant 0 : i32
    return %arg0, %arg1, %c0_i32 : i32, i32, i32
  }
  func.func @transform_1(%arg0: i32, %arg1: i32) -> (i32, i32) {
    %c0_i32 = arith.constant 0 : i32
    %c0_i32_0 = arith.constant 0 : i32
    %c0_i32_1 = arith.constant 0 : i32
    return %c0_i32, %c0_i32_0 : i32, i32
  }
  func.func @transform_2(%arg0: i32, %arg1: i32) -> (i32, i32) {
    %c0_i32 = arith.constant 0 : i32
    %c0_i32_0 = arith.constant 0 : i32
    %c0_i32_1 = arith.constant 0 : i32
    return %c0_i32, %c0_i32_0 : i32, i32
  }
  func.func @transform_3(%arg0: i32, %arg1: i32) -> (i32, i32) {
    %c0_i32 = arith.constant 0 : i32
    %c0_i32_0 = arith.constant 0 : i32
    %c0_i32_1 = arith.constant 0 : i32
    return %c0_i32, %c0_i32_0 : i32, i32
  }
  func.func @transform_4(%arg0: i32, %arg1: i32) -> i32 {
    %c0_i32 = arith.constant 0 : i32
    %c0_i32_0 = arith.constant 0 : i32
    return %c0_i32 : i32
  }
  func.func @transform_5(%arg0: i32, %arg1: i32) -> (i32, i32) {
    %c0_i32 = arith.constant 0 : i32
    %c0_i32_0 = arith.constant 0 : i32
    return %arg0, %c0_i32 : i32, i32
  }
  func.func @transform_6(%arg0: i32, %arg1: i32) -> (i32, i32, i32) {
    %c0_i32 = arith.constant 0 : i32
    %c0_i32_0 = arith.constant 0 : i32
    %c0_i32_1 = arith.constant 0 : i32
    return %arg0, %c0_i32, %c0_i32_0 : i32, i32, i32
  }
}

</mosaic_0001>

<llo_original>
// kernel: tpu_custom_call.1
$region0: #{tpu_custom_call.1}
  #allocation0 [shape = 'u32[]', space=smem, size = 0x4, offset = 0x4, fixed_abs, tag = 'smem constant byte address 0x4 - core index']
  #allocation1 [shape = 'u32[72,128]{1,0:T(1,128)}', space=vmem, size = 0x9000, scoped, tag = 'internal scratch']
  #allocation2 [shape = 'f32[8,1]{1,0:T(8,128)}', space=vmem, size = 0x1000, scoped, tag = 'scratch operand']
  #allocation3 [shape = 'f32[8,1]{1,0:T(8,128)}', space=vmem, size = 0x1000, scoped, tag = 'scratch operand']
  #allocation4 [shape = 'f32[8,128]{1,0:T(8,128)}', space=vmem, size = 0x1000, scoped, tag = 'scratch operand']
  #allocation5 [shape = 'f32[8,128]{1,0:T(8,128)}', space=vmem, size = 0x1000, scoped, tag = 'scratch operand']
  #allocation19 [shape = 's32[]', space=sflag, size = 0x4, offset = 0, fixed_abs, tag = 'sflag constant byte address 0x0 - dummy sync flag']
  %s0 = inlined_call_operand.hbm [shape: f32[16,256,128], index: 0, kind: input, shape index: {}]
  %s1 = inlined_call_operand.hbm [shape: f32[1,128], index: 1, kind: input, shape index: {}]
  %s2 = inlined_call_operand.hbm [shape: f32[128,128], index: 2, kind: input, shape index: {}]
  %s3 = inlined_call_operand.hbm [shape: f32[1,128], index: 3, kind: input, shape index: {}]
  %s4 = inlined_call_operand.hbm [shape: f32[2], index: 4, kind: input, shape index: {}]
  %s5 = inlined_call_operand.hbm [shape: f32[16,128], index: 5, kind: output, shape index: {0}]
  %s6 = inlined_call_operand.hbm [shape: f32[16,2,128], index: 6, kind: output, shape index: {1}]
  %7 = xla_tuple %s5, %s6
  %s8 = sld [smem:[#allocation0]]
  $region89: #{tpu_custom_call.1} parent=0
    _
  %s10 = ssub.s32 1, %s8
  %s11 = scalar_select 0, %s10, %s8
  $region1: #{tpu_custom_call.1} parent=0
    #allocation6 [shape = 'u8[1048576]{0}', space=vmem, size = 0x100000, scoped, tag = 'input window, operand 0']
    #allocation7 [shape = 's32[2]{0}', space=sflag, size = 0x8, scoped, tag = 'scoped memory for tpu_custom_call.1']
    #allocation8 [shape = 's32[2]{0}', space=sflag, size = 0x8, scoped, tag = 'scoped memory for tpu_custom_call.1']
    #allocation9 [shape = 's32[2]{0}', space=sflag, size = 0x8, scoped, tag = 'scoped memory for tpu_custom_call.1']
    #allocation10 [shape = 'u8[512]{0}', space=vmem, size = 0x400, scoped, tag = 'input window, operand 1, single buffered']
    #allocation11 [shape = 's32[1]{0}', space=sflag, size = 0x4, scoped, tag = 'scoped memory for tpu_custom_call.1']
    #allocation12 [shape = 'u8[65536]{0}', space=vmem, size = 0x10000, scoped, tag = 'input window, operand 2, single buffered']
    #allocation13 [shape = 'u8[512]{0}', space=vmem, size = 0x400, scoped, tag = 'input window, operand 3, single buffered']
    #allocation14 [shape = 's32[1]{0}', space=sflag, size = 0x4, scoped, tag = 'scoped memory for tpu_custom_call.1']
    #allocation15 [shape = 'u8[512]{0}', space=smem, size = 0x200, scoped, tag = 'input window, operand 4, single buffered']
    #allocation16 [shape = 'u8[8192]{0}', space=vmem, size = 0x2000, scoped, tag = 'output window, operand 0']
    #allocation17 [shape = 'u8[16384]{0}', space=vmem, size = 0x4000, scoped, tag = 'output window, operand 1']
    #allocation18 [shape = 's32[2]{0}', space=sflag, size = 0x8, scoped, tag = 'scoped memory for tpu_custom_call.1']
    %12 = vsyncpa [#allocation7], 0
    %s13 = scalar_lea.sflag [#allocation7], 1
    %14 = vsyncpa %s13, 0
    %15 = vsyncpa [#allocation11], 0
    %16 = vsyncpa [#allocation14], 0
    %17 = vsyncpa [#allocation9], 0
    %18 = vsyncpa [#allocation8], 0
    %s19 = scalar_lea.sflag [#allocation8], 1
    %20 = vsyncpa %s19, 0
    %21 = vsyncpa [#allocation18], 0
    %s22 = scalar_lea.sflag [#allocation18], 1
    %23 = vsyncpa %s22, 0
    loop: start=0, step=1, limit=6
    $region2: #{tpu_custom_call.1} parent=1 // loop_pre_header
      _
    $region3: #{tpu_custom_call.1} parent=1 // loop_header
      %s25 = sphi 0, %s29
      %p26 = scmp.ge.s32.totalorder %s25, 6
      %s32 = sphi 0, %s44
      %s33 = sphi 0, %s40
      %s34 = sphi 0, %s32
      %s35 = sphi 0, %s33
      %s36 = sphi 0, %s34
      %s37 = sphi 0, %s35
      %s49 = sphi 0, %s51
      %s52 = sphi 0, %s49
      %s53 = sphi 0, %s52
      %s69 = sphi 0, %s53
      %s73 = sphi 0, %s73
      %s75 = sphi 0, %s73
      %s76 = sphi 0, %s75
      %s90 = sphi 0, %s76
      %s94 = sphi 0, %s94
      %s96 = sphi 0, %s94
      %s97 = sphi 0, %s96
      %s111 = sphi 0, %s97
      %s115 = sphi 0, %s115
      %s117 = sphi 0, %s115
      %s118 = sphi 0, %s117
      %s132 = sphi 0, %s118
      %s136 = sphi 0, %s136
      %s138 = sphi 0, %s136
      %s139 = sphi 0, %s138
      %s153 = sphi 0, %s139
      %s159 = sphi 0, %s161
      %s162 = sphi 0, %s159
      %s163 = sphi 0, %s162
      %s179 = sphi 0, %s163
      %s185 = sphi 0, %s187
      %s188 = sphi 0, %s185
      %s189 = sphi 0, %s188
      %s205 = sphi 0, %s189
    $region4: #{tpu_custom_call.1} parent=1 // loop_header_branch
      %28 = sbr.rel (%p26) target = $region8
    $region5: #{tpu_custom_call.1} parent=1 // loop_body
      %s30 = ssub.s32 %s25, 1
      %s31 = ssub.s32 %s25, 2
      %s38 = sadd.s32 1, %s33
      %p39 = scmp.ge.s32.totalorder %s38, 2
      %s40 = scalar_select %p39, 0, %s38
      %s41 = sadd.s32 1, %s32
      %s42 = scalar_select %p39, %s41, %s32
      %p43 = scmp.ge.s32.totalorder %s42, 2
      %s44 = scalar_select %p43, 0, %s42
      %s45 = ssub.s32 %s32, %s44
      %s46 = ssub.s32 %s33, %s40
      %s47 = sor.u32 %s45, %s46
      %p48 = scmp.eq.s32.totalorder %s47, 0
      %s50 = sadd.s32 %s49, 1
      %s51 = scalar_select %p48, %s49, %s50
      %p54 = pneg %p48
      %p55 = scmp.eq.s32.totalorder %s25, 3
      %p56 = por %p54, %p55
      %p57 = scmp.ne.s32.totalorder %s49, %s52
      %p58 = scmp.eq.s32.totalorder %s25, 0
      %p59 = por %p57, %p58
      %p60 = scmp.ne.s32.totalorder %s49, %s52
      %p61 = scmp.eq.s32.totalorder %s30, 3
      %p62 = por %p60, %p61
      %p63 = scmp.ne.s32.totalorder %s52, %s53
      %p64 = scmp.eq.s32.totalorder %s30, 0
      %p65 = por %p63, %p64
      %p66 = scmp.ne.s32.totalorder %s52, %s53
      %p67 = scmp.eq.s32.totalorder %s31, 3
      %p68 = por %p66, %p67
      %p70 = scmp.ne.s32.totalorder %s53, %s69
      %p71 = scmp.eq.s32.totalorder %s31, 0
      %p72 = por %p70, %p71
      %s74 = sadd.s32 %s73, 1
      %p77 = scmp.eq.s32.totalorder %s25, 3
      %p78 = scmp.ne.s32.totalorder %s73, %s75
      %p79 = scmp.eq.s32.totalorder %s25, 0
      %p80 = por %p78, %p79
      %p81 = scmp.ne.s32.totalorder %s73, %s75
      %p82 = scmp.eq.s32.totalorder %s30, 3
      %p83 = por %p81, %p82
      %p84 = scmp.ne.s32.totalorder %s75, %s76
      %p85 = scmp.eq.s32.totalorder %s30, 0
      %p86 = por %p84, %p85
      %p87 = scmp.ne.s32.totalorder %s75, %s76
      %p88 = scmp.eq.s32.totalorder %s31, 3
      %p89 = por %p87, %p88
      %p91 = scmp.ne.s32.totalorder %s76, %s90
      %p92 = scmp.eq.s32.totalorder %s31, 0
      %p93 = por %p91, %p92
      %s95 = sadd.s32 %s94, 1
      %p98 = scmp.eq.s32.totalorder %s25, 3
      %p99 = scmp.ne.s32.totalorder %s94, %s96
      %p100 = scmp.eq.s32.totalorder %s25, 0
      %p101 = por %p99, %p100
      %p102 = scmp.ne.s32.totalorder %s94, %s96
      %p103 = scmp.eq.s32.totalorder %s30, 3
      %p104 = por %p102, %p103
      %p105 = scmp.ne.s32.totalorder %s96, %s97
      %p106 = scmp.eq.s32.totalorder %s30, 0
      %p107 = por %p105, %p106
      %p108 = scmp.ne.s32.totalorder %s96, %s97
      %p109 = scmp.eq.s32.totalorder %s31, 3
      %p110 = por %p108, %p109
      %p112 = scmp.ne.s32.totalorder %s97, %s111
      %p113 = scmp.eq.s32.totalorder %s31, 0
      %p114 = por %p112, %p113
      %s116 = sadd.s32 %s115, 1
      %p119 = scmp.eq.s32.totalorder %s25, 3
      %p120 = scmp.ne.s32.totalorder %s115, %s117
      %p121 = scmp.eq.s32.totalorder %s25, 0
      %p122 = por %p120, %p121
      %p123 = scmp.ne.s32.totalorder %s115, %s117
      %p124 = scmp.eq.s32.totalorder %s30, 3
      %p125 = por %p123, %p124
      %p126 = scmp.ne.s32.totalorder %s117, %s118
      %p127 = scmp.eq.s32.totalorder %s30, 0
      %p128 = por %p126, %p127
      %p129 = scmp.ne.s32.totalorder %s117, %s118
      %p130 = scmp.eq.s32.totalorder %s31, 3
      %p131 = por %p129, %p130
      %p133 = scmp.ne.s32.totalorder %s118, %s132
      %p134 = scmp.eq.s32.totalorder %s31, 0
      %p135 = por %p133, %p134
      %s137 = sadd.s32 %s136, 1
      %p140 = scmp.eq.s32.totalorder %s25, 3
      %p141 = scmp.ne.s32.totalorder %s136, %s138
      %p142 = scmp.eq.s32.totalorder %s25, 0
      %p143 = por %p141, %p142
      %p144 = scmp.ne.s32.totalorder %s136, %s138
      %p145 = scmp.eq.s32.totalorder %s30, 3
      %p146 = por %p144, %p145
      %p147 = scmp.ne.s32.totalorder %s138, %s139
      %p148 = scmp.eq.s32.totalorder %s30, 0
      %p149 = por %p147, %p148
      %p150 = scmp.ne.s32.totalorder %s138, %s139
      %p151 = scmp.eq.s32.totalorder %s31, 3
      %p152 = por %p150, %p151
      %p154 = scmp.ne.s32.totalorder %s139, %s153
      %p155 = scmp.eq.s32.totalorder %s31, 0
      %p156 = por %p154, %p155
      %s157 = ssub.s32 %s32, %s44
      %p158 = scmp.eq.s32.totalorder %s157, 0
      %s160 = sadd.s32 %s159, 1
      %s161 = scalar_select %p158, %s159, %s160
      %p164 = pneg %p158
      %p165 = scmp.eq.s32.totalorder %s25, 3
      %p166 = por %p164, %p165
      %p167 = scmp.ne.s32.totalorder %s159, %s162
      %p168 = scmp.eq.s32.totalorder %s25, 0
      %p169 = por %p167, %p168
      %p170 = scmp.ne.s32.totalorder %s159, %s162
      %p171 = scmp.eq.s32.totalorder %s30, 3
      %p172 = por %p170, %p171
      %p173 = scmp.ne.s32.totalorder %s162, %s163
      %p174 = scmp.eq.s32.totalorder %s30, 0
      %p175 = por %p173, %p174
      %p176 = scmp.ne.s32.totalorder %s162, %s163
      %p177 = scmp.eq.s32.totalorder %s31, 3
      %p178 = por %p176, %p177
      %p180 = scmp.ne.s32.totalorder %s163, %s179
      %p181 = scmp.eq.s32.totalorder %s31, 0
      %p182 = por %p180, %p181
      %s183 = ssub.s32 %s32, %s44
      %p184 = scmp.eq.s32.totalorder %s183, 0
      %s186 = sadd.s32 %s185, 1
      %s187 = scalar_select %p184, %s185, %s186
      %p190 = pneg %p184
      %p191 = scmp.eq.s32.totalorder %s25, 3
      %p192 = por %p190, %p191
      %p193 = scmp.ne.s32.totalorder %s185, %s188
      %p194 = scmp.eq.s32.totalorder %s25, 0
      %p195 = por %p193, %p194
      %p196 = scmp.ne.s32.totalorder %s185, %s188
      %p197 = scmp.eq.s32.totalorder %s30, 3
      %p198 = por %p196, %p197
      %p199 = scmp.ne.s32.totalorder %s188, %s189
      %p200 = scmp.eq.s32.totalorder %s30, 0
      %p201 = por %p199, %p200
      %p202 = scmp.ne.s32.totalorder %s188, %s189
      %p203 = scmp.eq.s32.totalorder %s31, 3
      %p204 = por %p202, %p203
      %p206 = scmp.ne.s32.totalorder %s189, %s205
      %p207 = scmp.eq.s32.totalorder %s31, 0
      %p208 = por %p206, %p207
      %p209 = scmp.le.s32.totalorder 1, %s25
      %p210 = scmp.lt.s32.totalorder %s25, 5
      %p211 = pnand %p209, %p210
      %p212 = pneg %p211
      // Predicated region
      $region9: #{tpu_custom_call.1} parent=5 // pred_check
        _
      $region10: #{tpu_custom_call.1} parent=5 // pred_check_branch
        %214 = sbr.rel (%p211) target = $region12
      $region11: #{tpu_custom_call.1} parent=5 // pred_region
        %s215 = ssub.s32 %s25, 1
        // Predicated region
        $region13: #{tpu_custom_call.1} parent=11 // pred_check
          %p216 = pneg %p86
        $region14: #{tpu_custom_call.1} parent=11 // pred_check_branch
          %218 = sbr.rel (%p216) target = $region16
        $region15: #{tpu_custom_call.1} parent=11 // pred_region
          %220 = vsyncadd [#allocation11], 0
          %s222 = sshll.u32 %s1, 4
          %s223 = int_to_ptr.hbm [resolvable:$true] %s222
          %s224 = sshll.u32 [#allocation10], 4
          %s225 = int_to_ptr.vmem [resolvable:$true] %s224
          %227 = dma.hbm_to_vmem [thread:$0]  %s223, 16, %s225, [#allocation11]
        $region16: #{tpu_custom_call.1} parent=11 // pred_fallthru
          _
        // Predicated region
        $region17: #{tpu_custom_call.1} parent=11 // pred_check
          %p228 = pneg %p107
        $region18: #{tpu_custom_call.1} parent=11 // pred_check_branch
          %230 = sbr.rel (%p228) target = $region20
        $region19: #{tpu_custom_call.1} parent=11 // pred_region
          %232 = vsyncadd [#allocation11], 0
          %s233 = sshll.u32 %s2, 4
          %s234 = int_to_ptr.hbm [resolvable:$true] %s233
          %s235 = sshll.u32 [#allocation12], 4
          %s236 = int_to_ptr.vmem [resolvable:$true] %s235
          %241 = dma.hbm_to_vmem [thread:$0]  %s234, 2048, %s236, [#allocation11], 128, 128, 8
        $region20: #{tpu_custom_call.1} parent=11 // pred_fallthru
          _
        // Predicated region
        $region21: #{tpu_custom_call.1} parent=11 // pred_check
          %p242 = pneg %p128
        $region22: #{tpu_custom_call.1} parent=11 // pred_check_branch
          %244 = sbr.rel (%p242) target = $region24
        $region23: #{tpu_custom_call.1} parent=11 // pred_region
          %246 = vsyncadd [#allocation14], 0
          %s248 = sshll.u32 %s3, 4
          %s249 = int_to_ptr.hbm [resolvable:$true] %s248
          %s250 = sshll.u32 [#allocation13], 4
          %s251 = int_to_ptr.vmem [resolvable:$true] %s250
          %253 = dma.hbm_to_vmem [thread:$0]  %s249, 16, %s251, [#allocation14]
        $region24: #{tpu_custom_call.1} parent=11 // pred_fallthru
          _
        // Predicated region
        $region25: #{tpu_custom_call.1} parent=11 // pred_check
          %p254 = pneg %p149
        $region26: #{tpu_custom_call.1} parent=11 // pred_check_branch
          %256 = sbr.rel (%p254) target = $region28
        $region27: #{tpu_custom_call.1} parent=11 // pred_region
          %258 = vsyncadd [#allocation9], 0
          %s260 = sshll.u32 %s4, 4
          %s261 = int_to_ptr.hbm [resolvable:$true] %s260
          %263 = dma.hbm_to_smem %s261, 16, [#allocation15], [#allocation9]
        $region28: #{tpu_custom_call.1} parent=11 // pred_fallthru
          _
      $region12: #{tpu_custom_call.1} parent=5 // pred_fallthru
        _
      %p264 = scmp.lt.s32.totalorder %s25, 4
      // Predicated region
      $region29: #{tpu_custom_call.1} parent=5 // pred_check
        %p265 = pneg %p264
      $region30: #{tpu_custom_call.1} parent=5 // pred_check_branch
        %267 = sbr.rel (%p265) target = $region32
      $region31: #{tpu_custom_call.1} parent=5 // pred_region
        // Predicated region
        $region33: #{tpu_custom_call.1} parent=31 // pred_check
          %p268 = pneg %p59
        $region34: #{tpu_custom_call.1} parent=31 // pred_check_branch
          %270 = sbr.rel (%p268) target = $region36
        $region35: #{tpu_custom_call.1} parent=31 // pred_region
          #allocation20 [shape = 'u32[6]{0}', space=smem, size = 0x18, scoped, tag = 'DMA stride descriptor']
          %s271 = sand.u32 %s49, 1
          %s272 = scalar_lea.sflag [#allocation7], %s271
          %s273 = sand.u32 %s49, 1
          %s274 = smul.addr %s273, 1024
          %s275 = scalar_lea.vmem [#allocation6], %s274
          %s276 = smul.u32 8, %s32
          %s277 = smul.u32 16, %s33
          %279 = vsyncadd %s272, 0
          %s280 = smul.addr %s276, 32
          %s281 = sadd.s32 %s277, %s280
          %s282 = smul.addr %s281, 8
          %s283 = scalar_lea.hbm %s0, %s282
          %s285 = sshll.u32 1, 14
          %s286 = sxor.u32 4294967295, %s285
          %s288 = sld [smem:[#allocation0]]
          %s289 = sadd.s32 2, %s288
          %s291 = sshll.u32 7, 26
          %s292 = sxor.u32 4294967295, %s291
          %s293 = sand.u32 0, %s292
          %s294 = sshll.u32 %s289, 26
          %s295 = sor.u32 %s293, %s294
          %s296 = sshll.u32 %s283, 4
          %s297 = int_to_ptr.hbm [resolvable:$true] %s296
          %s298 = sshll.u32 %s275, 4
          %s299 = int_to_ptr.vmem [resolvable:$true] %s298
          %305 = sst [smem:[#allocation20]] 4096
          %s306 = scalar_lea.smem [#allocation20], 1
          %307 = sst [smem:[%s306]] 2048
          %s308 = scalar_lea.smem [#allocation20], 2
          %309 = sst [smem:[%s308]] 16
          %s310 = scalar_lea.smem [#allocation20], 3
          %311 = sst [smem:[%s310]] 128
          %s312 = scalar_lea.smem [#allocation20], 4
          %313 = sst [smem:[%s312]] 128
          %s314 = scalar_lea.smem [#allocation20], 5
          %315 = sst [smem:[%s314]] 8
          %317 = dma.general %s297, 16384, %s299, %s272, [#allocation19], [#allocation20], %s295, 0
        $region36: #{tpu_custom_call.1} parent=31 // pred_fallthru
          _
      $region32: #{tpu_custom_call.1} parent=5 // pred_fallthru
        _
      %p318 = scmp.le.s32.totalorder 1, %s25
      %p319 = scmp.lt.s32.totalorder %s25, 5
      %p320 = pnand %p318, %p319
      %p321 = pneg %p320
      // Predicated region
      $region37: #{tpu_custom_call.1} parent=5 // pred_check
        _
      $region38: #{tpu_custom_call.1} parent=5 // pred_check_branch
        %323 = sbr.rel (%p320) target = $region40
      $region39: #{tpu_custom_call.1} parent=5 // pred_region
        %s324 = ssub.s32 %s25, 1
        %s325 = sand.u32 %s52, 1
        %s326 = scalar_lea.sflag [#allocation7], %s325
        %s327 = sand.u32 %s52, 1
        %s328 = smul.addr %s327, 1024
        %s329 = scalar_lea.vmem [#allocation6], %s328
        // Predicated region
        $region41: #{tpu_custom_call.1} parent=39 // pred_check
          %p330 = pneg %p65
        $region42: #{tpu_custom_call.1} parent=39 // pred_check_branch
          %332 = sbr.rel (%p330) target = $region44
        $region43: #{tpu_custom_call.1} parent=39 // pred_region
          %334 = dma.done %s326, 16384
        $region44: #{tpu_custom_call.1} parent=39 // pred_fallthru
          _
        // Predicated region
        $region45: #{tpu_custom_call.1} parent=39 // pred_check
          %p335 = pneg %p86
        $region46: #{tpu_custom_call.1} parent=39 // pred_check_branch
          %337 = sbr.rel (%p335) target = $region48
        $region47: #{tpu_custom_call.1} parent=39 // pred_region
          %339 = dma.done [#allocation11], 16
        $region48: #{tpu_custom_call.1} parent=39 // pred_fallthru
          _
        // Predicated region
        $region49: #{tpu_custom_call.1} parent=39 // pred_check
          %p340 = pneg %p107
        $region50: #{tpu_custom_call.1} parent=39 // pred_check_branch
          %342 = sbr.rel (%p340) target = $region52
        $region51: #{tpu_custom_call.1} parent=39 // pred_region
          %344 = dma.done [#allocation11], 2048
        $region52: #{tpu_custom_call.1} parent=39 // pred_fallthru
          _
        // Predicated region
        $region53: #{tpu_custom_call.1} parent=39 // pred_check
          %p345 = pneg %p128
        $region54: #{tpu_custom_call.1} parent=39 // pred_check_branch
          %347 = sbr.rel (%p345) target = $region56
        $region55: #{tpu_custom_call.1} parent=39 // pred_region
          %349 = dma.done [#allocation14], 16
        $region56: #{tpu_custom_call.1} parent=39 // pred_fallthru
          _
        // Predicated region
        $region57: #{tpu_custom_call.1} parent=39 // pred_check
          %p350 = pneg %p149
        $region58: #{tpu_custom_call.1} parent=39 // pred_check_branch
          %352 = sbr.rel (%p350) target = $region60
        $region59: #{tpu_custom_call.1} parent=39 // pred_region
          %354 = dma.done [#allocation9], 16
        $region60: #{tpu_custom_call.1} parent=39 // pred_fallthru
          _
        %355 = sfence
        %s356 = sand.u32 %s52, 1
        %s357 = scalar_lea.sflag [#allocation7], %s356
        %s358 = sand.u32 %s52, 1
        %s359 = smul.addr %s358, 1024
        %s360 = scalar_lea.vmem [#allocation6], %s359
        %p361 = pneg %p65
        %p362 = pneg %p62
        %p363 = pneg %p86
        %p364 = pneg %p83
        %p365 = pneg %p107
        %p366 = pneg %p104
        %p367 = pneg %p128
        %p368 = pneg %p125
        %p369 = pneg %p149
        %p370 = pneg %p146
        %p371 = pneg %p175
        %p372 = pneg %p172
        %s373 = sand.u32 %s162, 1
        %s374 = scalar_lea.sflag [#allocation8], %s373
        %s375 = sand.u32 %s162, 1
        %s376 = smul.addr %s375, 8
        %s377 = scalar_lea.vmem [#allocation16], %s376
        %p378 = pneg %p201
        %p379 = pneg %p198
        %s380 = sand.u32 %s188, 1
        %s381 = scalar_lea.sflag [#allocation18], %s380
        %s382 = sand.u32 %s188, 1
        %s383 = smul.addr %s382, 16
        %s384 = scalar_lea.vmem [#allocation17], %s383
        %s385 = smul.u32 8, %s34
        %s386 = smul.u32 16, %s35
        %s387 = smul.u32 8, %s34
        %p388 = scmp.eq.s32.totalorder %s35, 0
        // Predicated region
        $region61: #{tpu_custom_call.1} parent=39 // pred_check
          %p389 = pneg %p388
        $region62: #{tpu_custom_call.1} parent=39 // pred_check_branch
          %391 = sbr.rel (%p389) target = $region64
        $region63: #{tpu_custom_call.1} parent=39 // pred_region
          %vm392 = vcmask 7168
          %393 = vst.msk [vmem:[#allocation2] sm:$0xff] %vm392, -inf
          %394 = vst.msk [vmem:[#allocation3] sm:$0xff] %vm392, 0.0
          %395 = vst [vmem:[#allocation4] sm:$0xff] 0.0
          %396 = vst [vmem:[#allocation5] sm:$0xff] 0.0
          %397 = vst [vmem:[%s384] sm:$0x3] 0.0
          %398 = vst [vmem:[%s384 + $0x2] sm:$0x3] 0.0
          %399 = vst [vmem:[%s384 + $0x4] sm:$0x3] 0.0
          %400 = vst [vmem:[%s384 + $0x6] sm:$0x3] 0.0
          %401 = vst [vmem:[%s384 + $0x8] sm:$0x3] 0.0
          %402 = vst [vmem:[%s384 + $0xa] sm:$0x3] 0.0
          %403 = vst [vmem:[%s384 + $0xc] sm:$0x3] 0.0
          %404 = vst [vmem:[%s384 + $0xe] sm:$0x3] 0.0
        $region64: #{tpu_custom_call.1} parent=39 // pred_fallthru
          _
        %v405 = vld [vmem:[%s329] sm:$0xff]
        %v406 = vld [vmem:[%s329 + $0x8] sm:$0xff]
        %v407 = vld [vmem:[%s329 + $0x10] sm:$0xff]
        %v408 = vld [vmem:[%s329 + $0x18] sm:$0xff]
        %v409 = vld [vmem:[%s329 + $0x20] sm:$0xff]
        %v410 = vld [vmem:[%s329 + $0x28] sm:$0xff]
        %v411 = vld [vmem:[%s329 + $0x30] sm:$0xff]
        %v412 = vld [vmem:[%s329 + $0x38] sm:$0xff]
        %v413 = vld [vmem:[%s329 + $0x40] sm:$0xff]
        %v414 = vld [vmem:[%s329 + $0x48] sm:$0xff]
        %v415 = vld [vmem:[%s329 + $0x50] sm:$0xff]
        %v416 = vld [vmem:[%s329 + $0x58] sm:$0xff]
        %v417 = vld [vmem:[%s329 + $0x60] sm:$0xff]
        %v418 = vld [vmem:[%s329 + $0x68] sm:$0xff]
        %v419 = vld [vmem:[%s329 + $0x70] sm:$0xff]
        %v420 = vld [vmem:[%s329 + $0x78] sm:$0xff]
        %v421 = vld [vmem:[%s329 + $0x80] sm:$0xff]
        %v422 = vld [vmem:[%s329 + $0x88] sm:$0xff]
        %v423 = vld [vmem:[%s329 + $0x90] sm:$0xff]
        %v424 = vld [vmem:[%s329 + $0x98] sm:$0xff]
        %v425 = vld [vmem:[%s329 + $0xa0] sm:$0xff]
        %v426 = vld [vmem:[%s329 + $0xa8] sm:$0xff]
        %v427 = vld [vmem:[%s329 + $0xb0] sm:$0xff]
        %v428 = vld [vmem:[%s329 + $0xb8] sm:$0xff]
        %v429 = vld [vmem:[%s329 + $0xc0] sm:$0xff]
        %v430 = vld [vmem:[%s329 + $0xc8] sm:$0xff]
        %v431 = vld [vmem:[%s329 + $0xd0] sm:$0xff]
        %v432 = vld [vmem:[%s329 + $0xd8] sm:$0xff]
        %v433 = vld [vmem:[%s329 + $0xe0] sm:$0xff]
        %v434 = vld [vmem:[%s329 + $0xe8] sm:$0xff]
        %v435 = vld [vmem:[%s329 + $0xf0] sm:$0xff]
        %v436 = vld [vmem:[%s329 + $0xf8] sm:$0xff]
        %v437 = vld [vmem:[%s329 + $0x100] sm:$0xff]
        %v438 = vld [vmem:[%s329 + $0x108] sm:$0xff]
        %v439 = vld [vmem:[%s329 + $0x110] sm:$0xff]
        %v440 = vld [vmem:[%s329 + $0x118] sm:$0xff]
        %v441 = vld [vmem:[%s329 + $0x120] sm:$0xff]
        %v442 = vld [vmem:[%s329 + $0x128] sm:$0xff]
        %v443 = vld [vmem:[%s329 + $0x130] sm:$0xff]
        %v444 = vld [vmem:[%s329 + $0x138] sm:$0xff]
        %v445 = vld [vmem:[%s329 + $0x140] sm:$0xff]
        %v446 = vld [vmem:[%s329 + $0x148] sm:$0xff]
        %v447 = vld [vmem:[%s329 + $0x150] sm:$0xff]
        %v448 = vld [vmem:[%s329 + $0x158] sm:$0xff]
        %v449 = vld [vmem:[%s329 + $0x160] sm:$0xff]
        %v450 = vld [vmem:[%s329 + $0x168] sm:$0xff]
        %v451 = vld [vmem:[%s329 + $0x170] sm:$0xff]
        %v452 = vld [vmem:[%s329 + $0x178] sm:$0xff]
        %v453 = vld [vmem:[%s329 + $0x180] sm:$0xff]
        %v454 = vld [vmem:[%s329 + $0x188] sm:$0xff]
        %v455 = vld [vmem:[%s329 + $0x190] sm:$0xff]
        %v456 = vld [vmem:[%s329 + $0x198] sm:$0xff]
        %v457 = vld [vmem:[%s329 + $0x1a0] sm:$0xff]
        %v458 = vld [vmem:[%s329 + $0x1a8] sm:$0xff]
        %v459 = vld [vmem:[%s329 + $0x1b0] sm:$0xff]
        %v460 = vld [vmem:[%s329 + $0x1b8] sm:$0xff]
        %v461 = vld [vmem:[%s329 + $0x1c0] sm:$0xff]
        %v462 = vld [vmem:[%s329 + $0x1c8] sm:$0xff]
        %v463 = vld [vmem:[%s329 + $0x1d0] sm:$0xff]
        %v464 = vld [vmem:[%s329 + $0x1d8] sm:$0xff]
        %v465 = vld [vmem:[%s329 + $0x1e0] sm:$0xff]
        %v466 = vld [vmem:[%s329 + $0x1e8] sm:$0xff]
        %v467 = vld [vmem:[%s329 + $0x1f0] sm:$0xff]
        %v468 = vld [vmem:[%s329 + $0x1f8] sm:$0xff]
        %v469 = vld [vmem:[%s329 + $0x200] sm:$0xff]
        %v470 = vld [vmem:[%s329 + $0x208] sm:$0xff]
        %v471 = vld [vmem:[%s329 + $0x210] sm:$0xff]
        %v472 = vld [vmem:[%s329 + $0x218] sm:$0xff]
        %v473 = vld [vmem:[%s329 + $0x220] sm:$0xff]
        %v474 = vld [vmem:[%s329 + $0x228] sm:$0xff]
        %v475 = vld [vmem:[%s329 + $0x230] sm:$0xff]
        %v476 = vld [vmem:[%s329 + $0x238] sm:$0xff]
        %v477 = vld [vmem:[%s329 + $0x240] sm:$0xff]
        %v478 = vld [vmem:[%s329 + $0x248] sm:$0xff]
        %v479 = vld [vmem:[%s329 + $0x250] sm:$0xff]
        %v480 = vld [vmem:[%s329 + $0x258] sm:$0xff]
        %v481 = vld [vmem:[%s329 + $0x260] sm:$0xff]
        %v482 = vld [vmem:[%s329 + $0x268] sm:$0xff]
        %v483 = vld [vmem:[%s329 + $0x270] sm:$0xff]
        %v484 = vld [vmem:[%s329 + $0x278] sm:$0xff]
        %v485 = vld [vmem:[%s329 + $0x280] sm:$0xff]
        %v486 = vld [vmem:[%s329 + $0x288] sm:$0xff]
        %v487 = vld [vmem:[%s329 + $0x290] sm:$0xff]
        %v488 = vld [vmem:[%s329 + $0x298] sm:$0xff]
        %v489 = vld [vmem:[%s329 + $0x2a0] sm:$0xff]
        %v490 = vld [vmem:[%s329 + $0x2a8] sm:$0xff]
        %v491 = vld [vmem:[%s329 + $0x2b0] sm:$0xff]
        %v492 = vld [vmem:[%s329 + $0x2b8] sm:$0xff]
        %v493 = vld [vmem:[%s329 + $0x2c0] sm:$0xff]
        %v494 = vld [vmem:[%s329 + $0x2c8] sm:$0xff]
        %v495 = vld [vmem:[%s329 + $0x2d0] sm:$0xff]
        %v496 = vld [vmem:[%s329 + $0x2d8] sm:$0xff]
        %v497 = vld [vmem:[%s329 + $0x2e0] sm:$0xff]
        %v498 = vld [vmem:[%s329 + $0x2e8] sm:$0xff]
        %v499 = vld [vmem:[%s329 + $0x2f0] sm:$0xff]
        %v500 = vld [vmem:[%s329 + $0x2f8] sm:$0xff]
        %v501 = vld [vmem:[%s329 + $0x300] sm:$0xff]
        %v502 = vld [vmem:[%s329 + $0x308] sm:$0xff]
        %v503 = vld [vmem:[%s329 + $0x310] sm:$0xff]
        %v504 = vld [vmem:[%s329 + $0x318] sm:$0xff]
        %v505 = vld [vmem:[%s329 + $0x320] sm:$0xff]
        %v506 = vld [vmem:[%s329 + $0x328] sm:$0xff]
        %v507 = vld [vmem:[%s329 + $0x330] sm:$0xff]
        %v508 = vld [vmem:[%s329 + $0x338] sm:$0xff]
        %v509 = vld [vmem:[%s329 + $0x340] sm:$0xff]
        %v510 = vld [vmem:[%s329 + $0x348] sm:$0xff]
        %v511 = vld [vmem:[%s329 + $0x350] sm:$0xff]
        %v512 = vld [vmem:[%s329 + $0x358] sm:$0xff]
        %v513 = vld [vmem:[%s329 + $0x360] sm:$0xff]
        %v514 = vld [vmem:[%s329 + $0x368] sm:$0xff]
        %v515 = vld [vmem:[%s329 + $0x370] sm:$0xff]
        %v516 = vld [vmem:[%s329 + $0x378] sm:$0xff]
        %v517 = vld [vmem:[%s329 + $0x380] sm:$0xff]
        %v518 = vld [vmem:[%s329 + $0x388] sm:$0xff]
        %v519 = vld [vmem:[%s329 + $0x390] sm:$0xff]
        %v520 = vld [vmem:[%s329 + $0x398] sm:$0xff]
        %v521 = vld [vmem:[%s329 + $0x3a0] sm:$0xff]
        %v522 = vld [vmem:[%s329 + $0x3a8] sm:$0xff]
        %v523 = vld [vmem:[%s329 + $0x3b0] sm:$0xff]
        %v524 = vld [vmem:[%s329 + $0x3b8] sm:$0xff]
        %v525 = vld [vmem:[%s329 + $0x3c0] sm:$0xff]
        %v526 = vld [vmem:[%s329 + $0x3c8] sm:$0xff]
        %v527 = vld [vmem:[%s329 + $0x3d0] sm:$0xff]
        %v528 = vld [vmem:[%s329 + $0x3d8] sm:$0xff]
        %v529 = vld [vmem:[%s329 + $0x3e0] sm:$0xff]
        %v530 = vld [vmem:[%s329 + $0x3e8] sm:$0xff]
        %v531 = vld [vmem:[%s329 + $0x3f0] sm:$0xff]
        %v532 = vld [vmem:[%s329 + $0x3f8] sm:$0xff]
        %v533 = vld [vmem:[#allocation10] sm:$0x1]
        %s534 = sld [smem:[#allocation15 + $0x1]]
        %v536 = vperm.slane %v533, 0
        %v538 = vmul.f32 %v405, %v536
        %v539 = vmul.f32 %v406, %v536
        %v540 = vmul.f32 %v407, %v536
        %v541 = vmul.f32 %v408, %v536
        %v542 = vmul.f32 %v409, %v536
        %v543 = vmul.f32 %v410, %v536
        %v544 = vmul.f32 %v411, %v536
        %v545 = vmul.f32 %v412, %v536
        %v546 = vmul.f32 %v413, %v536
        %v547 = vmul.f32 %v414, %v536
        %v548 = vmul.f32 %v415, %v536
        %v549 = vmul.f32 %v416, %v536
        %v550 = vmul.f32 %v417, %v536
        %v551 = vmul.f32 %v418, %v536
        %v552 = vmul.f32 %v419, %v536
        %v553 = vmul.f32 %v420, %v536
        %v554 = vmul.f32 %v421, %v536
        %v555 = vmul.f32 %v422, %v536
        %v556 = vmul.f32 %v423, %v536
        %v557 = vmul.f32 %v424, %v536
        %v558 = vmul.f32 %v425, %v536
        %v559 = vmul.f32 %v426, %v536
        %v560 = vmul.f32 %v427, %v536
        %v561 = vmul.f32 %v428, %v536
        %v562 = vmul.f32 %v429, %v536
        %v563 = vmul.f32 %v430, %v536
        %v564 = vmul.f32 %v431, %v536
        %v565 = vmul.f32 %v432, %v536
        %v566 = vmul.f32 %v433, %v536
        %v567 = vmul.f32 %v434, %v536
        %v568 = vmul.f32 %v435, %v536
        %v569 = vmul.f32 %v436, %v536
        %v570 = vmul.f32 %v437, %v536
        %v571 = vmul.f32 %v438, %v536
        %v572 = vmul.f32 %v439, %v536
        %v573 = vmul.f32 %v440, %v536
        %v574 = vmul.f32 %v441, %v536
        %v575 = vmul.f32 %v442, %v536
        %v576 = vmul.f32 %v443, %v536
        %v577 = vmul.f32 %v444, %v536
        %v578 = vmul.f32 %v445, %v536
        %v579 = vmul.f32 %v446, %v536
        %v580 = vmul.f32 %v447, %v536
        %v581 = vmul.f32 %v448, %v536
        %v582 = vmul.f32 %v449, %v536
        %v583 = vmul.f32 %v450, %v536
        %v584 = vmul.f32 %v451, %v536
        %v585 = vmul.f32 %v452, %v536
        %v586 = vmul.f32 %v453, %v536
        %v587 = vmul.f32 %v454, %v536
        %v588 = vmul.f32 %v455, %v536
        %v589 = vmul.f32 %v456, %v536
        %v590 = vmul.f32 %v457, %v536
        %v591 = vmul.f32 %v458, %v536
        %v592 = vmul.f32 %v459, %v536
        %v593 = vmul.f32 %v460, %v536
        %v594 = vmul.f32 %v461, %v536
        %v595 = vmul.f32 %v462, %v536
        %v596 = vmul.f32 %v463, %v536
        %v597 = vmul.f32 %v464, %v536
        %v598 = vmul.f32 %v465, %v536
        %v599 = vmul.f32 %v466, %v536
        %v600 = vmul.f32 %v467, %v536
        %v601 = vmul.f32 %v468, %v536
        %v602 = vmul.f32 %v469, %v536
        %v603 = vmul.f32 %v470, %v536
        %v604 = vmul.f32 %v471, %v536
        %v605 = vmul.f32 %v472, %v536
        %v606 = vmul.f32 %v473, %v536
        %v607 = vmul.f32 %v474, %v536
        %v608 = vmul.f32 %v475, %v536
        %v609 = vmul.f32 %v476, %v536
        %v610 = vmul.f32 %v477, %v536
        %v611 = vmul.f32 %v478, %v536
        %v612 = vmul.f32 %v479, %v536
        %v613 = vmul.f32 %v480, %v536
        %v614 = vmul.f32 %v481, %v536
        %v615 = vmul.f32 %v482, %v536
        %v616 = vmul.f32 %v483, %v536
        %v617 = vmul.f32 %v484, %v536
        %v618 = vmul.f32 %v485, %v536
        %v619 = vmul.f32 %v486, %v536
        %v620 = vmul.f32 %v487, %v536
        %v621 = vmul.f32 %v488, %v536
        %v622 = vmul.f32 %v489, %v536
        %v623 = vmul.f32 %v490, %v536
        %v624 = vmul.f32 %v491, %v536
        %v625 = vmul.f32 %v492, %v536
        %v626 = vmul.f32 %v493, %v536
        %v627 = vmul.f32 %v494, %v536
        %v628 = vmul.f32 %v495, %v536
        %v629 = vmul.f32 %v496, %v536
        %v630 = vmul.f32 %v497, %v536
        %v631 = vmul.f32 %v498, %v536
        %v632 = vmul.f32 %v499, %v536
        %v633 = vmul.f32 %v500, %v536
        %v634 = vmul.f32 %v501, %v536
        %v635 = vmul.f32 %v502, %v536
        %v636 = vmul.f32 %v503, %v536
        %v637 = vmul.f32 %v504, %v536
        %v638 = vmul.f32 %v505, %v536
        %v639 = vmul.f32 %v506, %v536
        %v640 = vmul.f32 %v507, %v536
        %v641 = vmul.f32 %v508, %v536
        %v642 = vmul.f32 %v509, %v536
        %v643 = vmul.f32 %v510, %v536
        %v644 = vmul.f32 %v511, %v536
        %v645 = vmul.f32 %v512, %v536
        %v646 = vmul.f32 %v513, %v536
        %v647 = vmul.f32 %v514, %v536
        %v648 = vmul.f32 %v515, %v536
        %v649 = vmul.f32 %v516, %v536
        %v650 = vmul.f32 %v517, %v536
        %v651 = vmul.f32 %v518, %v536
        %v652 = vmul.f32 %v519, %v536
        %v653 = vmul.f32 %v520, %v536
        %v654 = vmul.f32 %v521, %v536
        %v655 = vmul.f32 %v522, %v536
        %v656 = vmul.f32 %v523, %v536
        %v657 = vmul.f32 %v524, %v536
        %v658 = vmul.f32 %v525, %v536
        %v659 = vmul.f32 %v526, %v536
        %v660 = vmul.f32 %v527, %v536
        %v661 = vmul.f32 %v528, %v536
        %v662 = vmul.f32 %v529, %v536
        %v663 = vmul.f32 %v530, %v536
        %v664 = vmul.f32 %v531, %v536
        %v665 = vmul.f32 %v532, %v536
        %666 = vadd.xlane.f32.xlu0 %v538
        %v667 = vpop.xlane.xlu0 %666
        %668 = vadd.xlane.f32.xlu0 %v539
        %v669 = vpop.xlane.xlu0 %668
        %670 = vadd.xlane.f32.xlu0 %v540
        %v671 = vpop.xlane.xlu0 %670
        %672 = vadd.xlane.f32.xlu0 %v541
        %v673 = vpop.xlane.xlu0 %672
        %674 = vadd.xlane.f32.xlu0 %v542
        %v675 = vpop.xlane.xlu0 %674
        %676 = vadd.xlane.f32.xlu0 %v543
        %v677 = vpop.xlane.xlu0 %676
        %678 = vadd.xlane.f32.xlu0 %v544
        %v679 = vpop.xlane.xlu0 %678
        %680 = vadd.xlane.f32.xlu0 %v545
        %v681 = vpop.xlane.xlu0 %680
        %682 = vadd.xlane.f32.xlu0 %v546
        %v683 = vpop.xlane.xlu0 %682
        %684 = vadd.xlane.f32.xlu0 %v547
        %v685 = vpop.xlane.xlu0 %684
        %686 = vadd.xlane.f32.xlu0 %v548
        %v687 = vpop.xlane.xlu0 %686
        %688 = vadd.xlane.f32.xlu0 %v549
        %v689 = vpop.xlane.xlu0 %688
        %690 = vadd.xlane.f32.xlu0 %v550
        %v691 = vpop.xlane.xlu0 %690
        %692 = vadd.xlane.f32.xlu0 %v551
        %v693 = vpop.xlane.xlu0 %692
        %694 = vadd.xlane.f32.xlu0 %v552
        %v695 = vpop.xlane.xlu0 %694
        %696 = vadd.xlane.f32.xlu0 %v553
        %v697 = vpop.xlane.xlu0 %696
        %698 = vadd.xlane.f32.xlu0 %v554
        %v699 = vpop.xlane.xlu0 %698
        %700 = vadd.xlane.f32.xlu0 %v555
        %v701 = vpop.xlane.xlu0 %700
        %702 = vadd.xlane.f32.xlu0 %v556
        %v703 = vpop.xlane.xlu0 %702
        %704 = vadd.xlane.f32.xlu0 %v557
        %v705 = vpop.xlane.xlu0 %704
        %706 = vadd.xlane.f32.xlu0 %v558
        %v707 = vpop.xlane.xlu0 %706
        %708 = vadd.xlane.f32.xlu0 %v559
        %v709 = vpop.xlane.xlu0 %708
        %710 = vadd.xlane.f32.xlu0 %v560
        %v711 = vpop.xlane.xlu0 %710
        %712 = vadd.xlane.f32.xlu0 %v561
        %v713 = vpop.xlane.xlu0 %712
        %714 = vadd.xlane.f32.xlu0 %v562
        %v715 = vpop.xlane.xlu0 %714
        %716 = vadd.xlane.f32.xlu0 %v563
        %v717 = vpop.xlane.xlu0 %716
        %718 = vadd.xlane.f32.xlu0 %v564
        %v719 = vpop.xlane.xlu0 %718
        %720 = vadd.xlane.f32.xlu0 %v565
        %v721 = vpop.xlane.xlu0 %720
        %722 = vadd.xlane.f32.xlu0 %v566
        %v723 = vpop.xlane.xlu0 %722
        %724 = vadd.xlane.f32.xlu0 %v567
        %v725 = vpop.xlane.xlu0 %724
        %726 = vadd.xlane.f32.xlu0 %v568
        %v727 = vpop.xlane.xlu0 %726
        %728 = vadd.xlane.f32.xlu0 %v569
        %v729 = vpop.xlane.xlu0 %728
        %730 = vadd.xlane.f32.xlu0 %v570
        %v731 = vpop.xlane.xlu0 %730
        %732 = vadd.xlane.f32.xlu0 %v571
        %v733 = vpop.xlane.xlu0 %732
        %734 = vadd.xlane.f32.xlu0 %v572
        %v735 = vpop.xlane.xlu0 %734
        %736 = vadd.xlane.f32.xlu0 %v573
        %v737 = vpop.xlane.xlu0 %736
        %738 = vadd.xlane.f32.xlu0 %v574
        %v739 = vpop.xlane.xlu0 %738
        %740 = vadd.xlane.f32.xlu0 %v575
        %v741 = vpop.xlane.xlu0 %740
        %742 = vadd.xlane.f32.xlu0 %v576
        %v743 = vpop.xlane.xlu0 %742
        %744 = vadd.xlane.f32.xlu0 %v577
        %v745 = vpop.xlane.xlu0 %744
        %746 = vadd.xlane.f32.xlu0 %v578
        %v747 = vpop.xlane.xlu0 %746
        %748 = vadd.xlane.f32.xlu0 %v579
        %v749 = vpop.xlane.xlu0 %748
        %750 = vadd.xlane.f32.xlu0 %v580
        %v751 = vpop.xlane.xlu0 %750
        %752 = vadd.xlane.f32.xlu0 %v581
        %v753 = vpop.xlane.xlu0 %752
        %754 = vadd.xlane.f32.xlu0 %v582
        %v755 = vpop.xlane.xlu0 %754
        %756 = vadd.xlane.f32.xlu0 %v583
        %v757 = vpop.xlane.xlu0 %756
        %758 = vadd.xlane.f32.xlu0 %v584
        %v759 = vpop.xlane.xlu0 %758
        %760 = vadd.xlane.f32.xlu0 %v585
        %v761 = vpop.xlane.xlu0 %760
        %762 = vadd.xlane.f32.xlu0 %v586
        %v763 = vpop.xlane.xlu0 %762
        %764 = vadd.xlane.f32.xlu0 %v587
        %v765 = vpop.xlane.xlu0 %764
        %766 = vadd.xlane.f32.xlu0 %v588
        %v767 = vpop.xlane.xlu0 %766
        %768 = vadd.xlane.f32.xlu0 %v589
        %v769 = vpop.xlane.xlu0 %768
        %770 = vadd.xlane.f32.xlu0 %v590
        %v771 = vpop.xlane.xlu0 %770
        %772 = vadd.xlane.f32.xlu0 %v591
        %v773 = vpop.xlane.xlu0 %772
        %774 = vadd.xlane.f32.xlu0 %v592
        %v775 = vpop.xlane.xlu0 %774
        %776 = vadd.xlane.f32.xlu0 %v593
        %v777 = vpop.xlane.xlu0 %776
        %778 = vadd.xlane.f32.xlu0 %v594
        %v779 = vpop.xlane.xlu0 %778
        %780 = vadd.xlane.f32.xlu0 %v595
        %v781 = vpop.xlane.xlu0 %780
        %782 = vadd.xlane.f32.xlu0 %v596
        %v783 = vpop.xlane.xlu0 %782
        %784 = vadd.xlane.f32.xlu0 %v597
        %v785 = vpop.xlane.xlu0 %784
        %786 = vadd.xlane.f32.xlu0 %v598
        %v787 = vpop.xlane.xlu0 %786
        %788 = vadd.xlane.f32.xlu0 %v599
        %v789 = vpop.xlane.xlu0 %788
        %790 = vadd.xlane.f32.xlu0 %v600
        %v791 = vpop.xlane.xlu0 %790
        %792 = vadd.xlane.f32.xlu0 %v601
        %v793 = vpop.xlane.xlu0 %792
        %794 = vadd.xlane.f32.xlu0 %v602
        %v795 = vpop.xlane.xlu0 %794
        %796 = vadd.xlane.f32.xlu0 %v603
        %v797 = vpop.xlane.xlu0 %796
        %798 = vadd.xlane.f32.xlu0 %v604
        %v799 = vpop.xlane.xlu0 %798
        %800 = vadd.xlane.f32.xlu0 %v605
        %v801 = vpop.xlane.xlu0 %800
        %802 = vadd.xlane.f32.xlu0 %v606
        %v803 = vpop.xlane.xlu0 %802
        %804 = vadd.xlane.f32.xlu0 %v607
        %v805 = vpop.xlane.xlu0 %804
        %806 = vadd.xlane.f32.xlu0 %v608
        %v807 = vpop.xlane.xlu0 %806
        %808 = vadd.xlane.f32.xlu0 %v609
        %v809 = vpop.xlane.xlu0 %808
        %810 = vadd.xlane.f32.xlu0 %v610
        %v811 = vpop.xlane.xlu0 %810
        %812 = vadd.xlane.f32.xlu0 %v611
        %v813 = vpop.xlane.xlu0 %812
        %814 = vadd.xlane.f32.xlu0 %v612
        %v815 = vpop.xlane.xlu0 %814
        %816 = vadd.xlane.f32.xlu0 %v613
        %v817 = vpop.xlane.xlu0 %816
        %818 = vadd.xlane.f32.xlu0 %v614
        %v819 = vpop.xlane.xlu0 %818
        %820 = vadd.xlane.f32.xlu0 %v615
        %v821 = vpop.xlane.xlu0 %820
        %822 = vadd.xlane.f32.xlu0 %v616
        %v823 = vpop.xlane.xlu0 %822
        %824 = vadd.xlane.f32.xlu0 %v617
        %v825 = vpop.xlane.xlu0 %824
        %826 = vadd.xlane.f32.xlu0 %v618
        %v827 = vpop.xlane.xlu0 %826
        %828 = vadd.xlane.f32.xlu0 %v619
        %v829 = vpop.xlane.xlu0 %828
        %830 = vadd.xlane.f32.xlu0 %v620
        %v831 = vpop.xlane.xlu0 %830
        %832 = vadd.xlane.f32.xlu0 %v621
        %v833 = vpop.xlane.xlu0 %832
        %834 = vadd.xlane.f32.xlu0 %v622
        %v835 = vpop.xlane.xlu0 %834
        %836 = vadd.xlane.f32.xlu0 %v623
        %v837 = vpop.xlane.xlu0 %836
        %838 = vadd.xlane.f32.xlu0 %v624
        %v839 = vpop.xlane.xlu0 %838
        %840 = vadd.xlane.f32.xlu0 %v625
        %v841 = vpop.xlane.xlu0 %840
        %842 = vadd.xlane.f32.xlu0 %v626
        %v843 = vpop.xlane.xlu0 %842
        %844 = vadd.xlane.f32.xlu0 %v627
        %v845 = vpop.xlane.xlu0 %844
        %846 = vadd.xlane.f32.xlu0 %v628
        %v847 = vpop.xlane.xlu0 %846
        %848 = vadd.xlane.f32.xlu0 %v629
        %v849 = vpop.xlane.xlu0 %848
        %850 = vadd.xlane.f32.xlu0 %v630
        %v851 = vpop.xlane.xlu0 %850
        %852 = vadd.xlane.f32.xlu0 %v631
        %v853 = vpop.xlane.xlu0 %852
        %854 = vadd.xlane.f32.xlu0 %v632
        %v855 = vpop.xlane.xlu0 %854
        %856 = vadd.xlane.f32.xlu0 %v633
        %v857 = vpop.xlane.xlu0 %856
        %858 = vadd.xlane.f32.xlu0 %v634
        %v859 = vpop.xlane.xlu0 %858
        %860 = vadd.xlane.f32.xlu0 %v635
        %v861 = vpop.xlane.xlu0 %860
        %862 = vadd.xlane.f32.xlu0 %v636
        %v863 = vpop.xlane.xlu0 %862
        %864 = vadd.xlane.f32.xlu0 %v637
        %v865 = vpop.xlane.xlu0 %864
        %866 = vadd.xlane.f32.xlu0 %v638
        %v867 = vpop.xlane.xlu0 %866
        %868 = vadd.xlane.f32.xlu0 %v639
        %v869 = vpop.xlane.xlu0 %868
        %870 = vadd.xlane.f32.xlu0 %v640
        %v871 = vpop.xlane.xlu0 %870
        %872 = vadd.xlane.f32.xlu0 %v641
        %v873 = vpop.xlane.xlu0 %872
        %874 = vadd.xlane.f32.xlu0 %v642
        %v875 = vpop.xlane.xlu0 %874
        %876 = vadd.xlane.f32.xlu0 %v643
        %v877 = vpop.xlane.xlu0 %876
        %878 = vadd.xlane.f32.xlu0 %v644
        %v879 = vpop.xlane.xlu0 %878
        %880 = vadd.xlane.f32.xlu0 %v645
        %v881 = vpop.xlane.xlu0 %880
        %882 = vadd.xlane.f32.xlu0 %v646
        %v883 = vpop.xlane.xlu0 %882
        %884 = vadd.xlane.f32.xlu0 %v647
        %v885 = vpop.xlane.xlu0 %884
        %886 = vadd.xlane.f32.xlu0 %v648
        %v887 = vpop.xlane.xlu0 %886
        %888 = vadd.xlane.f32.xlu0 %v649
        %v889 = vpop.xlane.xlu0 %888
        %890 = vadd.xlane.f32.xlu0 %v650
        %v891 = vpop.xlane.xlu0 %890
        %892 = vadd.xlane.f32.xlu0 %v651
        %v893 = vpop.xlane.xlu0 %892
        %894 = vadd.xlane.f32.xlu0 %v652
        %v895 = vpop.xlane.xlu0 %894
        %896 = vadd.xlane.f32.xlu0 %v653
        %v897 = vpop.xlane.xlu0 %896
        %898 = vadd.xlane.f32.xlu0 %v654
        %v899 = vpop.xlane.xlu0 %898
        %900 = vadd.xlane.f32.xlu0 %v655
        %v901 = vpop.xlane.xlu0 %900
        %902 = vadd.xlane.f32.xlu0 %v656
        %v903 = vpop.xlane.xlu0 %902
        %904 = vadd.xlane.f32.xlu0 %v657
        %v905 = vpop.xlane.xlu0 %904
        %906 = vadd.xlane.f32.xlu0 %v658
        %v907 = vpop.xlane.xlu0 %906
        %908 = vadd.xlane.f32.xlu0 %v659
        %v909 = vpop.xlane.xlu0 %908
        %910 = vadd.xlane.f32.xlu0 %v660
        %v911 = vpop.xlane.xlu0 %910
        %912 = vadd.xlane.f32.xlu0 %v661
        %v913 = vpop.xlane.xlu0 %912
        %914 = vadd.xlane.f32.xlu0 %v662
        %v915 = vpop.xlane.xlu0 %914
        %916 = vadd.xlane.f32.xlu0 %v663
        %v917 = vpop.xlane.xlu0 %916
        %918 = vadd.xlane.f32.xlu0 %v664
        %v919 = vpop.xlane.xlu0 %918
        %920 = vadd.xlane.f32.xlu0 %v665
        %v921 = vpop.xlane.xlu0 %920
        %v922 = vstv %s534
        %v923 = vadd.f32 %v667, %v922
        %v924 = vadd.f32 %v669, %v922
        %v925 = vadd.f32 %v671, %v922
        %v926 = vadd.f32 %v673, %v922
        %v927 = vadd.f32 %v675, %v922
        %v928 = vadd.f32 %v677, %v922
        %v929 = vadd.f32 %v679, %v922
        %v930 = vadd.f32 %v681, %v922
        %v931 = vadd.f32 %v683, %v922
        %v932 = vadd.f32 %v685, %v922
        %v933 = vadd.f32 %v687, %v922
        %v934 = vadd.f32 %v689, %v922
        %v935 = vadd.f32 %v691, %v922
        %v936 = vadd.f32 %v693, %v922
        %v937 = vadd.f32 %v695, %v922
        %v938 = vadd.f32 %v697, %v922
        %v939 = vadd.f32 %v699, %v922
        %v940 = vadd.f32 %v701, %v922
        %v941 = vadd.f32 %v703, %v922
        %v942 = vadd.f32 %v705, %v922
        %v943 = vadd.f32 %v707, %v922
        %v944 = vadd.f32 %v709, %v922
        %v945 = vadd.f32 %v711, %v922
        %v946 = vadd.f32 %v713, %v922
        %v947 = vadd.f32 %v715, %v922
        %v948 = vadd.f32 %v717, %v922
        %v949 = vadd.f32 %v719, %v922
        %v950 = vadd.f32 %v721, %v922
        %v951 = vadd.f32 %v723, %v922
        %v952 = vadd.f32 %v725, %v922
        %v953 = vadd.f32 %v727, %v922
        %v954 = vadd.f32 %v729, %v922
        %v955 = vadd.f32 %v731, %v922
        %v956 = vadd.f32 %v733, %v922
        %v957 = vadd.f32 %v735, %v922
        %v958 = vadd.f32 %v737, %v922
        %v959 = vadd.f32 %v739, %v922
        %v960 = vadd.f32 %v741, %v922
        %v961 = vadd.f32 %v743, %v922
        %v962 = vadd.f32 %v745, %v922
        %v963 = vadd.f32 %v747, %v922
        %v964 = vadd.f32 %v749, %v922
        %v965 = vadd.f32 %v751, %v922
        %v966 = vadd.f32 %v753, %v922
        %v967 = vadd.f32 %v755, %v922
        %v968 = vadd.f32 %v757, %v922
        %v969 = vadd.f32 %v759, %v922
        %v970 = vadd.f32 %v761, %v922
        %v971 = vadd.f32 %v763, %v922
        %v972 = vadd.f32 %v765, %v922
        %v973 = vadd.f32 %v767, %v922
        %v974 = vadd.f32 %v769, %v922
        %v975 = vadd.f32 %v771, %v922
        %v976 = vadd.f32 %v773, %v922
        %v977 = vadd.f32 %v775, %v922
        %v978 = vadd.f32 %v777, %v922
        %v979 = vadd.f32 %v779, %v922
        %v980 = vadd.f32 %v781, %v922
        %v981 = vadd.f32 %v783, %v922
        %v982 = vadd.f32 %v785, %v922
        %v983 = vadd.f32 %v787, %v922
        %v984 = vadd.f32 %v789, %v922
        %v985 = vadd.f32 %v791, %v922
        %v986 = vadd.f32 %v793, %v922
        %v987 = vadd.f32 %v795, %v922
        %v988 = vadd.f32 %v797, %v922
        %v989 = vadd.f32 %v799, %v922
        %v990 = vadd.f32 %v801, %v922
        %v991 = vadd.f32 %v803, %v922
        %v992 = vadd.f32 %v805, %v922
        %v993 = vadd.f32 %v807, %v922
        %v994 = vadd.f32 %v809, %v922
        %v995 = vadd.f32 %v811, %v922
        %v996 = vadd.f32 %v813, %v922
        %v997 = vadd.f32 %v815, %v922
        %v998 = vadd.f32 %v817, %v922
        %v999 = vadd.f32 %v819, %v922
        %v1000 = vadd.f32 %v821, %v922
        %v1001 = vadd.f32 %v823, %v922
        %v1002 = vadd.f32 %v825, %v922
        %v1003 = vadd.f32 %v827, %v922
        %v1004 = vadd.f32 %v829, %v922
        %v1005 = vadd.f32 %v831, %v922
        %v1006 = vadd.f32 %v833, %v922
        %v1007 = vadd.f32 %v835, %v922
        %v1008 = vadd.f32 %v837, %v922
        %v1009 = vadd.f32 %v839, %v922
        %v1010 = vadd.f32 %v841, %v922
        %v1011 = vadd.f32 %v843, %v922
        %v1012 = vadd.f32 %v845, %v922
        %v1013 = vadd.f32 %v847, %v922
        %v1014 = vadd.f32 %v849, %v922
        %v1015 = vadd.f32 %v851, %v922
        %v1016 = vadd.f32 %v853, %v922
        %v1017 = vadd.f32 %v855, %v922
        %v1018 = vadd.f32 %v857, %v922
        %v1019 = vadd.f32 %v859, %v922
        %v1020 = vadd.f32 %v861, %v922
        %v1021 = vadd.f32 %v863, %v922
        %v1022 = vadd.f32 %v865, %v922
        %v1023 = vadd.f32 %v867, %v922
        %v1024 = vadd.f32 %v869, %v922
        %v1025 = vadd.f32 %v871, %v922
        %v1026 = vadd.f32 %v873, %v922
        %v1027 = vadd.f32 %v875, %v922
        %v1028 = vadd.f32 %v877, %v922
        %v1029 = vadd.f32 %v879, %v922
        %v1030 = vadd.f32 %v881, %v922
        %v1031 = vadd.f32 %v883, %v922
        %v1032 = vadd.f32 %v885, %v922
        %v1033 = vadd.f32 %v887, %v922
        %v1034 = vadd.f32 %v889, %v922
        %v1035 = vadd.f32 %v891, %v922
        %v1036 = vadd.f32 %v893, %v922
        %v1037 = vadd.f32 %v895, %v922
        %v1038 = vadd.f32 %v897, %v922
        %v1039 = vadd.f32 %v899, %v922
        %v1040 = vadd.f32 %v901, %v922
        %v1041 = vadd.f32 %v903, %v922
        %v1042 = vadd.f32 %v905, %v922
        %v1043 = vadd.f32 %v907, %v922
        %v1044 = vadd.f32 %v909, %v922
        %v1045 = vadd.f32 %v911, %v922
        %v1046 = vadd.f32 %v913, %v922
        %v1047 = vadd.f32 %v915, %v922
        %v1048 = vadd.f32 %v917, %v922
        %v1049 = vadd.f32 %v919, %v922
        %v1050 = vadd.f32 %v921, %v922
        %v1051 = vld [vmem:[#allocation2] sm:$0xff]
        %v1180 = vlaneseq
        %v1181 = vand.u32 %v1180, 127
        %v1182 = vperm.slane %v923, %v1181
        %v1183 = vadd.s32 %v1181, 4294967288
        %v1184 = vperm.slane %v924, %v1183
        %vm1185 = vcmask 130112
        %v1186 = vsel %vm1185, %v1184, %v1182
        %v1187 = vadd.s32 %v1181, 4294967280
        %v1188 = vperm.slane %v925, %v1187
        %vm1189 = vcmask 195712
        %v1190 = vsel %vm1189, %v1188, %v1186
        %v1191 = vadd.s32 %v1181, 4294967272
        %v1192 = vperm.slane %v926, %v1191
        %vm1193 = vcmask 261312
        %v1194 = vsel %vm1193, %v1192, %v1190
        %v1195 = vadd.s32 %v1181, 4294967264
        %v1196 = vperm.slane %v927, %v1195
        %vm1197 = vcmask 326912
        %v1198 = vsel %vm1197, %v1196, %v1194
        %v1199 = vadd.s32 %v1181, 4294967256
        %v1200 = vperm.slane %v928, %v1199
        %vm1201 = vcmask 392512
        %v1202 = vsel %vm1201, %v1200, %v1198
        %v1203 = vadd.s32 %v1181, 4294967248
        %v1204 = vperm.slane %v929, %v1203
        %vm1205 = vcmask 458112
        %v1206 = vsel %vm1205, %v1204, %v1202
        %v1207 = vadd.s32 %v1181, 4294967240
        %v1208 = vperm.slane %v930, %v1207
        %vm1209 = vcmask 523712
        %v1210 = vsel %vm1209, %v1208, %v1206
        %v1211 = vadd.s32 %v1181, 4294967232
        %v1212 = vperm.slane %v931, %v1211
        %vm1213 = vcmask 589312
        %v1214 = vsel %vm1213, %v1212, %v1210
        %v1215 = vadd.s32 %v1181, 4294967224
        %v1216 = vperm.slane %v932, %v1215
        %vm1217 = vcmask 654912
        %v1218 = vsel %vm1217, %v1216, %v1214
        %v1219 = vadd.s32 %v1181, 4294967216
        %v1220 = vperm.slane %v933, %v1219
        %vm1221 = vcmask 720512
        %v1222 = vsel %vm1221, %v1220, %v1218
        %v1223 = vadd.s32 %v1181, 4294967208
        %v1224 = vperm.slane %v934, %v1223
        %vm1225 = vcmask 786112
        %v1226 = vsel %vm1225, %v1224, %v1222
        %v1227 = vadd.s32 %v1181, 4294967200
        %v1228 = vperm.slane %v935, %v1227
        %vm1229 = vcmask 851712
        %v1230 = vsel %vm1229, %v1228, %v1226
        %v1231 = vadd.s32 %v1181, 4294967192
        %v1232 = vperm.slane %v936, %v1231
        %vm1233 = vcmask 917312
        %v1234 = vsel %vm1233, %v1232, %v1230
        %v1235 = vadd.s32 %v1181, 4294967184
        %v1236 = vperm.slane %v937, %v1235
        %vm1237 = vcmask 982912
        %v1238 = vsel %vm1237, %v1236, %v1234
        %v1239 = vadd.s32 %v1181, 4294967176
        %v1240 = vperm.slane %v938, %v1239
        %vm1241 = vcmask 1048512
        %v1242 = vsel %vm1241, %v1240, %v1238
        %v1243 = vperm.slane %v939, %v1181
        %v1244 = vperm.slane %v940, %v1183
        %v1245 = vsel %vm1185, %v1244, %v1243
        %v1246 = vperm.slane %v941, %v1187
        %v1247 = vsel %vm1189, %v1246, %v1245
        %v1248 = vperm.slane %v942, %v1191
        %v1249 = vsel %vm1193, %v1248, %v1247
        %v1250 = vperm.slane %v943, %v1195
        %v1251 = vsel %vm1197, %v1250, %v1249
        %v1252 = vperm.slane %v944, %v1199
        %v1253 = vsel %vm1201, %v1252, %v1251
        %v1254 = vperm.slane %v945, %v1203
        %v1255 = vsel %vm1205, %v1254, %v1253
        %v1256 = vperm.slane %v946, %v1207
        %v1257 = vsel %vm1209, %v1256, %v1255
        %v1258 = vperm.slane %v947, %v1211
        %v1259 = vsel %vm1213, %v1258, %v1257
        %v1260 = vperm.slane %v948, %v1215
        %v1261 = vsel %vm1217, %v1260, %v1259
        %v1262 = vperm.slane %v949, %v1219
        %v1263 = vsel %vm1221, %v1262, %v1261
        %v1264 = vperm.slane %v950, %v1223
        %v1265 = vsel %vm1225, %v1264, %v1263
        %v1266 = vperm.slane %v951, %v1227
        %v1267 = vsel %vm1229, %v1266, %v1265
        %v1268 = vperm.slane %v952, %v1231
        %v1269 = vsel %vm1233, %v1268, %v1267
        %v1270 = vperm.slane %v953, %v1235
        %v1271 = vsel %vm1237, %v1270, %v1269
        %v1272 = vperm.slane %v954, %v1239
        %v1273 = vsel %vm1241, %v1272, %v1271
        %v1274 = vperm.slane %v955, %v1181
        %v1275 = vperm.slane %v956, %v1183
        %v1276 = vsel %vm1185, %v1275, %v1274
        %v1277 = vperm.slane %v957, %v1187
        %v1278 = vsel %vm1189, %v1277, %v1276
        %v1279 = vperm.slane %v958, %v1191
        %v1280 = vsel %vm1193, %v1279, %v1278
        %v1281 = vperm.slane %v959, %v1195
        %v1282 = vsel %vm1197, %v1281, %v1280
        %v1283 = vperm.slane %v960, %v1199
        %v1284 = vsel %vm1201, %v1283, %v1282
        %v1285 = vperm.slane %v961, %v1203
        %v1286 = vsel %vm1205, %v1285, %v1284
        %v1287 = vperm.slane %v962, %v1207
        %v1288 = vsel %vm1209, %v1287, %v1286
        %v1289 = vperm.slane %v963, %v1211
        %v1290 = vsel %vm1213, %v1289, %v1288
        %v1291 = vperm.slane %v964, %v1215
        %v1292 = vsel %vm1217, %v1291, %v1290
        %v1293 = vperm.slane %v965, %v1219
        %v1294 = vsel %vm1221, %v1293, %v1292
        %v1295 = vperm.slane %v966, %v1223
        %v1296 = vsel %vm1225, %v1295, %v1294
        %v1297 = vperm.slane %v967, %v1227
        %v1298 = vsel %vm1229, %v1297, %v1296
        %v1299 = vperm.slane %v968, %v1231
        %v1300 = vsel %vm1233, %v1299, %v1298
        %v1301 = vperm.slane %v969, %v1235
        %v1302 = vsel %vm1237, %v1301, %v1300
        %v1303 = vperm.slane %v970, %v1239
        %v1304 = vsel %vm1241, %v1303, %v1302
        %v1305 = vperm.slane %v971, %v1181
        %v1306 = vperm.slane %v972, %v1183
        %v1307 = vsel %vm1185, %v1306, %v1305
        %v1308 = vperm.slane %v973, %v1187
        %v1309 = vsel %vm1189, %v1308, %v1307
        %v1310 = vperm.slane %v974, %v1191
        %v1311 = vsel %vm1193, %v1310, %v1309
        %v1312 = vperm.slane %v975, %v1195
        %v1313 = vsel %vm1197, %v1312, %v1311
        %v1314 = vperm.slane %v976, %v1199
        %v1315 = vsel %vm1201, %v1314, %v1313
        %v1316 = vperm.slane %v977, %v1203
        %v1317 = vsel %vm1205, %v1316, %v1315
        %v1318 = vperm.slane %v978, %v1207
        %v1319 = vsel %vm1209, %v1318, %v1317
        %v1320 = vperm.slane %v979, %v1211
        %v1321 = vsel %vm1213, %v1320, %v1319
        %v1322 = vperm.slane %v980, %v1215
        %v1323 = vsel %vm1217, %v1322, %v1321
        %v1324 = vperm.slane %v981, %v1219
        %v1325 = vsel %vm1221, %v1324, %v1323
        %v1326 = vperm.slane %v982, %v1223
        %v1327 = vsel %vm1225, %v1326, %v1325
        %v1328 = vperm.slane %v983, %v1227
        %v1329 = vsel %vm1229, %v1328, %v1327
        %v1330 = vperm.slane %v984, %v1231
        %v1331 = vsel %vm1233, %v1330, %v1329
        %v1332 = vperm.slane %v985, %v1235
        %v1333 = vsel %vm1237, %v1332, %v1331
        %v1334 = vperm.slane %v986, %v1239
        %v1335 = vsel %vm1241, %v1334, %v1333
        %v1336 = vperm.slane %v987, %v1181
        %v1337 = vperm.slane %v988, %v1183
        %v1338 = vsel %vm1185, %v1337, %v1336
        %v1339 = vperm.slane %v989, %v1187
        %v1340 = vsel %vm1189, %v1339, %v1338
        %v1341 = vperm.slane %v990, %v1191
        %v1342 = vsel %vm1193, %v1341, %v1340
        %v1343 = vperm.slane %v991, %v1195
        %v1344 = vsel %vm1197, %v1343, %v1342
        %v1345 = vperm.slane %v992, %v1199
        %v1346 = vsel %vm1201, %v1345, %v1344
        %v1347 = vperm.slane %v993, %v1203
        %v1348 = vsel %vm1205, %v1347, %v1346
        %v1349 = vperm.slane %v994, %v1207
        %v1350 = vsel %vm1209, %v1349, %v1348
        %v1351 = vperm.slane %v995, %v1211
        %v1352 = vsel %vm1213, %v1351, %v1350
        %v1353 = vperm.slane %v996, %v1215
        %v1354 = vsel %vm1217, %v1353, %v1352
        %v1355 = vperm.slane %v997, %v1219
        %v1356 = vsel %vm1221, %v1355, %v1354
        %v1357 = vperm.slane %v998, %v1223
        %v1358 = vsel %vm1225, %v1357, %v1356
        %v1359 = vperm.slane %v999, %v1227
        %v1360 = vsel %vm1229, %v1359, %v1358
        %v1361 = vperm.slane %v1000, %v1231
        %v1362 = vsel %vm1233, %v1361, %v1360
        %v1363 = vperm.slane %v1001, %v1235
        %v1364 = vsel %vm1237, %v1363, %v1362
        %v1365 = vperm.slane %v1002, %v1239
        %v1366 = vsel %vm1241, %v1365, %v1364
        %v1367 = vperm.slane %v1003, %v1181
        %v1368 = vperm.slane %v1004, %v1183
        %v1369 = vsel %vm1185, %v1368, %v1367
        %v1370 = vperm.slane %v1005, %v1187
        %v1371 = vsel %vm1189, %v1370, %v1369
        %v1372 = vperm.slane %v1006, %v1191
        %v1373 = vsel %vm1193, %v1372, %v1371
        %v1374 = vperm.slane %v1007, %v1195
        %v1375 = vsel %vm1197, %v1374, %v1373
        %v1376 = vperm.slane %v1008, %v1199
        %v1377 = vsel %vm1201, %v1376, %v1375
        %v1378 = vperm.slane %v1009, %v1203
        %v1379 = vsel %vm1205, %v1378, %v1377
        %v1380 = vperm.slane %v1010, %v1207
        %v1381 = vsel %vm1209, %v1380, %v1379
        %v1382 = vperm.slane %v1011, %v1211
        %v1383 = vsel %vm1213, %v1382, %v1381
        %v1384 = vperm.slane %v1012, %v1215
        %v1385 = vsel %vm1217, %v1384, %v1383
        %v1386 = vperm.slane %v1013, %v1219
        %v1387 = vsel %vm1221, %v1386, %v1385
        %v1388 = vperm.slane %v1014, %v1223
        %v1389 = vsel %vm1225, %v1388, %v1387
        %v1390 = vperm.slane %v1015, %v1227
        %v1391 = vsel %vm1229, %v1390, %v1389
        %v1392 = vperm.slane %v1016, %v1231
        %v1393 = vsel %vm1233, %v1392, %v1391
        %v1394 = vperm.slane %v1017, %v1235
        %v1395 = vsel %vm1237, %v1394, %v1393
        %v1396 = vperm.slane %v1018, %v1239
        %v1397 = vsel %vm1241, %v1396, %v1395
        %v1398 = vperm.slane %v1019, %v1181
        %v1399 = vperm.slane %v1020, %v1183
        %v1400 = vsel %vm1185, %v1399, %v1398
        %v1401 = vperm.slane %v1021, %v1187
        %v1402 = vsel %vm1189, %v1401, %v1400
        %v1403 = vperm.slane %v1022, %v1191
        %v1404 = vsel %vm1193, %v1403, %v1402
        %v1405 = vperm.slane %v1023, %v1195
        %v1406 = vsel %vm1197, %v1405, %v1404
        %v1407 = vperm.slane %v1024, %v1199
        %v1408 = vsel %vm1201, %v1407, %v1406
        %v1409 = vperm.slane %v1025, %v1203
        %v1410 = vsel %vm1205, %v1409, %v1408
        %v1411 = vperm.slane %v1026, %v1207
        %v1412 = vsel %vm1209, %v1411, %v1410
        %v1413 = vperm.slane %v1027, %v1211
        %v1414 = vsel %vm1213, %v1413, %v1412
        %v1415 = vperm.slane %v1028, %v1215
        %v1416 = vsel %vm1217, %v1415, %v1414
        %v1417 = vperm.slane %v1029, %v1219
        %v1418 = vsel %vm1221, %v1417, %v1416
        %v1419 = vperm.slane %v1030, %v1223
        %v1420 = vsel %vm1225, %v1419, %v1418
        %v1421 = vperm.slane %v1031, %v1227
        %v1422 = vsel %vm1229, %v1421, %v1420
        %v1423 = vperm.slane %v1032, %v1231
        %v1424 = vsel %vm1233, %v1423, %v1422
        %v1425 = vperm.slane %v1033, %v1235
        %v1426 = vsel %vm1237, %v1425, %v1424
        %v1427 = vperm.slane %v1034, %v1239
        %v1428 = vsel %vm1241, %v1427, %v1426
        %v1429 = vperm.slane %v1035, %v1181
        %v1430 = vperm.slane %v1036, %v1183
        %v1431 = vsel %vm1185, %v1430, %v1429
        %v1432 = vperm.slane %v1037, %v1187
        %v1433 = vsel %vm1189, %v1432, %v1431
        %v1434 = vperm.slane %v1038, %v1191
        %v1435 = vsel %vm1193, %v1434, %v1433
        %v1436 = vperm.slane %v1039, %v1195
        %v1437 = vsel %vm1197, %v1436, %v1435
        %v1438 = vperm.slane %v1040, %v1199
        %v1439 = vsel %vm1201, %v1438, %v1437
        %v1440 = vperm.slane %v1041, %v1203
        %v1441 = vsel %vm1205, %v1440, %v1439
        %v1442 = vperm.slane %v1042, %v1207
        %v1443 = vsel %vm1209, %v1442, %v1441
        %v1444 = vperm.slane %v1043, %v1211
        %v1445 = vsel %vm1213, %v1444, %v1443
        %v1446 = vperm.slane %v1044, %v1215
        %v1447 = vsel %vm1217, %v1446, %v1445
        %v1448 = vperm.slane %v1045, %v1219
        %v1449 = vsel %vm1221, %v1448, %v1447
        %v1450 = vperm.slane %v1046, %v1223
        %v1451 = vsel %vm1225, %v1450, %v1449
        %v1452 = vperm.slane %v1047, %v1227
        %v1453 = vsel %vm1229, %v1452, %v1451
        %v1454 = vperm.slane %v1048, %v1231
        %v1455 = vsel %vm1233, %v1454, %v1453
        %v1456 = vperm.slane %v1049, %v1235
        %v1457 = vsel %vm1237, %v1456, %v1455
        %v1458 = vperm.slane %v1050, %v1239
        %v1459 = vsel %vm1241, %v1458, %v1457
        %vm1460 = vcmask 1041409
        %v1461 = vsel %vm1460, %v1273, %v1242
        %vm1462 = vcmask 1042434
        %v1463 = vsel %vm1462, %v1304, %v1461
        %vm1464 = vcmask 1043459
        %v1465 = vsel %vm1464, %v1335, %v1463
        %vm1466 = vcmask 1044484
        %v1467 = vsel %vm1466, %v1366, %v1465
        %vm1468 = vcmask 1045509
        %v1469 = vsel %vm1468, %v1397, %v1467
        %vm1470 = vcmask 1046534
        %v1471 = vsel %vm1470, %v1428, %v1469
        %vm1472 = vcmask 1047559
        %v1473 = vsel %vm1472, %v1459, %v1471
        %1475 = vmax.xlane.f32.xlu0 %v1473
        %v1476 = vpop.xlane.xlu0 %1475
        %v1477 = vmax.f32 %v1051, %v1476
        %v1478 = vsub.f32 %v1051, %v1477
        %v1479 = vmul.f32 %v1478, 1.442695
        %v1480 = vpow.pop %v1479
        %1482 = vset.pattern.permute.xlu0 0
        %1483 = vperm.xlu0 %1482, %v1477
        %v1484 = vpop.permute.xlu0 %1483
        %v1485 = vperm.slane %v1484, 0
        %v1486 = vperm.slane %v1484, 1
        %v1487 = vperm.slane %v1484, 2
        %v1488 = vperm.slane %v1484, 3
        %v1489 = vperm.slane %v1484, 4
        %v1490 = vperm.slane %v1484, 5
        %v1491 = vperm.slane %v1484, 6
        %v1492 = vperm.slane %v1484, 7
        %v1501 = vsub.f32 %v923, %v1485
        %v1502 = vsub.f32 %v924, %v1485
        %v1503 = vsub.f32 %v925, %v1485
        %v1504 = vsub.f32 %v926, %v1485
        %v1505 = vsub.f32 %v927, %v1485
        %v1506 = vsub.f32 %v928, %v1485
        %v1507 = vsub.f32 %v929, %v1485
        %v1508 = vsub.f32 %v930, %v1485
        %v1509 = vsub.f32 %v931, %v1485
        %v1510 = vsub.f32 %v932, %v1485
        %v1511 = vsub.f32 %v933, %v1485
        %v1512 = vsub.f32 %v934, %v1485
        %v1513 = vsub.f32 %v935, %v1485
        %v1514 = vsub.f32 %v936, %v1485
        %v1515 = vsub.f32 %v937, %v1485
        %v1516 = vsub.f32 %v938, %v1485
        %v1517 = vsub.f32 %v939, %v1486
        %v1518 = vsub.f32 %v940, %v1486
        %v1519 = vsub.f32 %v941, %v1486
        %v1520 = vsub.f32 %v942, %v1486
        %v1521 = vsub.f32 %v943, %v1486
        %v1522 = vsub.f32 %v944, %v1486
        %v1523 = vsub.f32 %v945, %v1486
        %v1524 = vsub.f32 %v946, %v1486
        %v1525 = vsub.f32 %v947, %v1486
        %v1526 = vsub.f32 %v948, %v1486
        %v1527 = vsub.f32 %v949, %v1486
        %v1528 = vsub.f32 %v950, %v1486
        %v1529 = vsub.f32 %v951, %v1486
        %v1530 = vsub.f32 %v952, %v1486
        %v1531 = vsub.f32 %v953, %v1486
        %v1532 = vsub.f32 %v954, %v1486
        %v1533 = vsub.f32 %v955, %v1487
        %v1534 = vsub.f32 %v956, %v1487
        %v1535 = vsub.f32 %v957, %v1487
        %v1536 = vsub.f32 %v958, %v1487
        %v1537 = vsub.f32 %v959, %v1487
        %v1538 = vsub.f32 %v960, %v1487
        %v1539 = vsub.f32 %v961, %v1487
        %v1540 = vsub.f32 %v962, %v1487
        %v1541 = vsub.f32 %v963, %v1487
        %v1542 = vsub.f32 %v964, %v1487
        %v1543 = vsub.f32 %v965, %v1487
        %v1544 = vsub.f32 %v966, %v1487
        %v1545 = vsub.f32 %v967, %v1487
        %v1546 = vsub.f32 %v968, %v1487
        %v1547 = vsub.f32 %v969, %v1487
        %v1548 = vsub.f32 %v970, %v1487
        %v1549 = vsub.f32 %v971, %v1488
        %v1550 = vsub.f32 %v972, %v1488
        %v1551 = vsub.f32 %v973, %v1488
        %v1552 = vsub.f32 %v974, %v1488
        %v1553 = vsub.f32 %v975, %v1488
        %v1554 = vsub.f32 %v976, %v1488
        %v1555 = vsub.f32 %v977, %v1488
        %v1556 = vsub.f32 %v978, %v1488
        %v1557 = vsub.f32 %v979, %v1488
        %v1558 = vsub.f32 %v980, %v1488
        %v1559 = vsub.f32 %v981, %v1488
        %v1560 = vsub.f32 %v982, %v1488
        %v1561 = vsub.f32 %v983, %v1488
        %v1562 = vsub.f32 %v984, %v1488
        %v1563 = vsub.f32 %v985, %v1488
        %v1564 = vsub.f32 %v986, %v1488
        %v1565 = vsub.f32 %v987, %v1489
        %v1566 = vsub.f32 %v988, %v1489
        %v1567 = vsub.f32 %v989, %v1489
        %v1568 = vsub.f32 %v990, %v1489
        %v1569 = vsub.f32 %v991, %v1489
        %v1570 = vsub.f32 %v992, %v1489
        %v1571 = vsub.f32 %v993, %v1489
        %v1572 = vsub.f32 %v994, %v1489
        %v1573 = vsub.f32 %v995, %v1489
        %v1574 = vsub.f32 %v996, %v1489
        %v1575 = vsub.f32 %v997, %v1489
        %v1576 = vsub.f32 %v998, %v1489
        %v1577 = vsub.f32 %v999, %v1489
        %v1578 = vsub.f32 %v1000, %v1489
        %v1579 = vsub.f32 %v1001, %v1489
        %v1580 = vsub.f32 %v1002, %v1489
        %v1581 = vsub.f32 %v1003, %v1490
        %v1582 = vsub.f32 %v1004, %v1490
        %v1583 = vsub.f32 %v1005, %v1490
        %v1584 = vsub.f32 %v1006, %v1490
        %v1585 = vsub.f32 %v1007, %v1490
        %v1586 = vsub.f32 %v1008, %v1490
        %v1587 = vsub.f32 %v1009, %v1490
        %v1588 = vsub.f32 %v1010, %v1490
        %v1589 = vsub.f32 %v1011, %v1490
        %v1590 = vsub.f32 %v1012, %v1490
        %v1591 = vsub.f32 %v1013, %v1490
        %v1592 = vsub.f32 %v1014, %v1490
        %v1593 = vsub.f32 %v1015, %v1490
        %v1594 = vsub.f32 %v1016, %v1490
        %v1595 = vsub.f32 %v1017, %v1490
        %v1596 = vsub.f32 %v1018, %v1490
        %v1597 = vsub.f32 %v1019, %v1491
        %v1598 = vsub.f32 %v1020, %v1491
        %v1599 = vsub.f32 %v1021, %v1491
        %v1600 = vsub.f32 %v1022, %v1491
        %v1601 = vsub.f32 %v1023, %v1491
        %v1602 = vsub.f32 %v1024, %v1491
        %v1603 = vsub.f32 %v1025, %v1491
        %v1604 = vsub.f32 %v1026, %v1491
        %v1605 = vsub.f32 %v1027, %v1491
        %v1606 = vsub.f32 %v1028, %v1491
        %v1607 = vsub.f32 %v1029, %v1491
        %v1608 = vsub.f32 %v1030, %v1491
        %v1609 = vsub.f32 %v1031, %v1491
        %v1610 = vsub.f32 %v1032, %v1491
        %v1611 = vsub.f32 %v1033, %v1491
        %v1612 = vsub.f32 %v1034, %v1491
        %v1613 = vsub.f32 %v1035, %v1492
        %v1614 = vsub.f32 %v1036, %v1492
        %v1615 = vsub.f32 %v1037, %v1492
        %v1616 = vsub.f32 %v1038, %v1492
        %v1617 = vsub.f32 %v1039, %v1492
        %v1618 = vsub.f32 %v1040, %v1492
        %v1619 = vsub.f32 %v1041, %v1492
        %v1620 = vsub.f32 %v1042, %v1492
        %v1621 = vsub.f32 %v1043, %v1492
        %v1622 = vsub.f32 %v1044, %v1492
        %v1623 = vsub.f32 %v1045, %v1492
        %v1624 = vsub.f32 %v1046, %v1492
        %v1625 = vsub.f32 %v1047, %v1492
        %v1626 = vsub.f32 %v1048, %v1492
        %v1627 = vsub.f32 %v1049, %v1492
        %v1628 = vsub.f32 %v1050, %v1492
        %v1629 = vmul.f32 %v1501, 1.442695
        %v1630 = vpow.pop %v1629
        %v1631 = vmul.f32 %v1502, 1.442695
        %v1632 = vpow.pop %v1631
        %v1633 = vmul.f32 %v1503, 1.442695
        %v1634 = vpow.pop %v1633
        %v1635 = vmul.f32 %v1504, 1.442695
        %v1636 = vpow.pop %v1635
        %v1637 = vmul.f32 %v1505, 1.442695
        %v1638 = vpow.pop %v1637
        %v1639 = vmul.f32 %v1506, 1.442695
        %v1640 = vpow.pop %v1639
        %v1641 = vmul.f32 %v1507, 1.442695
        %v1642 = vpow.pop %v1641
        %v1643 = vmul.f32 %v1508, 1.442695
        %v1644 = vpow.pop %v1643
        %v1645 = vmul.f32 %v1509, 1.442695
        %v1646 = vpow.pop %v1645
        %v1647 = vmul.f32 %v1510, 1.442695
        %v1648 = vpow.pop %v1647
        %v1649 = vmul.f32 %v1511, 1.442695
        %v1650 = vpow.pop %v1649
        %v1651 = vmul.f32 %v1512, 1.442695
        %v1652 = vpow.pop %v1651
        %v1653 = vmul.f32 %v1513, 1.442695
        %v1654 = vpow.pop %v1653
        %v1655 = vmul.f32 %v1514, 1.442695
        %v1656 = vpow.pop %v1655
        %v1657 = vmul.f32 %v1515, 1.442695
        %v1658 = vpow.pop %v1657
        %v1659 = vmul.f32 %v1516, 1.442695
        %v1660 = vpow.pop %v1659
        %v1661 = vmul.f32 %v1517, 1.442695
        %v1662 = vpow.pop %v1661
        %v1663 = vmul.f32 %v1518, 1.442695
        %v1664 = vpow.pop %v1663
        %v1665 = vmul.f32 %v1519, 1.442695
        %v1666 = vpow.pop %v1665
        %v1667 = vmul.f32 %v1520, 1.442695
        %v1668 = vpow.pop %v1667
        %v1669 = vmul.f32 %v1521, 1.442695
        %v1670 = vpow.pop %v1669
        %v1671 = vmul.f32 %v1522, 1.442695
        %v1672 = vpow.pop %v1671
        %v1673 = vmul.f32 %v1523, 1.442695
        %v1674 = vpow.pop %v1673
        %v1675 = vmul.f32 %v1524, 1.442695
        %v1676 = vpow.pop %v1675
        %v1677 = vmul.f32 %v1525, 1.442695
        %v1678 = vpow.pop %v1677
        %v1679 = vmul.f32 %v1526, 1.442695
        %v1680 = vpow.pop %v1679
        %v1681 = vmul.f32 %v1527, 1.442695
        %v1682 = vpow.pop %v1681
        %v1683 = vmul.f32 %v1528, 1.442695
        %v1684 = vpow.pop %v1683
        %v1685 = vmul.f32 %v1529, 1.442695
        %v1686 = vpow.pop %v1685
        %v1687 = vmul.f32 %v1530, 1.442695
        %v1688 = vpow.pop %v1687
        %v1689 = vmul.f32 %v1531, 1.442695
        %v1690 = vpow.pop %v1689
        %v1691 = vmul.f32 %v1532, 1.442695
        %v1692 = vpow.pop %v1691
        %v1693 = vmul.f32 %v1533, 1.442695
        %v1694 = vpow.pop %v1693
        %v1695 = vmul.f32 %v1534, 1.442695
        %v1696 = vpow.pop %v1695
        %v1697 = vmul.f32 %v1535, 1.442695
        %v1698 = vpow.pop %v1697
        %v1699 = vmul.f32 %v1536, 1.442695
        %v1700 = vpow.pop %v1699
        %v1701 = vmul.f32 %v1537, 1.442695
        %v1702 = vpow.pop %v1701
        %v1703 = vmul.f32 %v1538, 1.442695
        %v1704 = vpow.pop %v1703
        %v1705 = vmul.f32 %v1539, 1.442695
        %v1706 = vpow.pop %v1705
        %v1707 = vmul.f32 %v1540, 1.442695
        %v1708 = vpow.pop %v1707
        %v1709 = vmul.f32 %v1541, 1.442695
        %v1710 = vpow.pop %v1709
        %v1711 = vmul.f32 %v1542, 1.442695
        %v1712 = vpow.pop %v1711
        %v1713 = vmul.f32 %v1543, 1.442695
        %v1714 = vpow.pop %v1713
        %v1715 = vmul.f32 %v1544, 1.442695
        %v1716 = vpow.pop %v1715
        %v1717 = vmul.f32 %v1545, 1.442695
        %v1718 = vpow.pop %v1717
        %v1719 = vmul.f32 %v1546, 1.442695
        %v1720 = vpow.pop %v1719
        %v1721 = vmul.f32 %v1547, 1.442695
        %v1722 = vpow.pop %v1721
        %v1723 = vmul.f32 %v1548, 1.442695
        %v1724 = vpow.pop %v1723
        %v1725 = vmul.f32 %v1549, 1.442695
        %v1726 = vpow.pop %v1725
        %v1727 = vmul.f32 %v1550, 1.442695
        %v1728 = vpow.pop %v1727
        %v1729 = vmul.f32 %v1551, 1.442695
        %v1730 = vpow.pop %v1729
        %v1731 = vmul.f32 %v1552, 1.442695
        %v1732 = vpow.pop %v1731
        %v1733 = vmul.f32 %v1553, 1.442695
        %v1734 = vpow.pop %v1733
        %v1735 = vmul.f32 %v1554, 1.442695
        %v1736 = vpow.pop %v1735
        %v1737 = vmul.f32 %v1555, 1.442695
        %v1738 = vpow.pop %v1737
        %v1739 = vmul.f32 %v1556, 1.442695
        %v1740 = vpow.pop %v1739
        %v1741 = vmul.f32 %v1557, 1.442695
        %v1742 = vpow.pop %v1741
        %v1743 = vmul.f32 %v1558, 1.442695
        %v1744 = vpow.pop %v1743
        %v1745 = vmul.f32 %v1559, 1.442695
        %v1746 = vpow.pop %v1745
        %v1747 = vmul.f32 %v1560, 1.442695
        %v1748 = vpow.pop %v1747
        %v1749 = vmul.f32 %v1561, 1.442695
        %v1750 = vpow.pop %v1749
        %v1751 = vmul.f32 %v1562, 1.442695
        %v1752 = vpow.pop %v1751
        %v1753 = vmul.f32 %v1563, 1.442695
        %v1754 = vpow.pop %v1753
        %v1755 = vmul.f32 %v1564, 1.442695
        %v1756 = vpow.pop %v1755
        %v1757 = vmul.f32 %v1565, 1.442695
        %v1758 = vpow.pop %v1757
        %v1759 = vmul.f32 %v1566, 1.442695
        %v1760 = vpow.pop %v1759
        %v1761 = vmul.f32 %v1567, 1.442695
        %v1762 = vpow.pop %v1761
        %v1763 = vmul.f32 %v1568, 1.442695
        %v1764 = vpow.pop %v1763
        %v1765 = vmul.f32 %v1569, 1.442695
        %v1766 = vpow.pop %v1765
        %v1767 = vmul.f32 %v1570, 1.442695
        %v1768 = vpow.pop %v1767
        %v1769 = vmul.f32 %v1571, 1.442695
        %v1770 = vpow.pop %v1769
        %v1771 = vmul.f32 %v1572, 1.442695
        %v1772 = vpow.pop %v1771
        %v1773 = vmul.f32 %v1573, 1.442695
        %v1774 = vpow.pop %v1773
        %v1775 = vmul.f32 %v1574, 1.442695
        %v1776 = vpow.pop %v1775
        %v1777 = vmul.f32 %v1575, 1.442695
        %v1778 = vpow.pop %v1777
        %v1779 = vmul.f32 %v1576, 1.442695
        %v1780 = vpow.pop %v1779
        %v1781 = vmul.f32 %v1577, 1.442695
        %v1782 = vpow.pop %v1781
        %v1783 = vmul.f32 %v1578, 1.442695
        %v1784 = vpow.pop %v1783
        %v1785 = vmul.f32 %v1579, 1.442695
        %v1786 = vpow.pop %v1785
        %v1787 = vmul.f32 %v1580, 1.442695
        %v1788 = vpow.pop %v1787
        %v1789 = vmul.f32 %v1581, 1.442695
        %v1790 = vpow.pop %v1789
        %v1791 = vmul.f32 %v1582, 1.442695
        %v1792 = vpow.pop %v1791
        %v1793 = vmul.f32 %v1583, 1.442695
        %v1794 = vpow.pop %v1793
        %v1795 = vmul.f32 %v1584, 1.442695
        %v1796 = vpow.pop %v1795
        %v1797 = vmul.f32 %v1585, 1.442695
        %v1798 = vpow.pop %v1797
        %v1799 = vmul.f32 %v1586, 1.442695
        %v1800 = vpow.pop %v1799
        %v1801 = vmul.f32 %v1587, 1.442695
        %v1802 = vpow.pop %v1801
        %v1803 = vmul.f32 %v1588, 1.442695
        %v1804 = vpow.pop %v1803
        %v1805 = vmul.f32 %v1589, 1.442695
        %v1806 = vpow.pop %v1805
        %v1807 = vmul.f32 %v1590, 1.442695
        %v1808 = vpow.pop %v1807
        %v1809 = vmul.f32 %v1591, 1.442695
        %v1810 = vpow.pop %v1809
        %v1811 = vmul.f32 %v1592, 1.442695
        %v1812 = vpow.pop %v1811
        %v1813 = vmul.f32 %v1593, 1.442695
        %v1814 = vpow.pop %v1813
        %v1815 = vmul.f32 %v1594, 1.442695
        %v1816 = vpow.pop %v1815
        %v1817 = vmul.f32 %v1595, 1.442695
        %v1818 = vpow.pop %v1817
        %v1819 = vmul.f32 %v1596, 1.442695
        %v1820 = vpow.pop %v1819
        %v1821 = vmul.f32 %v1597, 1.442695
        %v1822 = vpow.pop %v1821
        %v1823 = vmul.f32 %v1598, 1.442695
        %v1824 = vpow.pop %v1823
        %v1825 = vmul.f32 %v1599, 1.442695
        %v1826 = vpow.pop %v1825
        %v1827 = vmul.f32 %v1600, 1.442695
        %v1828 = vpow.pop %v1827
        %v1829 = vmul.f32 %v1601, 1.442695
        %v1830 = vpow.pop %v1829
        %v1831 = vmul.f32 %v1602, 1.442695
        %v1832 = vpow.pop %v1831
        %v1833 = vmul.f32 %v1603, 1.442695
        %v1834 = vpow.pop %v1833
        %v1835 = vmul.f32 %v1604, 1.442695
        %v1836 = vpow.pop %v1835
        %v1837 = vmul.f32 %v1605, 1.442695
        %v1838 = vpow.pop %v1837
        %v1839 = vmul.f32 %v1606, 1.442695
        %v1840 = vpow.pop %v1839
        %v1841 = vmul.f32 %v1607, 1.442695
        %v1842 = vpow.pop %v1841
        %v1843 = vmul.f32 %v1608, 1.442695
        %v1844 = vpow.pop %v1843
        %v1845 = vmul.f32 %v1609, 1.442695
        %v1846 = vpow.pop %v1845
        %v1847 = vmul.f32 %v1610, 1.442695
        %v1848 = vpow.pop %v1847
        %v1849 = vmul.f32 %v1611, 1.442695
        %v1850 = vpow.pop %v1849
        %v1851 = vmul.f32 %v1612, 1.442695
        %v1852 = vpow.pop %v1851
        %v1853 = vmul.f32 %v1613, 1.442695
        %v1854 = vpow.pop %v1853
        %v1855 = vmul.f32 %v1614, 1.442695
        %v1856 = vpow.pop %v1855
        %v1857 = vmul.f32 %v1615, 1.442695
        %v1858 = vpow.pop %v1857
        %v1859 = vmul.f32 %v1616, 1.442695
        %v1860 = vpow.pop %v1859
        %v1861 = vmul.f32 %v1617, 1.442695
        %v1862 = vpow.pop %v1861
        %v1863 = vmul.f32 %v1618, 1.442695
        %v1864 = vpow.pop %v1863
        %v1865 = vmul.f32 %v1619, 1.442695
        %v1866 = vpow.pop %v1865
        %v1867 = vmul.f32 %v1620, 1.442695
        %v1868 = vpow.pop %v1867
        %v1869 = vmul.f32 %v1621, 1.442695
        %v1870 = vpow.pop %v1869
        %v1871 = vmul.f32 %v1622, 1.442695
        %v1872 = vpow.pop %v1871
        %v1873 = vmul.f32 %v1623, 1.442695
        %v1874 = vpow.pop %v1873
        %v1875 = vmul.f32 %v1624, 1.442695
        %v1876 = vpow.pop %v1875
        %v1877 = vmul.f32 %v1625, 1.442695
        %v1878 = vpow.pop %v1877
        %v1879 = vmul.f32 %v1626, 1.442695
        %v1880 = vpow.pop %v1879
        %v1881 = vmul.f32 %v1627, 1.442695
        %v1882 = vpow.pop %v1881
        %v1883 = vmul.f32 %v1628, 1.442695
        %v1884 = vpow.pop %v1883
        %vm1885 = vcmask 7168
        %1886 = vst.msk [vmem:[#allocation2] sm:$0xff] %vm1885, %v1477
        %v1887 = vld [vmem:[#allocation3] sm:$0xff]
        %v1888 = vmul.f32 %v1480, %v1887
        %2017 = vset.pattern.permute.xlu0 0
        %2018 = vperm.xlu0 %2017, %v1630
        %v2019 = vpop.permute.xlu0 %2018
        %2020 = vset.pattern.permute.xlu0 0
        %2021 = vperm.xlu0 %2020, %v1632
        %v2022 = vpop.permute.xlu0 %2021
        %2023 = vset.pattern.permute.xlu0 0
        %2024 = vperm.xlu0 %2023, %v1634
        %v2025 = vpop.permute.xlu0 %2024
        %2026 = vset.pattern.permute.xlu0 0
        %2027 = vperm.xlu0 %2026, %v1636
        %v2028 = vpop.permute.xlu0 %2027
        %2029 = vset.pattern.permute.xlu0 0
        %2030 = vperm.xlu0 %2029, %v1638
        %v2031 = vpop.permute.xlu0 %2030
        %2032 = vset.pattern.permute.xlu0 0
        %2033 = vperm.xlu0 %2032, %v1640
        %v2034 = vpop.permute.xlu0 %2033
        %2035 = vset.pattern.permute.xlu0 0
        %2036 = vperm.xlu0 %2035, %v1642
        %v2037 = vpop.permute.xlu0 %2036
        %2038 = vset.pattern.permute.xlu0 0
        %2039 = vperm.xlu0 %2038, %v1644
        %v2040 = vpop.permute.xlu0 %2039
        %2041 = vset.pattern.permute.xlu0 0
        %2042 = vperm.xlu0 %2041, %v1646
        %v2043 = vpop.permute.xlu0 %2042
        %2044 = vset.pattern.permute.xlu0 0
        %2045 = vperm.xlu0 %2044, %v1648
        %v2046 = vpop.permute.xlu0 %2045
        %2047 = vset.pattern.permute.xlu0 0
        %2048 = vperm.xlu0 %2047, %v1650
        %v2049 = vpop.permute.xlu0 %2048
        %2050 = vset.pattern.permute.xlu0 0
        %2051 = vperm.xlu0 %2050, %v1652
        %v2052 = vpop.permute.xlu0 %2051
        %2053 = vset.pattern.permute.xlu0 0
        %2054 = vperm.xlu0 %2053, %v1654
        %v2055 = vpop.permute.xlu0 %2054
        %2056 = vset.pattern.permute.xlu0 0
        %2057 = vperm.xlu0 %2056, %v1656
        %v2058 = vpop.permute.xlu0 %2057
        %2059 = vset.pattern.permute.xlu0 0
        %2060 = vperm.xlu0 %2059, %v1658
        %v2061 = vpop.permute.xlu0 %2060
        %2062 = vset.pattern.permute.xlu0 0
        %2063 = vperm.xlu0 %2062, %v1660
        %v2064 = vpop.permute.xlu0 %2063
        %2065 = vset.pattern.permute.xlu0 0
        %2066 = vperm.xlu0 %2065, %v1662
        %v2067 = vpop.permute.xlu0 %2066
        %2068 = vset.pattern.permute.xlu0 0
        %2069 = vperm.xlu0 %2068, %v1664
        %v2070 = vpop.permute.xlu0 %2069
        %2071 = vset.pattern.permute.xlu0 0
        %2072 = vperm.xlu0 %2071, %v1666
        %v2073 = vpop.permute.xlu0 %2072
        %2074 = vset.pattern.permute.xlu0 0
        %2075 = vperm.xlu0 %2074, %v1668
        %v2076 = vpop.permute.xlu0 %2075
        %2077 = vset.pattern.permute.xlu0 0
        %2078 = vperm.xlu0 %2077, %v1670
        %v2079 = vpop.permute.xlu0 %2078
        %2080 = vset.pattern.permute.xlu0 0
        %2081 = vperm.xlu0 %2080, %v1672
        %v2082 = vpop.permute.xlu0 %2081
        %2083 = vset.pattern.permute.xlu0 0
        %2084 = vperm.xlu0 %2083, %v1674
        %v2085 = vpop.permute.xlu0 %2084
        %2086 = vset.pattern.permute.xlu0 0
        %2087 = vperm.xlu0 %2086, %v1676
        %v2088 = vpop.permute.xlu0 %2087
        %2089 = vset.pattern.permute.xlu0 0
        %2090 = vperm.xlu0 %2089, %v1678
        %v2091 = vpop.permute.xlu0 %2090
        %2092 = vset.pattern.permute.xlu0 0
        %2093 = vperm.xlu0 %2092, %v1680
        %v2094 = vpop.permute.xlu0 %2093
        %2095 = vset.pattern.permute.xlu0 0
        %2096 = vperm.xlu0 %2095, %v1682
        %v2097 = vpop.permute.xlu0 %2096
        %2098 = vset.pattern.permute.xlu0 0
        %2099 = vperm.xlu0 %2098, %v1684
        %v2100 = vpop.permute.xlu0 %2099
        %2101 = vset.pattern.permute.xlu0 0
        %2102 = vperm.xlu0 %2101, %v1686
        %v2103 = vpop.permute.xlu0 %2102
        %2104 = vset.pattern.permute.xlu0 0
        %2105 = vperm.xlu0 %2104, %v1688
        %v2106 = vpop.permute.xlu0 %2105
        %2107 = vset.pattern.permute.xlu0 0
        %2108 = vperm.xlu0 %2107, %v1690
        %v2109 = vpop.permute.xlu0 %2108
        %2110 = vset.pattern.permute.xlu0 0
        %2111 = vperm.xlu0 %2110, %v1692
        %v2112 = vpop.permute.xlu0 %2111
        %2113 = vset.pattern.permute.xlu0 0
        %2114 = vperm.xlu0 %2113, %v1694
        %v2115 = vpop.permute.xlu0 %2114
        %2116 = vset.pattern.permute.xlu0 0
        %2117 = vperm.xlu0 %2116, %v1696
        %v2118 = vpop.permute.xlu0 %2117
        %2119 = vset.pattern.permute.xlu0 0
        %2120 = vperm.xlu0 %2119, %v1698
        %v2121 = vpop.permute.xlu0 %2120
        %2122 = vset.pattern.permute.xlu0 0
        %2123 = vperm.xlu0 %2122, %v1700
        %v2124 = vpop.permute.xlu0 %2123
        %2125 = vset.pattern.permute.xlu0 0
        %2126 = vperm.xlu0 %2125, %v1702
        %v2127 = vpop.permute.xlu0 %2126
        %2128 = vset.pattern.permute.xlu0 0
        %2129 = vperm.xlu0 %2128, %v1704
        %v2130 = vpop.permute.xlu0 %2129
        %2131 = vset.pattern.permute.xlu0 0
        %2132 = vperm.xlu0 %2131, %v1706
        %v2133 = vpop.permute.xlu0 %2132
        %2134 = vset.pattern.permute.xlu0 0
        %2135 = vperm.xlu0 %2134, %v1708
        %v2136 = vpop.permute.xlu0 %2135
        %2137 = vset.pattern.permute.xlu0 0
        %2138 = vperm.xlu0 %2137, %v1710
        %v2139 = vpop.permute.xlu0 %2138
        %2140 = vset.pattern.permute.xlu0 0
        %2141 = vperm.xlu0 %2140, %v1712
        %v2142 = vpop.permute.xlu0 %2141
        %2143 = vset.pattern.permute.xlu0 0
        %2144 = vperm.xlu0 %2143, %v1714
        %v2145 = vpop.permute.xlu0 %2144
        %2146 = vset.pattern.permute.xlu0 0
        %2147 = vperm.xlu0 %2146, %v1716
        %v2148 = vpop.permute.xlu0 %2147
        %2149 = vset.pattern.permute.xlu0 0
        %2150 = vperm.xlu0 %2149, %v1718
        %v2151 = vpop.permute.xlu0 %2150
        %2152 = vset.pattern.permute.xlu0 0
        %2153 = vperm.xlu0 %2152, %v1720
        %v2154 = vpop.permute.xlu0 %2153
        %2155 = vset.pattern.permute.xlu0 0
        %2156 = vperm.xlu0 %2155, %v1722
        %v2157 = vpop.permute.xlu0 %2156
        %2158 = vset.pattern.permute.xlu0 0
        %2159 = vperm.xlu0 %2158, %v1724
        %v2160 = vpop.permute.xlu0 %2159
        %2161 = vset.pattern.permute.xlu0 0
        %2162 = vperm.xlu0 %2161, %v1726
        %v2163 = vpop.permute.xlu0 %2162
        %2164 = vset.pattern.permute.xlu0 0
        %2165 = vperm.xlu0 %2164, %v1728
        %v2166 = vpop.permute.xlu0 %2165
        %2167 = vset.pattern.permute.xlu0 0
        %2168 = vperm.xlu0 %2167, %v1730
        %v2169 = vpop.permute.xlu0 %2168
        %2170 = vset.pattern.permute.xlu0 0
        %2171 = vperm.xlu0 %2170, %v1732
        %v2172 = vpop.permute.xlu0 %2171
        %2173 = vset.pattern.permute.xlu0 0
        %2174 = vperm.xlu0 %2173, %v1734
        %v2175 = vpop.permute.xlu0 %2174
        %2176 = vset.pattern.permute.xlu0 0
        %2177 = vperm.xlu0 %2176, %v1736
        %v2178 = vpop.permute.xlu0 %2177
        %2179 = vset.pattern.permute.xlu0 0
        %2180 = vperm.xlu0 %2179, %v1738
        %v2181 = vpop.permute.xlu0 %2180
        %2182 = vset.pattern.permute.xlu0 0
        %2183 = vperm.xlu0 %2182, %v1740
        %v2184 = vpop.permute.xlu0 %2183
        %2185 = vset.pattern.permute.xlu0 0
        %2186 = vperm.xlu0 %2185, %v1742
        %v2187 = vpop.permute.xlu0 %2186
        %2188 = vset.pattern.permute.xlu0 0
        %2189 = vperm.xlu0 %2188, %v1744
        %v2190 = vpop.permute.xlu0 %2189
        %2191 = vset.pattern.permute.xlu0 0
        %2192 = vperm.xlu0 %2191, %v1746
        %v2193 = vpop.permute.xlu0 %2192
        %2194 = vset.pattern.permute.xlu0 0
        %2195 = vperm.xlu0 %2194, %v1748
        %v2196 = vpop.permute.xlu0 %2195
        %2197 = vset.pattern.permute.xlu0 0
        %2198 = vperm.xlu0 %2197, %v1750
        %v2199 = vpop.permute.xlu0 %2198
        %2200 = vset.pattern.permute.xlu0 0
        %2201 = vperm.xlu0 %2200, %v1752
        %v2202 = vpop.permute.xlu0 %2201
        %2203 = vset.pattern.permute.xlu0 0
        %2204 = vperm.xlu0 %2203, %v1754
        %v2205 = vpop.permute.xlu0 %2204
        %2206 = vset.pattern.permute.xlu0 0
        %2207 = vperm.xlu0 %2206, %v1756
        %v2208 = vpop.permute.xlu0 %2207
        %2209 = vset.pattern.permute.xlu0 0
        %2210 = vperm.xlu0 %2209, %v1758
        %v2211 = vpop.permute.xlu0 %2210
        %2212 = vset.pattern.permute.xlu0 0
        %2213 = vperm.xlu0 %2212, %v1760
        %v2214 = vpop.permute.xlu0 %2213
        %2215 = vset.pattern.permute.xlu0 0
        %2216 = vperm.xlu0 %2215, %v1762
        %v2217 = vpop.permute.xlu0 %2216
        %2218 = vset.pattern.permute.xlu0 0
        %2219 = vperm.xlu0 %2218, %v1764
        %v2220 = vpop.permute.xlu0 %2219
        %2221 = vset.pattern.permute.xlu0 0
        %2222 = vperm.xlu0 %2221, %v1766
        %v2223 = vpop.permute.xlu0 %2222
        %2224 = vset.pattern.permute.xlu0 0
        %2225 = vperm.xlu0 %2224, %v1768
        %v2226 = vpop.permute.xlu0 %2225
        %2227 = vset.pattern.permute.xlu0 0
        %2228 = vperm.xlu0 %2227, %v1770
        %v2229 = vpop.permute.xlu0 %2228
        %2230 = vset.pattern.permute.xlu0 0
        %2231 = vperm.xlu0 %2230, %v1772
        %v2232 = vpop.permute.xlu0 %2231
        %2233 = vset.pattern.permute.xlu0 0
        %2234 = vperm.xlu0 %2233, %v1774
        %v2235 = vpop.permute.xlu0 %2234
        %2236 = vset.pattern.permute.xlu0 0
        %2237 = vperm.xlu0 %2236, %v1776
        %v2238 = vpop.permute.xlu0 %2237
        %2239 = vset.pattern.permute.xlu0 0
        %2240 = vperm.xlu0 %2239, %v1778
        %v2241 = vpop.permute.xlu0 %2240
        %2242 = vset.pattern.permute.xlu0 0
        %2243 = vperm.xlu0 %2242, %v1780
        %v2244 = vpop.permute.xlu0 %2243
        %2245 = vset.pattern.permute.xlu0 0
        %2246 = vperm.xlu0 %2245, %v1782
        %v2247 = vpop.permute.xlu0 %2246
        %2248 = vset.pattern.permute.xlu0 0
        %2249 = vperm.xlu0 %2248, %v1784
        %v2250 = vpop.permute.xlu0 %2249
        %2251 = vset.pattern.permute.xlu0 0
        %2252 = vperm.xlu0 %2251, %v1786
        %v2253 = vpop.permute.xlu0 %2252
        %2254 = vset.pattern.permute.xlu0 0
        %2255 = vperm.xlu0 %2254, %v1788
        %v2256 = vpop.permute.xlu0 %2255
        %2257 = vset.pattern.permute.xlu0 0
        %2258 = vperm.xlu0 %2257, %v1790
        %v2259 = vpop.permute.xlu0 %2258
        %2260 = vset.pattern.permute.xlu0 0
        %2261 = vperm.xlu0 %2260, %v1792
        %v2262 = vpop.permute.xlu0 %2261
        %2263 = vset.pattern.permute.xlu0 0
        %2264 = vperm.xlu0 %2263, %v1794
        %v2265 = vpop.permute.xlu0 %2264
        %2266 = vset.pattern.permute.xlu0 0
        %2267 = vperm.xlu0 %2266, %v1796
        %v2268 = vpop.permute.xlu0 %2267
        %2269 = vset.pattern.permute.xlu0 0
        %2270 = vperm.xlu0 %2269, %v1798
        %v2271 = vpop.permute.xlu0 %2270
        %2272 = vset.pattern.permute.xlu0 0
        %2273 = vperm.xlu0 %2272, %v1800
        %v2274 = vpop.permute.xlu0 %2273
        %2275 = vset.pattern.permute.xlu0 0
        %2276 = vperm.xlu0 %2275, %v1802
        %v2277 = vpop.permute.xlu0 %2276
        %2278 = vset.pattern.permute.xlu0 0
        %2279 = vperm.xlu0 %2278, %v1804
        %v2280 = vpop.permute.xlu0 %2279
        %2281 = vset.pattern.permute.xlu0 0
        %2282 = vperm.xlu0 %2281, %v1806
        %v2283 = vpop.permute.xlu0 %2282
        %2284 = vset.pattern.permute.xlu0 0
        %2285 = vperm.xlu0 %2284, %v1808
        %v2286 = vpop.permute.xlu0 %2285
        %2287 = vset.pattern.permute.xlu0 0
        %2288 = vperm.xlu0 %2287, %v1810
        %v2289 = vpop.permute.xlu0 %2288
        %2290 = vset.pattern.permute.xlu0 0
        %2291 = vperm.xlu0 %2290, %v1812
        %v2292 = vpop.permute.xlu0 %2291
        %2293 = vset.pattern.permute.xlu0 0
        %2294 = vperm.xlu0 %2293, %v1814
        %v2295 = vpop.permute.xlu0 %2294
        %2296 = vset.pattern.permute.xlu0 0
        %2297 = vperm.xlu0 %2296, %v1816
        %v2298 = vpop.permute.xlu0 %2297
        %2299 = vset.pattern.permute.xlu0 0
        %2300 = vperm.xlu0 %2299, %v1818
        %v2301 = vpop.permute.xlu0 %2300
        %2302 = vset.pattern.permute.xlu0 0
        %2303 = vperm.xlu0 %2302, %v1820
        %v2304 = vpop.permute.xlu0 %2303
        %2305 = vset.pattern.permute.xlu0 0
        %2306 = vperm.xlu0 %2305, %v1822
        %v2307 = vpop.permute.xlu0 %2306
        %2308 = vset.pattern.permute.xlu0 0
        %2309 = vperm.xlu0 %2308, %v1824
        %v2310 = vpop.permute.xlu0 %2309
        %2311 = vset.pattern.permute.xlu0 0
        %2312 = vperm.xlu0 %2311, %v1826
        %v2313 = vpop.permute.xlu0 %2312
        %2314 = vset.pattern.permute.xlu0 0
        %2315 = vperm.xlu0 %2314, %v1828
        %v2316 = vpop.permute.xlu0 %2315
        %2317 = vset.pattern.permute.xlu0 0
        %2318 = vperm.xlu0 %2317, %v1830
        %v2319 = vpop.permute.xlu0 %2318
        %2320 = vset.pattern.permute.xlu0 0
        %2321 = vperm.xlu0 %2320, %v1832
        %v2322 = vpop.permute.xlu0 %2321
        %2323 = vset.pattern.permute.xlu0 0
        %2324 = vperm.xlu0 %2323, %v1834
        %v2325 = vpop.permute.xlu0 %2324
        %2326 = vset.pattern.permute.xlu0 0
        %2327 = vperm.xlu0 %2326, %v1836
        %v2328 = vpop.permute.xlu0 %2327
        %2329 = vset.pattern.permute.xlu0 0
        %2330 = vperm.xlu0 %2329, %v1838
        %v2331 = vpop.permute.xlu0 %2330
        %2332 = vset.pattern.permute.xlu0 0
        %2333 = vperm.xlu0 %2332, %v1840
        %v2334 = vpop.permute.xlu0 %2333
        %2335 = vset.pattern.permute.xlu0 0
        %2336 = vperm.xlu0 %2335, %v1842
        %v2337 = vpop.permute.xlu0 %2336
        %2338 = vset.pattern.permute.xlu0 0
        %2339 = vperm.xlu0 %2338, %v1844
        %v2340 = vpop.permute.xlu0 %2339
        %2341 = vset.pattern.permute.xlu0 0
        %2342 = vperm.xlu0 %2341, %v1846
        %v2343 = vpop.permute.xlu0 %2342
        %2344 = vset.pattern.permute.xlu0 0
        %2345 = vperm.xlu0 %2344, %v1848
        %v2346 = vpop.permute.xlu0 %2345
        %2347 = vset.pattern.permute.xlu0 0
        %2348 = vperm.xlu0 %2347, %v1850
        %v2349 = vpop.permute.xlu0 %2348
        %2350 = vset.pattern.permute.xlu0 0
        %2351 = vperm.xlu0 %2350, %v1852
        %v2352 = vpop.permute.xlu0 %2351
        %2353 = vset.pattern.permute.xlu0 0
        %2354 = vperm.xlu0 %2353, %v1854
        %v2355 = vpop.permute.xlu0 %2354
        %2356 = vset.pattern.permute.xlu0 0
        %2357 = vperm.xlu0 %2356, %v1856
        %v2358 = vpop.permute.xlu0 %2357
        %2359 = vset.pattern.permute.xlu0 0
        %2360 = vperm.xlu0 %2359, %v1858
        %v2361 = vpop.permute.xlu0 %2360
        %2362 = vset.pattern.permute.xlu0 0
        %2363 = vperm.xlu0 %2362, %v1860
        %v2364 = vpop.permute.xlu0 %2363
        %2365 = vset.pattern.permute.xlu0 0
        %2366 = vperm.xlu0 %2365, %v1862
        %v2367 = vpop.permute.xlu0 %2366
        %2368 = vset.pattern.permute.xlu0 0
        %2369 = vperm.xlu0 %2368, %v1864
        %v2370 = vpop.permute.xlu0 %2369
        %2371 = vset.pattern.permute.xlu0 0
        %2372 = vperm.xlu0 %2371, %v1866
        %v2373 = vpop.permute.xlu0 %2372
        %2374 = vset.pattern.permute.xlu0 0
        %2375 = vperm.xlu0 %2374, %v1868
        %v2376 = vpop.permute.xlu0 %2375
        %2377 = vset.pattern.permute.xlu0 0
        %2378 = vperm.xlu0 %2377, %v1870
        %v2379 = vpop.permute.xlu0 %2378
        %2380 = vset.pattern.permute.xlu0 0
        %2381 = vperm.xlu0 %2380, %v1872
        %v2382 = vpop.permute.xlu0 %2381
        %2383 = vset.pattern.permute.xlu0 0
        %2384 = vperm.xlu0 %2383, %v1874
        %v2385 = vpop.permute.xlu0 %2384
        %2386 = vset.pattern.permute.xlu0 0
        %2387 = vperm.xlu0 %2386, %v1876
        %v2388 = vpop.permute.xlu0 %2387
        %2389 = vset.pattern.permute.xlu0 0
        %2390 = vperm.xlu0 %2389, %v1878
        %v2391 = vpop.permute.xlu0 %2390
        %2392 = vset.pattern.permute.xlu0 0
        %2393 = vperm.xlu0 %2392, %v1880
        %v2394 = vpop.permute.xlu0 %2393
        %2395 = vset.pattern.permute.xlu0 0
        %2396 = vperm.xlu0 %2395, %v1882
        %v2397 = vpop.permute.xlu0 %2396
        %2398 = vset.pattern.permute.xlu0 0
        %2399 = vperm.xlu0 %2398, %v1884
        %v2400 = vpop.permute.xlu0 %2399
        %v2401 = vperm.slane %v2019, %v1181
        %v2402 = vperm.slane %v2022, %v1183
        %v2403 = vsel %vm1185, %v2402, %v2401
        %v2404 = vperm.slane %v2025, %v1187
        %v2405 = vsel %vm1189, %v2404, %v2403
        %v2406 = vperm.slane %v2028, %v1191
        %v2407 = vsel %vm1193, %v2406, %v2405
        %v2408 = vperm.slane %v2031, %v1195
        %v2409 = vsel %vm1197, %v2408, %v2407
        %v2410 = vperm.slane %v2034, %v1199
        %v2411 = vsel %vm1201, %v2410, %v2409
        %v2412 = vperm.slane %v2037, %v1203
        %v2413 = vsel %vm1205, %v2412, %v2411
        %v2414 = vperm.slane %v2040, %v1207
        %v2415 = vsel %vm1209, %v2414, %v2413
        %v2416 = vperm.slane %v2043, %v1211
        %v2417 = vsel %vm1213, %v2416, %v2415
        %v2418 = vperm.slane %v2046, %v1215
        %v2419 = vsel %vm1217, %v2418, %v2417
        %v2420 = vperm.slane %v2049, %v1219
        %v2421 = vsel %vm1221, %v2420, %v2419
        %v2422 = vperm.slane %v2052, %v1223
        %v2423 = vsel %vm1225, %v2422, %v2421
        %v2424 = vperm.slane %v2055, %v1227
        %v2425 = vsel %vm1229, %v2424, %v2423
        %v2426 = vperm.slane %v2058, %v1231
        %v2427 = vsel %vm1233, %v2426, %v2425
        %v2428 = vperm.slane %v2061, %v1235
        %v2429 = vsel %vm1237, %v2428, %v2427
        %v2430 = vperm.slane %v2064, %v1239
        %v2431 = vsel %vm1241, %v2430, %v2429
        %v2432 = vperm.slane %v2067, %v1181
        %v2433 = vperm.slane %v2070, %v1183
        %v2434 = vsel %vm1185, %v2433, %v2432
        %v2435 = vperm.slane %v2073, %v1187
        %v2436 = vsel %vm1189, %v2435, %v2434
        %v2437 = vperm.slane %v2076, %v1191
        %v2438 = vsel %vm1193, %v2437, %v2436
        %v2439 = vperm.slane %v2079, %v1195
        %v2440 = vsel %vm1197, %v2439, %v2438
        %v2441 = vperm.slane %v2082, %v1199
        %v2442 = vsel %vm1201, %v2441, %v2440
        %v2443 = vperm.slane %v2085, %v1203
        %v2444 = vsel %vm1205, %v2443, %v2442
        %v2445 = vperm.slane %v2088, %v1207
        %v2446 = vsel %vm1209, %v2445, %v2444
        %v2447 = vperm.slane %v2091, %v1211
        %v2448 = vsel %vm1213, %v2447, %v2446
        %v2449 = vperm.slane %v2094, %v1215
        %v2450 = vsel %vm1217, %v2449, %v2448
        %v2451 = vperm.slane %v2097, %v1219
        %v2452 = vsel %vm1221, %v2451, %v2450
        %v2453 = vperm.slane %v2100, %v1223
        %v2454 = vsel %vm1225, %v2453, %v2452
        %v2455 = vperm.slane %v2103, %v1227
        %v2456 = vsel %vm1229, %v2455, %v2454
        %v2457 = vperm.slane %v2106, %v1231
        %v2458 = vsel %vm1233, %v2457, %v2456
        %v2459 = vperm.slane %v2109, %v1235
        %v2460 = vsel %vm1237, %v2459, %v2458
        %v2461 = vperm.slane %v2112, %v1239
        %v2462 = vsel %vm1241, %v2461, %v2460
        %v2463 = vperm.slane %v2115, %v1181
        %v2464 = vperm.slane %v2118, %v1183
        %v2465 = vsel %vm1185, %v2464, %v2463
        %v2466 = vperm.slane %v2121, %v1187
        %v2467 = vsel %vm1189, %v2466, %v2465
        %v2468 = vperm.slane %v2124, %v1191
        %v2469 = vsel %vm1193, %v2468, %v2467
        %v2470 = vperm.slane %v2127, %v1195
        %v2471 = vsel %vm1197, %v2470, %v2469
        %v2472 = vperm.slane %v2130, %v1199
        %v2473 = vsel %vm1201, %v2472, %v2471
        %v2474 = vperm.slane %v2133, %v1203
        %v2475 = vsel %vm1205, %v2474, %v2473
        %v2476 = vperm.slane %v2136, %v1207
        %v2477 = vsel %vm1209, %v2476, %v2475
        %v2478 = vperm.slane %v2139, %v1211
        %v2479 = vsel %vm1213, %v2478, %v2477
        %v2480 = vperm.slane %v2142, %v1215
        %v2481 = vsel %vm1217, %v2480, %v2479
        %v2482 = vperm.slane %v2145, %v1219
        %v2483 = vsel %vm1221, %v2482, %v2481
        %v2484 = vperm.slane %v2148, %v1223
        %v2485 = vsel %vm1225, %v2484, %v2483
        %v2486 = vperm.slane %v2151, %v1227
        %v2487 = vsel %vm1229, %v2486, %v2485
        %v2488 = vperm.slane %v2154, %v1231
        %v2489 = vsel %vm1233, %v2488, %v2487
        %v2490 = vperm.slane %v2157, %v1235
        %v2491 = vsel %vm1237, %v2490, %v2489
        %v2492 = vperm.slane %v2160, %v1239
        %v2493 = vsel %vm1241, %v2492, %v2491
        %v2494 = vperm.slane %v2163, %v1181
        %v2495 = vperm.slane %v2166, %v1183
        %v2496 = vsel %vm1185, %v2495, %v2494
        %v2497 = vperm.slane %v2169, %v1187
        %v2498 = vsel %vm1189, %v2497, %v2496
        %v2499 = vperm.slane %v2172, %v1191
        %v2500 = vsel %vm1193, %v2499, %v2498
        %v2501 = vperm.slane %v2175, %v1195
        %v2502 = vsel %vm1197, %v2501, %v2500
        %v2503 = vperm.slane %v2178, %v1199
        %v2504 = vsel %vm1201, %v2503, %v2502
        %v2505 = vperm.slane %v2181, %v1203
        %v2506 = vsel %vm1205, %v2505, %v2504
        %v2507 = vperm.slane %v2184, %v1207
        %v2508 = vsel %vm1209, %v2507, %v2506
        %v2509 = vperm.slane %v2187, %v1211
        %v2510 = vsel %vm1213, %v2509, %v2508
        %v2511 = vperm.slane %v2190, %v1215
        %v2512 = vsel %vm1217, %v2511, %v2510
        %v2513 = vperm.slane %v2193, %v1219
        %v2514 = vsel %vm1221, %v2513, %v2512
        %v2515 = vperm.slane %v2196, %v1223
        %v2516 = vsel %vm1225, %v2515, %v2514
        %v2517 = vperm.slane %v2199, %v1227
        %v2518 = vsel %vm1229, %v2517, %v2516
        %v2519 = vperm.slane %v2202, %v1231
        %v2520 = vsel %vm1233, %v2519, %v2518
        %v2521 = vperm.slane %v2205, %v1235
        %v2522 = vsel %vm1237, %v2521, %v2520
        %v2523 = vperm.slane %v2208, %v1239
        %v2524 = vsel %vm1241, %v2523, %v2522
        %v2525 = vperm.slane %v2211, %v1181
        %v2526 = vperm.slane %v2214, %v1183
        %v2527 = vsel %vm1185, %v2526, %v2525
        %v2528 = vperm.slane %v2217, %v1187
        %v2529 = vsel %vm1189, %v2528, %v2527
        %v2530 = vperm.slane %v2220, %v1191
        %v2531 = vsel %vm1193, %v2530, %v2529
        %v2532 = vperm.slane %v2223, %v1195
        %v2533 = vsel %vm1197, %v2532, %v2531
        %v2534 = vperm.slane %v2226, %v1199
        %v2535 = vsel %vm1201, %v2534, %v2533
        %v2536 = vperm.slane %v2229, %v1203
        %v2537 = vsel %vm1205, %v2536, %v2535
        %v2538 = vperm.slane %v2232, %v1207
        %v2539 = vsel %vm1209, %v2538, %v2537
        %v2540 = vperm.slane %v2235, %v1211
        %v2541 = vsel %vm1213, %v2540, %v2539
        %v2542 = vperm.slane %v2238, %v1215
        %v2543 = vsel %vm1217, %v2542, %v2541
        %v2544 = vperm.slane %v2241, %v1219
        %v2545 = vsel %vm1221, %v2544, %v2543
        %v2546 = vperm.slane %v2244, %v1223
        %v2547 = vsel %vm1225, %v2546, %v2545
        %v2548 = vperm.slane %v2247, %v1227
        %v2549 = vsel %vm1229, %v2548, %v2547
        %v2550 = vperm.slane %v2250, %v1231
        %v2551 = vsel %vm1233, %v2550, %v2549
        %v2552 = vperm.slane %v2253, %v1235
        %v2553 = vsel %vm1237, %v2552, %v2551
        %v2554 = vperm.slane %v2256, %v1239
        %v2555 = vsel %vm1241, %v2554, %v2553
        %v2556 = vperm.slane %v2259, %v1181
        %v2557 = vperm.slane %v2262, %v1183
        %v2558 = vsel %vm1185, %v2557, %v2556
        %v2559 = vperm.slane %v2265, %v1187
        %v2560 = vsel %vm1189, %v2559, %v2558
        %v2561 = vperm.slane %v2268, %v1191
        %v2562 = vsel %vm1193, %v2561, %v2560
        %v2563 = vperm.slane %v2271, %v1195
        %v2564 = vsel %vm1197, %v2563, %v2562
        %v2565 = vperm.slane %v2274, %v1199
        %v2566 = vsel %vm1201, %v2565, %v2564
        %v2567 = vperm.slane %v2277, %v1203
        %v2568 = vsel %vm1205, %v2567, %v2566
        %v2569 = vperm.slane %v2280, %v1207
        %v2570 = vsel %vm1209, %v2569, %v2568
        %v2571 = vperm.slane %v2283, %v1211
        %v2572 = vsel %vm1213, %v2571, %v2570
        %v2573 = vperm.slane %v2286, %v1215
        %v2574 = vsel %vm1217, %v2573, %v2572
        %v2575 = vperm.slane %v2289, %v1219
        %v2576 = vsel %vm1221, %v2575, %v2574
        %v2577 = vperm.slane %v2292, %v1223
        %v2578 = vsel %vm1225, %v2577, %v2576
        %v2579 = vperm.slane %v2295, %v1227
        %v2580 = vsel %vm1229, %v2579, %v2578
        %v2581 = vperm.slane %v2298, %v1231
        %v2582 = vsel %vm1233, %v2581, %v2580
        %v2583 = vperm.slane %v2301, %v1235
        %v2584 = vsel %vm1237, %v2583, %v2582
        %v2585 = vperm.slane %v2304, %v1239
        %v2586 = vsel %vm1241, %v2585, %v2584
        %v2587 = vperm.slane %v2307, %v1181
        %v2588 = vperm.slane %v2310, %v1183
        %v2589 = vsel %vm1185, %v2588, %v2587
        %v2590 = vperm.slane %v2313, %v1187
        %v2591 = vsel %vm1189, %v2590, %v2589
        %v2592 = vperm.slane %v2316, %v1191
        %v2593 = vsel %vm1193, %v2592, %v2591
        %v2594 = vperm.slane %v2319, %v1195
        %v2595 = vsel %vm1197, %v2594, %v2593
        %v2596 = vperm.slane %v2322, %v1199
        %v2597 = vsel %vm1201, %v2596, %v2595
        %v2598 = vperm.slane %v2325, %v1203
        %v2599 = vsel %vm1205, %v2598, %v2597
        %v2600 = vperm.slane %v2328, %v1207
        %v2601 = vsel %vm1209, %v2600, %v2599
        %v2602 = vperm.slane %v2331, %v1211
        %v2603 = vsel %vm1213, %v2602, %v2601
        %v2604 = vperm.slane %v2334, %v1215
        %v2605 = vsel %vm1217, %v2604, %v2603
        %v2606 = vperm.slane %v2337, %v1219
        %v2607 = vsel %vm1221, %v2606, %v2605
        %v2608 = vperm.slane %v2340, %v1223
        %v2609 = vsel %vm1225, %v2608, %v2607
        %v2610 = vperm.slane %v2343, %v1227
        %v2611 = vsel %vm1229, %v2610, %v2609
        %v2612 = vperm.slane %v2346, %v1231
        %v2613 = vsel %vm1233, %v2612, %v2611
        %v2614 = vperm.slane %v2349, %v1235
        %v2615 = vsel %vm1237, %v2614, %v2613
        %v2616 = vperm.slane %v2352, %v1239
        %v2617 = vsel %vm1241, %v2616, %v2615
        %v2618 = vperm.slane %v2355, %v1181
        %v2619 = vperm.slane %v2358, %v1183
        %v2620 = vsel %vm1185, %v2619, %v2618
        %v2621 = vperm.slane %v2361, %v1187
        %v2622 = vsel %vm1189, %v2621, %v2620
        %v2623 = vperm.slane %v2364, %v1191
        %v2624 = vsel %vm1193, %v2623, %v2622
        %v2625 = vperm.slane %v2367, %v1195
        %v2626 = vsel %vm1197, %v2625, %v2624
        %v2627 = vperm.slane %v2370, %v1199
        %v2628 = vsel %vm1201, %v2627, %v2626
        %v2629 = vperm.slane %v2373, %v1203
        %v2630 = vsel %vm1205, %v2629, %v2628
        %v2631 = vperm.slane %v2376, %v1207
        %v2632 = vsel %vm1209, %v2631, %v2630
        %v2633 = vperm.slane %v2379, %v1211
        %v2634 = vsel %vm1213, %v2633, %v2632
        %v2635 = vperm.slane %v2382, %v1215
        %v2636 = vsel %vm1217, %v2635, %v2634
        %v2637 = vperm.slane %v2385, %v1219
        %v2638 = vsel %vm1221, %v2637, %v2636
        %v2639 = vperm.slane %v2388, %v1223
        %v2640 = vsel %vm1225, %v2639, %v2638
        %v2641 = vperm.slane %v2391, %v1227
        %v2642 = vsel %vm1229, %v2641, %v2640
        %v2643 = vperm.slane %v2394, %v1231
        %v2644 = vsel %vm1233, %v2643, %v2642
        %v2645 = vperm.slane %v2397, %v1235
        %v2646 = vsel %vm1237, %v2645, %v2644
        %v2647 = vperm.slane %v2400, %v1239
        %v2648 = vsel %vm1241, %v2647, %v2646
        %v2649 = vsel %vm1460, %v2462, %v2431
        %v2650 = vsel %vm1462, %v2493, %v2649
        %v2651 = vsel %vm1464, %v2524, %v2650
        %v2652 = vsel %vm1466, %v2555, %v2651
        %v2653 = vsel %vm1468, %v2586, %v2652
        %v2654 = vsel %vm1470, %v2617, %v2653
        %v2655 = vsel %vm1472, %v2648, %v2654
        %2657 = vadd.xlane.f32.xlu0 %v2655
        %v2658 = vpop.xlane.xlu0 %2657
        %v2659 = vadd.f32 %v1888, %v2658
        %2660 = vst.msk [vmem:[#allocation3] sm:$0xff] %vm1885, %v2659
        %2662 = vmatpush.msra.mxu0 %v420
        %2663 = vmatpush.msra.mxu0 %v419
        %2664 = vmatpush.msra.mxu0 %v418
        %2665 = vmatpush.msra.mxu0 %v417
        %2666 = vmatpush.msra.mxu0 %v416
        %2667 = vmatpush.msra.mxu0 %v415
        %2668 = vmatpush.msra.mxu0 %v414
        %2669 = vmatpush.msra.mxu0 %v413
        %2670 = vmatpush.msra.mxu0 %v412
        %2671 = vmatpush.msra.mxu0 %v411
        %2672 = vmatpush.msra.mxu0 %v410
        %2673 = vmatpush.msra.mxu0 %v409
        %2674 = vmatpush.msra.mxu0 %v408
        %2675 = vmatpush.msra.mxu0 %v407
        %2676 = vmatpush.msra.mxu0 %v406
        %2677 = vmatpush.msra.mxu0 %v405
        %2678 = vmatmul.f32.gmra.mxu0 %v2431
        %v2679 = vpop.f32.mrf.mxu0
        %v2680 = vadd.f32 0.0, %v2679
        %2681 = vdwg.mxu0
        %2683 = vmatpush.msra.mxu0 %v436
        %2684 = vmatpush.msra.mxu0 %v435
        %2685 = vmatpush.msra.mxu0 %v434
        %2686 = vmatpush.msra.mxu0 %v433
        %2687 = vmatpush.msra.mxu0 %v432
        %2688 = vmatpush.msra.mxu0 %v431
        %2689 = vmatpush.msra.mxu0 %v430
        %2690 = vmatpush.msra.mxu0 %v429
        %2691 = vmatpush.msra.mxu0 %v428
        %2692 = vmatpush.msra.mxu0 %v427
        %2693 = vmatpush.msra.mxu0 %v426
        %2694 = vmatpush.msra.mxu0 %v425
        %2695 = vmatpush.msra.mxu0 %v424
        %2696 = vmatpush.msra.mxu0 %v423
        %2697 = vmatpush.msra.mxu0 %v422
        %2698 = vmatpush.msra.mxu0 %v421
        %2699 = vmatmul.f32.gmra.mxu0 %v2462
        %v2700 = vpop.f32.mrf.mxu0
        %v2701 = vadd.f32 0.0, %v2700
        %2702 = vdwg.mxu0
        %2704 = vmatpush.msra.mxu0 %v452
        %2705 = vmatpush.msra.mxu0 %v451
        %2706 = vmatpush.msra.mxu0 %v450
        %2707 = vmatpush.msra.mxu0 %v449
        %2708 = vmatpush.msra.mxu0 %v448
        %2709 = vmatpush.msra.mxu0 %v447
        %2710 = vmatpush.msra.mxu0 %v446
        %2711 = vmatpush.msra.mxu0 %v445
        %2712 = vmatpush.msra.mxu0 %v444
        %2713 = vmatpush.msra.mxu0 %v443
        %2714 = vmatpush.msra.mxu0 %v442
        %2715 = vmatpush.msra.mxu0 %v441
        %2716 = vmatpush.msra.mxu0 %v440
        %2717 = vmatpush.msra.mxu0 %v439
        %2718 = vmatpush.msra.mxu0 %v438
        %2719 = vmatpush.msra.mxu0 %v437
        %2720 = vmatmul.f32.gmra.mxu0 %v2493
        %v2721 = vpop.f32.mrf.mxu0
        %v2722 = vadd.f32 0.0, %v2721
        %2723 = vdwg.mxu0
        %2725 = vmatpush.msra.mxu0 %v468
        %2726 = vmatpush.msra.mxu0 %v467
        %2727 = vmatpush.msra.mxu0 %v466
        %2728 = vmatpush.msra.mxu0 %v465
        %2729 = vmatpush.msra.mxu0 %v464
        %2730 = vmatpush.msra.mxu0 %v463
        %2731 = vmatpush.msra.mxu0 %v462
        %2732 = vmatpush.msra.mxu0 %v461
        %2733 = vmatpush.msra.mxu0 %v460
        %2734 = vmatpush.msra.mxu0 %v459
        %2735 = vmatpush.msra.mxu0 %v458
        %2736 = vmatpush.msra.mxu0 %v457
        %2737 = vmatpush.msra.mxu0 %v456
        %2738 = vmatpush.msra.mxu0 %v455
        %2739 = vmatpush.msra.mxu0 %v454
        %2740 = vmatpush.msra.mxu0 %v453
        %2741 = vmatmul.f32.gmra.mxu0 %v2524
        %v2742 = vpop.f32.mrf.mxu0
        %v2743 = vadd.f32 0.0, %v2742
        %2744 = vdwg.mxu0
        %2746 = vmatpush.msra.mxu0 %v484
        %2747 = vmatpush.msra.mxu0 %v483
        %2748 = vmatpush.msra.mxu0 %v482
        %2749 = vmatpush.msra.mxu0 %v481
        %2750 = vmatpush.msra.mxu0 %v480
        %2751 = vmatpush.msra.mxu0 %v479
        %2752 = vmatpush.msra.mxu0 %v478
        %2753 = vmatpush.msra.mxu0 %v477
        %2754 = vmatpush.msra.mxu0 %v476
        %2755 = vmatpush.msra.mxu0 %v475
        %2756 = vmatpush.msra.mxu0 %v474
        %2757 = vmatpush.msra.mxu0 %v473
        %2758 = vmatpush.msra.mxu0 %v472
        %2759 = vmatpush.msra.mxu0 %v471
        %2760 = vmatpush.msra.mxu0 %v470
        %2761 = vmatpush.msra.mxu0 %v469
        %2762 = vmatmul.f32.gmra.mxu0 %v2555
        %v2763 = vpop.f32.mrf.mxu0
        %v2764 = vadd.f32 0.0, %v2763
        %2765 = vdwg.mxu0
        %2767 = vmatpush.msra.mxu0 %v500
        %2768 = vmatpush.msra.mxu0 %v499
        %2769 = vmatpush.msra.mxu0 %v498
        %2770 = vmatpush.msra.mxu0 %v497
        %2771 = vmatpush.msra.mxu0 %v496
        %2772 = vmatpush.msra.mxu0 %v495
        %2773 = vmatpush.msra.mxu0 %v494
        %2774 = vmatpush.msra.mxu0 %v493
        %2775 = vmatpush.msra.mxu0 %v492
        %2776 = vmatpush.msra.mxu0 %v491
        %2777 = vmatpush.msra.mxu0 %v490
        %2778 = vmatpush.msra.mxu0 %v489
        %2779 = vmatpush.msra.mxu0 %v488
        %2780 = vmatpush.msra.mxu0 %v487
        %2781 = vmatpush.msra.mxu0 %v486
        %2782 = vmatpush.msra.mxu0 %v485
        %2783 = vmatmul.f32.gmra.mxu0 %v2586
        %v2784 = vpop.f32.mrf.mxu0
        %v2785 = vadd.f32 0.0, %v2784
        %2786 = vdwg.mxu0
        %2788 = vmatpush.msra.mxu0 %v516
        %2789 = vmatpush.msra.mxu0 %v515
        %2790 = vmatpush.msra.mxu0 %v514
        %2791 = vmatpush.msra.mxu0 %v513
        %2792 = vmatpush.msra.mxu0 %v512
        %2793 = vmatpush.msra.mxu0 %v511
        %2794 = vmatpush.msra.mxu0 %v510
        %2795 = vmatpush.msra.mxu0 %v509
        %2796 = vmatpush.msra.mxu0 %v508
        %2797 = vmatpush.msra.mxu0 %v507
        %2798 = vmatpush.msra.mxu0 %v506
        %2799 = vmatpush.msra.mxu0 %v505
        %2800 = vmatpush.msra.mxu0 %v504
        %2801 = vmatpush.msra.mxu0 %v503
        %2802 = vmatpush.msra.mxu0 %v502
        %2803 = vmatpush.msra.mxu0 %v501
        %2804 = vmatmul.f32.gmra.mxu0 %v2617
        %v2805 = vpop.f32.mrf.mxu0
        %v2806 = vadd.f32 0.0, %v2805
        %2807 = vdwg.mxu0
        %2809 = vmatpush.msra.mxu0 %v532
        %2810 = vmatpush.msra.mxu0 %v531
        %2811 = vmatpush.msra.mxu0 %v530
        %2812 = vmatpush.msra.mxu0 %v529
        %2813 = vmatpush.msra.mxu0 %v528
        %2814 = vmatpush.msra.mxu0 %v527
        %2815 = vmatpush.msra.mxu0 %v526
        %2816 = vmatpush.msra.mxu0 %v525
        %2817 = vmatpush.msra.mxu0 %v524
        %2818 = vmatpush.msra.mxu0 %v523
        %2819 = vmatpush.msra.mxu0 %v522
        %2820 = vmatpush.msra.mxu0 %v521
        %2821 = vmatpush.msra.mxu0 %v520
        %2822 = vmatpush.msra.mxu0 %v519
        %2823 = vmatpush.msra.mxu0 %v518
        %2824 = vmatpush.msra.mxu0 %v517
        %2825 = vmatmul.f32.gmra.mxu0 %v2648
        %v2826 = vpop.f32.mrf.mxu0
        %v2827 = vadd.f32 0.0, %v2826
        %2828 = vdwg.mxu0
        %v2829 = vld [vmem:[#allocation4] sm:$0xff]
        %2831 = vset.pattern.permute.xlu0 0
        %2832 = vperm.xlu0 %2831, %v1480
        %v2833 = vpop.permute.xlu0 %2832
        %v2835 = vmul.f32 %v2833, %v2829
        %v2844 = vrot.slane %v2701, 7
        %v2845 = vsel %vm1460, %v2844, %v2680
        %v2846 = vrot.slane %v2722, 6
        %v2847 = vsel %vm1462, %v2846, %v2845
        %v2848 = vrot.slane %v2743, 5
        %v2849 = vsel %vm1464, %v2848, %v2847
        %v2850 = vrot.slane %v2764, 4
        %v2851 = vsel %vm1466, %v2850, %v2849
        %v2852 = vrot.slane %v2785, 3
        %v2853 = vsel %vm1468, %v2852, %v2851
        %v2854 = vrot.slane %v2806, 2
        %v2855 = vsel %vm1470, %v2854, %v2853
        %v2856 = vrot.slane %v2827, 1
        %v2857 = vsel %vm1472, %v2856, %v2855
        %v2859 = vadd.f32 %v2835, %v2857
        %2860 = vst [vmem:[#allocation4] sm:$0xff] %v2859
        %v2861 = vld [vmem:[#allocation5] sm:$0xff]
        %v2862 = vadd.f32 %v405, %v406
        %v2863 = vadd.f32 %v2862, %v407
        %v2864 = vadd.f32 %v2863, %v408
        %v2865 = vadd.f32 %v2864, %v409
        %v2866 = vadd.f32 %v2865, %v410
        %v2867 = vadd.f32 %v2866, %v411
        %v2868 = vadd.f32 %v2867, %v412
        %v2869 = vadd.f32 %v2868, %v413
        %v2870 = vadd.f32 %v2869, %v414
        %v2871 = vadd.f32 %v2870, %v415
        %v2872 = vadd.f32 %v2871, %v416
        %v2873 = vadd.f32 %v2872, %v417
        %v2874 = vadd.f32 %v2873, %v418
        %v2875 = vadd.f32 %v2874, %v419
        %v2876 = vadd.f32 %v2875, %v420
        %v2877 = vrot.slane %v2876, 4
        %v2878 = vadd.f32 %v2876, %v2877
        %v2879 = vrot.slane %v2878, 2
        %v2880 = vadd.f32 %v2878, %v2879
        %v2881 = vrot.slane %v2880, 1
        %v2882 = vadd.f32 %v2880, %v2881
        %v2883 = vadd.f32 %v421, %v422
        %v2884 = vadd.f32 %v2883, %v423
        %v2885 = vadd.f32 %v2884, %v424
        %v2886 = vadd.f32 %v2885, %v425
        %v2887 = vadd.f32 %v2886, %v426
        %v2888 = vadd.f32 %v2887, %v427
        %v2889 = vadd.f32 %v2888, %v428
        %v2890 = vadd.f32 %v2889, %v429
        %v2891 = vadd.f32 %v2890, %v430
        %v2892 = vadd.f32 %v2891, %v431
        %v2893 = vadd.f32 %v2892, %v432
        %v2894 = vadd.f32 %v2893, %v433
        %v2895 = vadd.f32 %v2894, %v434
        %v2896 = vadd.f32 %v2895, %v435
        %v2897 = vadd.f32 %v2896, %v436
        %v2898 = vrot.slane %v2897, 4
        %v2899 = vadd.f32 %v2897, %v2898
        %v2900 = vrot.slane %v2899, 2
        %v2901 = vadd.f32 %v2899, %v2900
        %v2902 = vrot.slane %v2901, 1
        %v2903 = vadd.f32 %v2901, %v2902
        %v2904 = vadd.f32 %v437, %v438
        %v2905 = vadd.f32 %v2904, %v439
        %v2906 = vadd.f32 %v2905, %v440
        %v2907 = vadd.f32 %v2906, %v441
        %v2908 = vadd.f32 %v2907, %v442
        %v2909 = vadd.f32 %v2908, %v443
        %v2910 = vadd.f32 %v2909, %v444
        %v2911 = vadd.f32 %v2910, %v445
        %v2912 = vadd.f32 %v2911, %v446
        %v2913 = vadd.f32 %v2912, %v447
        %v2914 = vadd.f32 %v2913, %v448
        %v2915 = vadd.f32 %v2914, %v449
        %v2916 = vadd.f32 %v2915, %v450
        %v2917 = vadd.f32 %v2916, %v451
        %v2918 = vadd.f32 %v2917, %v452
        %v2919 = vrot.slane %v2918, 4
        %v2920 = vadd.f32 %v2918, %v2919
        %v2921 = vrot.slane %v2920, 2
        %v2922 = vadd.f32 %v2920, %v2921
        %v2923 = vrot.slane %v2922, 1
        %v2924 = vadd.f32 %v2922, %v2923
        %v2925 = vadd.f32 %v453, %v454
        %v2926 = vadd.f32 %v2925, %v455
        %v2927 = vadd.f32 %v2926, %v456
        %v2928 = vadd.f32 %v2927, %v457
        %v2929 = vadd.f32 %v2928, %v458
        %v2930 = vadd.f32 %v2929, %v459
        %v2931 = vadd.f32 %v2930, %v460
        %v2932 = vadd.f32 %v2931, %v461
        %v2933 = vadd.f32 %v2932, %v462
        %v2934 = vadd.f32 %v2933, %v463
        %v2935 = vadd.f32 %v2934, %v464
        %v2936 = vadd.f32 %v2935, %v465
        %v2937 = vadd.f32 %v2936, %v466
        %v2938 = vadd.f32 %v2937, %v467
        %v2939 = vadd.f32 %v2938, %v468
        %v2940 = vrot.slane %v2939, 4
        %v2941 = vadd.f32 %v2939, %v2940
        %v2942 = vrot.slane %v2941, 2
        %v2943 = vadd.f32 %v2941, %v2942
        %v2944 = vrot.slane %v2943, 1
        %v2945 = vadd.f32 %v2943, %v2944
        %v2946 = vadd.f32 %v469, %v470
        %v2947 = vadd.f32 %v2946, %v471
        %v2948 = vadd.f32 %v2947, %v472
        %v2949 = vadd.f32 %v2948, %v473
        %v2950 = vadd.f32 %v2949, %v474
        %v2951 = vadd.f32 %v2950, %v475
        %v2952 = vadd.f32 %v2951, %v476
        %v2953 = vadd.f32 %v2952, %v477
        %v2954 = vadd.f32 %v2953, %v478
        %v2955 = vadd.f32 %v2954, %v479
        %v2956 = vadd.f32 %v2955, %v480
        %v2957 = vadd.f32 %v2956, %v481
        %v2958 = vadd.f32 %v2957, %v482
        %v2959 = vadd.f32 %v2958, %v483
        %v2960 = vadd.f32 %v2959, %v484
        %v2961 = vrot.slane %v2960, 4
        %v2962 = vadd.f32 %v2960, %v2961
        %v2963 = vrot.slane %v2962, 2
        %v2964 = vadd.f32 %v2962, %v2963
        %v2965 = vrot.slane %v2964, 1
        %v2966 = vadd.f32 %v2964, %v2965
        %v2967 = vadd.f32 %v485, %v486
        %v2968 = vadd.f32 %v2967, %v487
        %v2969 = vadd.f32 %v2968, %v488
        %v2970 = vadd.f32 %v2969, %v489
        %v2971 = vadd.f32 %v2970, %v490
        %v2972 = vadd.f32 %v2971, %v491
        %v2973 = vadd.f32 %v2972, %v492
        %v2974 = vadd.f32 %v2973, %v493
        %v2975 = vadd.f32 %v2974, %v494
        %v2976 = vadd.f32 %v2975, %v495
        %v2977 = vadd.f32 %v2976, %v496
        %v2978 = vadd.f32 %v2977, %v497
        %v2979 = vadd.f32 %v2978, %v498
        %v2980 = vadd.f32 %v2979, %v499
        %v2981 = vadd.f32 %v2980, %v500
        %v2982 = vrot.slane %v2981, 4
        %v2983 = vadd.f32 %v2981, %v2982
        %v2984 = vrot.slane %v2983, 2
        %v2985 = vadd.f32 %v2983, %v2984
        %v2986 = vrot.slane %v2985, 1
        %v2987 = vadd.f32 %v2985, %v2986
        %v2988 = vadd.f32 %v501, %v502
        %v2989 = vadd.f32 %v2988, %v503
        %v2990 = vadd.f32 %v2989, %v504
        %v2991 = vadd.f32 %v2990, %v505
        %v2992 = vadd.f32 %v2991, %v506
        %v2993 = vadd.f32 %v2992, %v507
        %v2994 = vadd.f32 %v2993, %v508
        %v2995 = vadd.f32 %v2994, %v509
        %v2996 = vadd.f32 %v2995, %v510
        %v2997 = vadd.f32 %v2996, %v511
        %v2998 = vadd.f32 %v2997, %v512
        %v2999 = vadd.f32 %v2998, %v513
        %v3000 = vadd.f32 %v2999, %v514
        %v3001 = vadd.f32 %v3000, %v515
        %v3002 = vadd.f32 %v3001, %v516
        %v3003 = vrot.slane %v3002, 4
        %v3004 = vadd.f32 %v3002, %v3003
        %v3005 = vrot.slane %v3004, 2
        %v3006 = vadd.f32 %v3004, %v3005
        %v3007 = vrot.slane %v3006, 1
        %v3008 = vadd.f32 %v3006, %v3007
        %v3009 = vadd.f32 %v517, %v518
        %v3010 = vadd.f32 %v3009, %v519
        %v3011 = vadd.f32 %v3010, %v520
        %v3012 = vadd.f32 %v3011, %v521
        %v3013 = vadd.f32 %v3012, %v522
        %v3014 = vadd.f32 %v3013, %v523
        %v3015 = vadd.f32 %v3014, %v524
        %v3016 = vadd.f32 %v3015, %v525
        %v3017 = vadd.f32 %v3016, %v526
        %v3018 = vadd.f32 %v3017, %v527
        %v3019 = vadd.f32 %v3018, %v528
        %v3020 = vadd.f32 %v3019, %v529
        %v3021 = vadd.f32 %v3020, %v530
        %v3022 = vadd.f32 %v3021, %v531
        %v3023 = vadd.f32 %v3022, %v532
        %v3024 = vrot.slane %v3023, 4
        %v3025 = vadd.f32 %v3023, %v3024
        %v3026 = vrot.slane %v3025, 2
        %v3027 = vadd.f32 %v3025, %v3026
        %v3028 = vrot.slane %v3027, 1
        %v3029 = vadd.f32 %v3027, %v3028
        %v3038 = vsel %vm1460, %v2903, %v2882
        %v3039 = vsel %vm1462, %v2924, %v3038
        %v3040 = vsel %vm1464, %v2945, %v3039
        %v3041 = vsel %vm1466, %v2966, %v3040
        %v3042 = vsel %vm1468, %v2987, %v3041
        %v3043 = vsel %vm1470, %v3008, %v3042
        %v3044 = vsel %vm1472, %v3029, %v3043
        %v3046 = vadd.f32 %v2861, %v3044
        %3047 = vst [vmem:[#allocation5] sm:$0xff] %v3046
        %v3048 = vld [vmem:[%s384] sm:$0x3]
        %v3049 = vld [vmem:[%s384 + $0x2] sm:$0x3]
        %v3050 = vld [vmem:[%s384 + $0x4] sm:$0x3]
        %v3051 = vld [vmem:[%s384 + $0x6] sm:$0x3]
        %v3052 = vld [vmem:[%s384 + $0x8] sm:$0x3]
        %v3053 = vld [vmem:[%s384 + $0xa] sm:$0x3]
        %v3054 = vld [vmem:[%s384 + $0xc] sm:$0x3]
        %v3055 = vld [vmem:[%s384 + $0xe] sm:$0x3]
        %v3056 = vrot.slane %v1480, 1
        %v3057 = vrot.slane %v1480, 2
        %v3058 = vrot.slane %v1480, 3
        %v3059 = vrot.slane %v1480, 4
        %v3060 = vrot.slane %v1480, 5
        %v3061 = vrot.slane %v1480, 6
        %v3062 = vrot.slane %v1480, 7
        %v3063 = vperm.slane %v1480, 0
        %v3064 = vperm.slane %v3056, 0
        %v3065 = vperm.slane %v3057, 0
        %v3066 = vperm.slane %v3058, 0
        %v3067 = vperm.slane %v3059, 0
        %v3068 = vperm.slane %v3060, 0
        %v3069 = vperm.slane %v3061, 0
        %v3070 = vperm.slane %v3062, 0
        %3071 = vset.pattern.permute.xlu0 0
        %3072 = vperm.xlu0 %3071, %v3063
        %v3073 = vpop.permute.xlu0 %3072
        %3075 = vset.pattern.permute.xlu0 0
        %3076 = vperm.xlu0 %3075, %v3064
        %v3077 = vpop.permute.xlu0 %3076
        %3079 = vset.pattern.permute.xlu0 0
        %3080 = vperm.xlu0 %3079, %v3065
        %v3081 = vpop.permute.xlu0 %3080
        %3083 = vset.pattern.permute.xlu0 0
        %3084 = vperm.xlu0 %3083, %v3066
        %v3085 = vpop.permute.xlu0 %3084
        %3087 = vset.pattern.permute.xlu0 0
        %3088 = vperm.xlu0 %3087, %v3067
        %v3089 = vpop.permute.xlu0 %3088
        %3091 = vset.pattern.permute.xlu0 0
        %3092 = vperm.xlu0 %3091, %v3068
        %v3093 = vpop.permute.xlu0 %3092
        %3095 = vset.pattern.permute.xlu0 0
        %3096 = vperm.xlu0 %3095, %v3069
        %v3097 = vpop.permute.xlu0 %3096
        %3099 = vset.pattern.permute.xlu0 0
        %3100 = vperm.xlu0 %3099, %v3070
        %v3101 = vpop.permute.xlu0 %3100
        %v3103 = vmul.f32 %v3048, %v3073
        %v3104 = vmul.f32 %v3049, %v3077
        %v3105 = vmul.f32 %v3050, %v3081
        %v3106 = vmul.f32 %v3051, %v3085
        %v3107 = vmul.f32 %v3052, %v3089
        %v3108 = vmul.f32 %v3053, %v3093
        %v3109 = vmul.f32 %v3054, %v3097
        %v3110 = vmul.f32 %v3055, %v3101
        %3111 = vst [vmem:[%s384] sm:$0x3] %v3103
        %3112 = vst [vmem:[%s384 + $0x2] sm:$0x3] %v3104
        %3113 = vst [vmem:[%s384 + $0x4] sm:$0x3] %v3105
        %3114 = vst [vmem:[%s384 + $0x6] sm:$0x3] %v3106
        %3115 = vst [vmem:[%s384 + $0x8] sm:$0x3] %v3107
        %3116 = vst [vmem:[%s384 + $0xa] sm:$0x3] %v3108
        %3117 = vst [vmem:[%s384 + $0xc] sm:$0x3] %v3109
        %3118 = vst [vmem:[%s384 + $0xe] sm:$0x3] %v3110
        %s3119 = scalar_lea.vmem %s384, %s35 [#allocation17]
        %3120 = vst [vmem:[%s3119] sm:$0x1] %v2431
        %3121 = vst [vmem:[%s3119 + $0x2] sm:$0x1] %v2462
        %3122 = vst [vmem:[%s3119 + $0x4] sm:$0x1] %v2493
        %3123 = vst [vmem:[%s3119 + $0x6] sm:$0x1] %v2524
        %3124 = vst [vmem:[%s3119 + $0x8] sm:$0x1] %v2555
        %3125 = vst [vmem:[%s3119 + $0xa] sm:$0x1] %v2586
        %3126 = vst [vmem:[%s3119 + $0xc] sm:$0x1] %v2617
        %3127 = vst [vmem:[%s3119 + $0xe] sm:$0x1] %v2648
        %p3128 = scmp.eq.s32.totalorder %s35, 1
        // Predicated region
        $region65: #{tpu_custom_call.1} parent=39 // pred_check
          %p3129 = pneg %p3128
        $region66: #{tpu_custom_call.1} parent=39 // pred_check_branch
          %3131 = sbr.rel (%p3129) target = $region68
        $region67: #{tpu_custom_call.1} parent=39 // pred_region
          %v3132 = vld [vmem:[#allocation3] sm:$0xff]
          %v3133 = vrcp.pop %v3132
          %v3134 = vmul.f32 %v3132, %v3133
          %v3135 = vsub.f32 1.0, %v3134
          %v3136 = vmul.f32 %v3133, %v3135
          %v3137 = vadd.f32 %v3133, %v3136
          %vm3138 = vweird.f32 %v3132
          %vm3139 = vweird.f32 %v3133
          %vm3140 = vmor %vm3138, %vm3139
          %v3141 = vsel %vm3140, %v3133, %v3137
          %v3142 = vand.u32 2147483647, %v3132
          %vm3143 = vcmp.eq.f32.partialorder %v3142, 8.507059e+37
          %v3144 = vand.u32 %v3132, 2147483648
          %v3145 = vor.u32 1.1754944e-38, %v3144
          %v3146 = vsel %vm3143, %v3145, %v3141
          %v3147 = vld [vmem:[%s384] sm:$0x3]
          %v3148 = vld [vmem:[%s384 + $0x2] sm:$0x3]
          %v3149 = vld [vmem:[%s384 + $0x4] sm:$0x3]
          %v3150 = vld [vmem:[%s384 + $0x6] sm:$0x3]
          %v3151 = vld [vmem:[%s384 + $0x8] sm:$0x3]
          %v3152 = vld [vmem:[%s384 + $0xa] sm:$0x3]
          %v3153 = vld [vmem:[%s384 + $0xc] sm:$0x3]
          %v3154 = vld [vmem:[%s384 + $0xe] sm:$0x3]
          %v3156 = vrot.slane %v3146, 1
          %v3157 = vrot.slane %v3146, 2
          %v3158 = vrot.slane %v3146, 3
          %v3159 = vrot.slane %v3146, 4
          %v3160 = vrot.slane %v3146, 5
          %v3161 = vrot.slane %v3146, 6
          %v3162 = vrot.slane %v3146, 7
          %v3163 = vperm.slane %v3146, 0
          %v3164 = vperm.slane %v3156, 0
          %v3165 = vperm.slane %v3157, 0
          %v3166 = vperm.slane %v3158, 0
          %v3167 = vperm.slane %v3159, 0
          %v3168 = vperm.slane %v3160, 0
          %v3169 = vperm.slane %v3161, 0
          %v3170 = vperm.slane %v3162, 0
          %3171 = vset.pattern.permute.xlu0 0
          %3172 = vperm.xlu0 %3171, %v3163
          %v3173 = vpop.permute.xlu0 %3172
          %3175 = vset.pattern.permute.xlu0 0
          %3176 = vperm.xlu0 %3175, %v3164
          %v3177 = vpop.permute.xlu0 %3176
          %3179 = vset.pattern.permute.xlu0 0
          %3180 = vperm.xlu0 %3179, %v3165
          %v3181 = vpop.permute.xlu0 %3180
          %3183 = vset.pattern.permute.xlu0 0
          %3184 = vperm.xlu0 %3183, %v3166
          %v3185 = vpop.permute.xlu0 %3184
          %3187 = vset.pattern.permute.xlu0 0
          %3188 = vperm.xlu0 %3187, %v3167
          %v3189 = vpop.permute.xlu0 %3188
          %3191 = vset.pattern.permute.xlu0 0
          %3192 = vperm.xlu0 %3191, %v3168
          %v3193 = vpop.permute.xlu0 %3192
          %3195 = vset.pattern.permute.xlu0 0
          %3196 = vperm.xlu0 %3195, %v3169
          %v3197 = vpop.permute.xlu0 %3196
          %3199 = vset.pattern.permute.xlu0 0
          %3200 = vperm.xlu0 %3199, %v3170
          %v3201 = vpop.permute.xlu0 %3200
          %v3203 = vmul.f32 %v3147, %v3173
          %v3204 = vmul.f32 %v3148, %v3177
          %v3205 = vmul.f32 %v3149, %v3181
          %v3206 = vmul.f32 %v3150, %v3185
          %v3207 = vmul.f32 %v3151, %v3189
          %v3208 = vmul.f32 %v3152, %v3193
          %v3209 = vmul.f32 %v3153, %v3197
          %v3210 = vmul.f32 %v3154, %v3201
          %3211 = vst [vmem:[%s384] sm:$0x3] %v3203
          %3212 = vst [vmem:[%s384 + $0x2] sm:$0x3] %v3204
          %3213 = vst [vmem:[%s384 + $0x4] sm:$0x3] %v3205
          %3214 = vst [vmem:[%s384 + $0x6] sm:$0x3] %v3206
          %3215 = vst [vmem:[%s384 + $0x8] sm:$0x3] %v3207
          %3216 = vst [vmem:[%s384 + $0xa] sm:$0x3] %v3208
          %3217 = vst [vmem:[%s384 + $0xc] sm:$0x3] %v3209
          %3218 = vst [vmem:[%s384 + $0xe] sm:$0x3] %v3210
          %v3219 = vld [vmem:[#allocation4] sm:$0xff]
          %3220 = vset.pattern.permute.xlu0 0
          %3221 = vperm.xlu0 %3220, %v3146
          %v3222 = vpop.permute.xlu0 %3221
          %v3224 = vmul.f32 %v3219, %v3222
          %v3225 = vld [vmem:[#allocation12] sm:$0xff]
          %v3226 = vld [vmem:[#allocation12 + $0x8] sm:$0xff]
          %v3227 = vld [vmem:[#allocation12 + $0x10] sm:$0xff]
          %v3228 = vld [vmem:[#allocation12 + $0x18] sm:$0xff]
          %v3229 = vld [vmem:[#allocation12 + $0x20] sm:$0xff]
          %v3230 = vld [vmem:[#allocation12 + $0x28] sm:$0xff]
          %v3231 = vld [vmem:[#allocation12 + $0x30] sm:$0xff]
          %v3232 = vld [vmem:[#allocation12 + $0x38] sm:$0xff]
          %v3233 = vld [vmem:[#allocation12 + $0x40] sm:$0xff]
          %v3234 = vld [vmem:[#allocation12 + $0x48] sm:$0xff]
          %v3235 = vld [vmem:[#allocation12 + $0x50] sm:$0xff]
          %v3236 = vld [vmem:[#allocation12 + $0x58] sm:$0xff]
          %v3237 = vld [vmem:[#allocation12 + $0x60] sm:$0xff]
          %v3238 = vld [vmem:[#allocation12 + $0x68] sm:$0xff]
          %v3239 = vld [vmem:[#allocation12 + $0x70] sm:$0xff]
          %v3240 = vld [vmem:[#allocation12 + $0x78] sm:$0xff]
          %v3241 = vld [vmem:[#allocation13] sm:$0x1]
          %v3243 = vperm.slane %v3241, 0
          %3245 = vmatpush.xpose.msra.mxu0 %v3240
          %3246 = vmatpush.xpose.msra.mxu0 %v3239
          %3247 = vmatpush.xpose.msra.mxu0 %v3238
          %3248 = vmatpush.xpose.msra.mxu0 %v3237
          %3249 = vmatpush.xpose.msra.mxu0 %v3236
          %3250 = vmatpush.xpose.msra.mxu0 %v3235
          %3251 = vmatpush.xpose.msra.mxu0 %v3234
          %3252 = vmatpush.xpose.msra.mxu0 %v3233
          %3253 = vmatpush.xpose.msra.mxu0 %v3232
          %3254 = vmatpush.xpose.msra.mxu0 %v3231
          %3255 = vmatpush.xpose.msra.mxu0 %v3230
          %3256 = vmatpush.xpose.msra.mxu0 %v3229
          %3257 = vmatpush.xpose.msra.mxu0 %v3228
          %3258 = vmatpush.xpose.msra.mxu0 %v3227
          %3259 = vmatpush.xpose.msra.mxu0 %v3226
          %3260 = vmatpush.xpose.msra.mxu0 %v3225
          %3261 = vmatmul.f32.gmra.mxu0 %v3224
          %v3262 = vpop.f32.mrf.mxu0
          %v3263 = vadd.f32 %v3243, %v3262
          %3264 = vdwg.mxu0
          %v3265 = vld [vmem:[#allocation5] sm:$0xff]
          %v3266 = vmul.f32 %v3265, 0.00390625
          %s3267 = sld [smem:[#allocation15]]
          %v3268 = vmul.f32 %v3263, %v3263
          %3269 = vadd.xlane.f32.xlu0 %v3268
          %v3270 = vpop.xlane.xlu0 %3269
          %v3271 = vmax.f32 %v3270, 1e-24
          %v3272 = vrsqrt.pop %v3271
          %v3273 = vmul.f32 %v3272, %v3271
          %v3274 = vmul.f32 %v3273, %v3272
          %v3275 = vmul.f32 0.5, %v3274
          %v3276 = vsub.f32 1.5, %v3275
          %v3277 = vmul.f32 %v3272, %v3276
          %vm3278 = vweird.f32 %v3271
          %vm3279 = vweird.f32 %v3272
          %vm3280 = vmor %vm3278, %vm3279
          %v3281 = vsel %vm3280, %v3272, %v3277
          %v3282 = vmul.f32 %v3263, %v3281
          %v3283 = vstv %s3267
          %v3284 = vmul.f32 %v3283, %v3282
          %s3285 = ssub.f32 1.0, %s3267
          %v3286 = vmul.f32 %v3266, %v3266
          %3287 = vadd.xlane.f32.xlu0 %v3286
          %v3288 = vpop.xlane.xlu0 %3287
          %v3289 = vmax.f32 %v3288, 1e-24
          %v3290 = vrsqrt.pop %v3289
          %v3291 = vmul.f32 %v3290, %v3289
          %v3292 = vmul.f32 %v3291, %v3290
          %v3293 = vmul.f32 0.5, %v3292
          %v3294 = vsub.f32 1.5, %v3293
          %v3295 = vmul.f32 %v3290, %v3294
          %vm3296 = vweird.f32 %v3289
          %vm3297 = vweird.f32 %v3290
          %vm3298 = vmor %vm3296, %vm3297
          %v3299 = vsel %vm3298, %v3290, %v3295
          %v3300 = vmul.f32 %v3266, %v3299
          %v3301 = vstv %s3285
          %v3302 = vmul.f32 %v3301, %v3300
          %v3303 = vadd.f32 %v3284, %v3302
          %v3304 = vmul.f32 %v3303, %v3303
          %3305 = vadd.xlane.f32.xlu0 %v3304
          %v3306 = vpop.xlane.xlu0 %3305
          %v3307 = vmax.f32 %v3306, 1e-24
          %v3308 = vrsqrt.pop %v3307
          %v3309 = vmul.f32 %v3308, %v3307
          %v3310 = vmul.f32 %v3309, %v3308
          %v3311 = vmul.f32 0.5, %v3310
          %v3312 = vsub.f32 1.5, %v3311
          %v3313 = vmul.f32 %v3308, %v3312
          %vm3314 = vweird.f32 %v3307
          %vm3315 = vweird.f32 %v3308
          %vm3316 = vmor %vm3314, %vm3315
          %v3317 = vsel %vm3316, %v3308, %v3313
          %v3318 = vmul.f32 %v3303, %v3317
          %3319 = vst [vmem:[%s377] sm:$0xff] %v3318
        $region68: #{tpu_custom_call.1} parent=39 // pred_fallthru
          _
        %s3320 = sand.u32 %s162, 1
        %s3321 = scalar_lea.sflag [#allocation8], %s3320
        %s3322 = sand.u32 %s162, 1
        %s3323 = smul.addr %s3322, 8
        %s3324 = scalar_lea.vmem [#allocation16], %s3323
        %s3325 = sand.u32 %s188, 1
        %s3326 = scalar_lea.sflag [#allocation18], %s3325
        %s3327 = sand.u32 %s188, 1
        %s3328 = smul.addr %s3327, 16
        %s3329 = scalar_lea.vmem [#allocation17], %s3328
        // Predicated region
        $region69: #{tpu_custom_call.1} parent=39 // pred_check
          %p3330 = pneg %p172
        $region70: #{tpu_custom_call.1} parent=39 // pred_check_branch
          %3332 = sbr.rel (%p3330) target = $region72
        $region71: #{tpu_custom_call.1} parent=39 // pred_region
          %3334 = vsyncadd %s3321, 0
          %s3335 = smul.addr %s34, 8
          %s3336 = scalar_lea.hbm %s5, %s3335
          %s3338 = sshll.u32 %s3324, 4
          %s3339 = int_to_ptr.vmem [resolvable:$true] %s3338
          %s3340 = sshll.u32 %s3336, 4
          %s3341 = int_to_ptr.hbm [resolvable:$true] %s3340
          %3343 = dma.vmem_to_hbm [thread:$0]  %s3339, 128, %s3341, %s3321
        $region72: #{tpu_custom_call.1} parent=39 // pred_fallthru
          _
        // Predicated region
        $region73: #{tpu_custom_call.1} parent=39 // pred_check
          %p3344 = pneg %p198
        $region74: #{tpu_custom_call.1} parent=39 // pred_check_branch
          %3346 = sbr.rel (%p3344) target = $region76
        $region75: #{tpu_custom_call.1} parent=39 // pred_region
          %s3347 = smul.u32 8, %s34
          %3349 = vsyncadd %s3326, 0
          %s3350 = smul.addr %s3347, 2
          %s3351 = scalar_lea.hbm %s6, %s3350
          %s3352 = sshll.u32 %s3329, 4
          %s3353 = int_to_ptr.vmem [resolvable:$true] %s3352
          %s3354 = sshll.u32 %s3351, 4
          %s3355 = int_to_ptr.hbm [resolvable:$true] %s3354
          %3360 = dma.vmem_to_hbm [thread:$0]  %s3353, 256, %s3355, %s3326, 32, 32, 2
        $region76: #{tpu_custom_call.1} parent=39 // pred_fallthru
          _
      $region40: #{tpu_custom_call.1} parent=5 // pred_fallthru
        _
      %p3361 = scmp.le.s32.totalorder 2, %s25
      // Predicated region
      $region77: #{tpu_custom_call.1} parent=5 // pred_check
        %p3362 = pneg %p3361
      $region78: #{tpu_custom_call.1} parent=5 // pred_check_branch
        %3364 = sbr.rel (%p3362) target = $region80
      $region79: #{tpu_custom_call.1} parent=5 // pred_region
        %s3365 = ssub.s32 %s25, 2
        // Predicated region
        $region81: #{tpu_custom_call.1} parent=79 // pred_check
          %p3366 = pneg %p178
        $region82: #{tpu_custom_call.1} parent=79 // pred_check_branch
          %3368 = sbr.rel (%p3366) target = $region84
        $region83: #{tpu_custom_call.1} parent=79 // pred_region
          %s3369 = sand.u32 %s163, 1
          %s3370 = scalar_lea.sflag [#allocation8], %s3369
          %s3371 = sand.u32 %s163, 1
          %s3372 = smul.addr %s3371, 8
          %s3373 = scalar_lea.vmem [#allocation16], %s3372
          %3375 = dma.done %s3370, 128
        $region84: #{tpu_custom_call.1} parent=79 // pred_fallthru
          _
        // Predicated region
        $region85: #{tpu_custom_call.1} parent=79 // pred_check
          %p3376 = pneg %p204
        $region86: #{tpu_custom_call.1} parent=79 // pred_check_branch
          %3378 = sbr.rel (%p3376) target = $region88
        $region87: #{tpu_custom_call.1} parent=79 // pred_region
          %s3379 = sand.u32 %s189, 1
          %s3380 = scalar_lea.sflag [#allocation18], %s3379
          %s3381 = sand.u32 %s189, 1
          %s3382 = smul.addr %s3381, 16
          %s3383 = scalar_lea.vmem [#allocation17], %s3382
          %3385 = dma.done %s3380, 256
        $region88: #{tpu_custom_call.1} parent=79 // pred_fallthru
          _
      $region80: #{tpu_custom_call.1} parent=5 // pred_fallthru
        _
    $region6: #{tpu_custom_call.1} parent=1 // loop_footer
      %s29 = sadd.s32 1, %s25
    $region7: #{tpu_custom_call.1} parent=1 // loop_footer_branch
      %24 = sbr.rel target = $region3
    $region8: #{tpu_custom_call.1} parent=1 // loop_exit
      _
    %3386 = vsyncpa [#allocation7], 1
    %s3387 = scalar_lea.sflag [#allocation7], 1
    %3388 = vsyncpa %s3387, 1
    %3389 = vsyncpa [#allocation11], 1
    %3390 = vsyncpa [#allocation14], 1
    %3391 = vsyncpa [#allocation8], 1
    %s3392 = scalar_lea.sflag [#allocation8], 1
    %3393 = vsyncpa %s3392, 1
    %3394 = vsyncpa [#allocation18], 1
    %s3395 = scalar_lea.sflag [#allocation18], 1
    %3396 = vsyncpa %s3395, 1
    %3397 = vsyncpa [#allocation9], 1
    %s3398 = scalar_lea.sflag [#allocation9], 1
    %3399 = vsyncpa %s3398, 1

</llo_original>
